<compile_context>
chip_gen: v6e
topology: v6e:2x2x1
jax: 0.10.0
libtpu: 0.0.40
codegen_flags: <defaults>
</compile_context>

<pallas_src>
import math

import jax
import jax.numpy as jnp
from jax.experimental import pallas as pl
from jax.experimental.pallas import tpu as pltpu

# ----------------------------- model config (small) -------------------------
N_LAYERS = 2
D_MODEL = 128               # must be a multiple of 64 (head dim in SelfAttention)
Z_DIM = 32
CTX_LEN = 1
HEAD_DIM = 64
N_HEADS = D_MODEL // HEAD_DIM
D_FF = 4 * D_MODEL
SEQ = CTX_LEN + 2           # [time_emb, z, z_prev] -> 3 real tokens
SEQ_PAD = 8                 # padded sequence length for 8-sublane alignment
LN_EPS = 1e-5
NEG_INF = -1e30


# ----------------------------- in-kernel helpers ----------------------------
def _layernorm(h, w, b):
    mu = jnp.mean(h, axis=-1, keepdims=True)
    var = jnp.mean(jnp.square(h - mu), axis=-1, keepdims=True)
    return (h - mu) * jax.lax.rsqrt(var + LN_EPS) * w + b


def _gelu(x):
    # tanh-approx GELU: runs on the EUP slot; ~1e-3 max abs error vs. the exact
    # erf GELU used by torch.nn.GELU() (intentional, per perf review).
    c = 0.7978845608028654  # sqrt(2/pi)
    return 0.5 * x * (1.0 + jnp.tanh(c * (x + 0.044715 * x * x * x)))


def _dense_f32(h, w, b=None):
    # h: [N, S, Din] f32, w: [Din, Dout] f32
    n, s, din = h.shape
    out = jnp.dot(h.reshape(n * s, din), w, preferred_element_type=jnp.float32)
    if b is not None:
        out = out + b
    return out.reshape(n, s, w.shape[1])


def _dense_bf16(h, w_bf16, b=None):
    # h: [N, S, Din] f32 activations, w: [Din, Dout] bf16 weights.
    # Native bf16 x bf16 -> f32 MXU matmul; bias add and output stay f32.
    n, s, din = h.shape
    out = jnp.dot(h.reshape(n * s, din).astype(jnp.bfloat16), w_bf16,
                  preferred_element_type=jnp.float32)
    if b is not None:
        out = out + b
    return out.reshape(n, s, w_bf16.shape[1])


# ----------------------------- the Pallas kernel -----------------------------
def ldlm_kernel(x0_ref, bias_ref, pos_ref, nin_ref,
                ln_w_ref, ln_b_ref,
                qkv_w_ref, qkv_b_ref,
                o_w_ref, o_b_ref,
                ug_w_ref, ug_b_ref,
                dn_w_ref, dn_b_ref,
                nout_wb_ref, zout_w_ref, zout_b_ref,
                z_out_ref,
                x_vmem):
    layer = pl.program_id(0)
    scale = 1.0 / math.sqrt(HEAD_DIM)

    # ---- prologue (layer 0): pos_emb add + norm_in, seed the residual scratch
    @pl.when(layer == 0)
    def _prologue():
        x0 = x0_ref[...] + pos_ref[...]                    # [N,S,D] + [S,D]
        x_vmem[...] = _layernorm(x0, nin_ref[0:1, :], nin_ref[1:2, :])

    x = x_vmem[...]                                        # [N, S, D] f32 residual
    bias = bias_ref[...]                                   # [N, S, S] additive attn bias
    lw = ln_w_ref[0]                                       # [4, D]: attn/q/k/ff norms
    lb = ln_b_ref[0]

    # ----------------- SelfAttention (with QK LayerNorm) -----------------
    h = _layernorm(x, lw[0:1, :], lb[0:1, :])
    qkv = _dense_bf16(h, qkv_w_ref[0], qkv_b_ref[0])       # [N, S, 3D] f32
    # fold the 1/sqrt(head_dim) scale into q (instead of scaling the scores)
    q = _layernorm(qkv[:, :, 0:D_MODEL], lw[1:2, :], lb[1:2, :]) * scale
    k = _layernorm(qkv[:, :, D_MODEL:2 * D_MODEL], lw[2:3, :], lb[2:3, :])
    v = qkv[:, :, 2 * D_MODEL:3 * D_MODEL]

    # Per-head attention via lane masks: operands stay 128-lane dense (no
    # lane-offset-64 slices, no axis-0 concat / relayout).  For head h,
    # (q * mask_h) @ k^T == q_h @ k_h^T since the other head's lanes are zero,
    # and p_h @ (v * mask_h) puts head h's output in its own lanes in place.
    lane = jax.lax.broadcasted_iota(jnp.int32, (1, D_MODEL), 1)
    ctx = jnp.zeros_like(v)
    for hh in range(N_HEADS):
        m = ((lane >= hh * HEAD_DIM) &
             (lane < (hh + 1) * HEAD_DIM)).astype(jnp.float32)             # [1, D]
        s = jnp.einsum('nsd,ntd->nst', q * m, k,
                       preferred_element_type=jnp.float32) + bias          # [N,S,S]
        s = s - jnp.max(s, axis=-1, keepdims=True)
        p = jnp.exp(s)
        p = p * pl.reciprocal(jnp.sum(p, axis=-1, keepdims=True), approx=True)
        ctx = ctx + jnp.einsum('nst,ntd->nsd', p, v * m,
                               preferred_element_type=jnp.float32)          # [N,S,D]

    # single dense o-projection over the full 128-lane head-concatenated ctx
    x = x + _dense_bf16(ctx, o_w_ref[0], o_b_ref[0])

    # ----------------- FeedForward (gated GELU) -----------------
    h = _layernorm(x, lw[3:4, :], lb[3:4, :])
    ug = _dense_bf16(h, ug_w_ref[0], ug_b_ref[0])          # [N, S, 2*D_FF]
    up = ug[:, :, 0:D_FF]
    gate = ug[:, :, D_FF:2 * D_FF]
    x = x + _dense_bf16(_gelu(gate) * up, dn_w_ref[0], dn_b_ref[0])

    x_vmem[...] = x

    # ----------------- epilogue (last layer): output head -----------------
    @pl.when(layer == N_LAYERS - 1)
    def _epilogue():
        hf = _layernorm(x, nout_wb_ref[0:1, :], nout_wb_ref[1:2, :])
        # latent position (index 1) only
        z_out_ref[...] = _dense_f32(hf[:, 1:2, :], zout_w_ref[...], zout_b_ref[...])


# ----------------------------- wrapper (glue + pallas_call) ------------------
def ldlm_forward(params, z, sigma, z_prev, padding_mask):
    n = z.shape[0]

    # --- embedding glue (tiny, stays in plain JAX) ---
    z_in = jnp.einsum('nz,zd->nd', z, params['z_in_w'])[:, None, :]          # [N,1,D]
    z_prev_in = jnp.einsum('ncz,zd->ncd', z_prev, params['z_in_w'])          # [N,C,D]
    f = (jnp.log(sigma) / 4.0)[:, None, None] * (2.0 * math.pi) \
        * params['ff_w'][None, None, :]
    time_emb = jnp.concatenate([jnp.cos(f), jnp.sin(f)], axis=-1)            # [N,1,D]
    x = jnp.concatenate([time_emb, z_in, z_prev_in], axis=1)                 # [N,SEQ,D]

    pm = jnp.concatenate(
        [jnp.ones((n, 2), jnp.float32), padding_mask.astype(jnp.float32)], axis=1)

    # --- pad sequence 3 -> 8 (padded tokens are masked out & never read out) ---
    x_pad = jnp.zeros((n, SEQ_PAD, D_MODEL), jnp.float32).at[:, :SEQ, :].set(x)
    pm_pad = jnp.zeros((n, SEQ_PAD), jnp.float32).at[:, :SEQ].set(pm)
    pos_pad = jnp.zeros((SEQ_PAD, D_MODEL), jnp.float32).at[:SEQ, :].set(params['pos_emb'])
    nin_wb = jnp.stack([params['norm_in_w'], params['norm_in_b']])           # [2,D]

    eye = jnp.eye(SEQ_PAD, dtype=jnp.float32)
    mask = jnp.maximum(pm_pad[:, :, None] * pm_pad[:, None, :], eye)
    attn_bias = jnp.where(mask > 0, 0.0, NEG_INF).astype(jnp.float32)        # [N,S,S]

    resident3 = lambda l: (0, 0, 0)
    resident2 = lambda l: (0, 0)
    per_layer = lambda l: (l, 0, 0)

    # grid = layers: Pallas double-buffers layer l+1's weight DMA behind layer
    # l's compute; small resident inputs (constant index_map) are fetched once.
    grid_spec = pltpu.PrefetchScalarGridSpec(
        num_scalar_prefetch=0,
        grid=(N_LAYERS,),
        in_specs=[
            pl.BlockSpec((n, SEQ_PAD, D_MODEL), resident3),        # x_pad
            pl.BlockSpec((n, SEQ_PAD, SEQ_PAD), resident3),        # attn_bias
            pl.BlockSpec((SEQ_PAD, D_MODEL), resident2),           # pos_emb (padded)
            pl.BlockSpec((2, D_MODEL), resident2),                 # norm_in w|b
            pl.BlockSpec((1, 4, D_MODEL), per_layer),              # ln_w
            pl.BlockSpec((1, 4, D_MODEL), per_layer),              # ln_b
            pl.BlockSpec((1, D_MODEL, 3 * D_MODEL), per_layer),    # qkv_w (bf16)
            pl.BlockSpec((1, 1, 3 * D_MODEL), per_layer),          # qkv_b
            pl.BlockSpec((1, D_MODEL, D_MODEL), per_layer),        # o_w (bf16)
            pl.BlockSpec((1, 1, D_MODEL), per_layer),              # o_b
            pl.BlockSpec((1, D_MODEL, 2 * D_FF), per_layer),       # ug_w (bf16)
            pl.BlockSpec((1, 1, 2 * D_FF), per_layer),             # ug_b
            pl.BlockSpec((1, D_FF, D_MODEL), per_layer),           # dn_w (bf16)
            pl.BlockSpec((1, 1, D_MODEL), per_layer),              # dn_b
            pl.BlockSpec((2, D_MODEL), resident2),                 # norm_out w|b
            pl.BlockSpec((D_MODEL, Z_DIM), resident2),             # zout_w
            pl.BlockSpec((1, Z_DIM), resident2),                   # zout_b
        ],
        out_specs=pl.BlockSpec((n, 1, Z_DIM), resident3),
        scratch_shapes=[pltpu.VMEM((n, SEQ_PAD, D_MODEL), jnp.float32)],     # residual stream
    )

    flops_per_layer = (
        2 * (n * SEQ_PAD) * D_MODEL * (3 * D_MODEL + D_MODEL + 2 * D_FF)
        + 2 * (n * SEQ_PAD) * D_FF * D_MODEL
        + 4 * N_HEADS * n * SEQ_PAD * SEQ_PAD * D_MODEL)
    weight_bytes = 2 * N_LAYERS * (D_MODEL * 3 * D_MODEL + D_MODEL * D_MODEL
                                   + D_MODEL * 2 * D_FF + D_FF * D_MODEL)
    cost = pl.CostEstimate(
        flops=N_LAYERS * flops_per_layer + 2 * n * D_MODEL * Z_DIM,
        transcendentals=N_LAYERS * (N_HEADS * n * SEQ_PAD * SEQ_PAD + n * SEQ_PAD * D_FF),
        bytes_accessed=weight_bytes + 4 * n * SEQ_PAD * (D_MODEL + SEQ_PAD) + 4 * n * Z_DIM,
    )

    # TODO(synk): for large batch on v7x, add a leading "parallel" batch grid axis
    # to use both TensorCores; at N=2 the duplicated weight DMA outweighs the win.
    out = pl.pallas_call(
        ldlm_kernel,
        out_shape=jax.ShapeDtypeStruct((n, 1, Z_DIM), jnp.float32),
        grid_spec=grid_spec,
        compiler_params=pltpu.CompilerParams(dimension_semantics=("arbitrary",)),
        cost_estimate=cost,
    )(x_pad, attn_bias, pos_pad, nin_wb,
      params['ln_w'], params['ln_b'],
      params['qkv_w'], params['qkv_b'],
      params['o_w'], params['o_b'],
      params['ug_w'], params['ug_b'],
      params['dn_w'], params['dn_b'],
      params['nout_wb'], params['zout_w'], params['zout_b'])
    return out[:, 0, :]                                                      # [N, Z_DIM]


# ----------------------------- deterministic init ----------------------------
def init_params(key):
    k = jax.random.split(key, 12)
    sd = 1.0 / math.sqrt(D_MODEL)
    sz = 1.0 / math.sqrt(Z_DIM)
    sf = 1.0 / math.sqrt(D_FF)
    f32, bf16 = jnp.float32, jnp.bfloat16
    return dict(
        ff_w=jax.random.normal(k[0], (D_MODEL // 2,), f32),                  # FourierFeatures(1, D)
        z_in_w=jax.random.normal(k[1], (Z_DIM, D_MODEL), f32) * sz,          # z_in_proj (no bias)
        pos_emb=jax.random.normal(k[2], (SEQ, D_MODEL), f32) * sd,
        norm_in_w=jnp.ones((D_MODEL,), f32),
        norm_in_b=jnp.zeros((D_MODEL,), f32),
        ln_w=jnp.ones((N_LAYERS, 4, D_MODEL), f32),                          # attn/q/k/ff norms
        ln_b=jnp.zeros((N_LAYERS, 4, D_MODEL), f32),
        # large projection weights stored & consumed as bf16 (native bf16 MXU
        # matmul, f32 accumulation); biases and residual stream stay f32.
        qkv_w=(jax.random.normal(k[3], (N_LAYERS, D_MODEL, 3 * D_MODEL), f32) * sd).astype(bf16),
        qkv_b=jax.random.normal(k[4], (N_LAYERS, 1, 3 * D_MODEL), f32) * 0.01,
        o_w=(jax.random.normal(k[5], (N_LAYERS, D_MODEL, D_MODEL), f32) * sd).astype(bf16),
        o_b=jax.random.normal(k[6], (N_LAYERS, 1, D_MODEL), f32) * 0.01,
        ug_w=(jax.random.normal(k[7], (N_LAYERS, D_MODEL, 2 * D_FF), f32) * sd).astype(bf16),  # up | gate
        ug_b=jax.random.normal(k[8], (N_LAYERS, 1, 2 * D_FF), f32) * 0.01,
        dn_w=(jax.random.normal(k[9], (N_LAYERS, D_FF, D_MODEL), f32) * sf).astype(bf16),
        dn_b=jax.random.normal(k[10], (N_LAYERS, 1, D_MODEL), f32) * 0.01,
        nout_wb=jnp.stack([jnp.ones((D_MODEL,)), jnp.zeros((D_MODEL,))]).astype(f32),
        zout_w=jax.random.normal(k[11], (D_MODEL, Z_DIM), f32) * sd,
        zout_b=jnp.zeros((1, Z_DIM), f32),
    )


if __name__ == "__main__":
    key = jax.random.PRNGKey(0)
    pk, zk, zpk, sk = jax.random.split(key, 4)
    params = init_params(pk)

    N = 2
    z = jax.random.normal(zk, (N, Z_DIM), jnp.float32)
    z_prev = jax.random.normal(zpk, (N, CTX_LEN, Z_DIM), jnp.float32)
    sigma = jnp.exp(jax.random.normal(sk, (N,), jnp.float32))        # positive noise levels
    padding_mask = jnp.array([[1], [0]], dtype=jnp.int32)            # [N, CTX_LEN]

    fwd = jax.jit(ldlm_forward)
    out = jax.block_until_ready(fwd(params, z, sigma, z_prev, padding_mask))

    assert out.shape == (N, Z_DIM), out.shape
    assert bool(jnp.all(jnp.isfinite(out)))
    print("KERNEL_OK")
</pallas_src>

<mosaic_0001>
module attributes {stable_mosaic.version = 11 : i64} {
  func.func @ldlm_kernel(%arg0: i32, %arg1: memref<2x8x128xf32, #tpu.memory_space<vmem>>, %arg2: memref<2x8x8xf32, #tpu.memory_space<vmem>>, %arg3: memref<8x128xf32, #tpu.memory_space<vmem>>, %arg4: memref<2x128xf32, #tpu.memory_space<vmem>>, %arg5: memref<1x4x128xf32, #tpu.memory_space<vmem>>, %arg6: memref<1x4x128xf32, #tpu.memory_space<vmem>>, %arg7: memref<1x128x384xbf16, #tpu.memory_space<vmem>>, %arg8: memref<1x1x384xf32, #tpu.memory_space<vmem>>, %arg9: memref<1x128x128xbf16, #tpu.memory_space<vmem>>, %arg10: memref<1x1x128xf32, #tpu.memory_space<vmem>>, %arg11: memref<1x128x1024xbf16, #tpu.memory_space<vmem>>, %arg12: memref<1x1x1024xf32, #tpu.memory_space<vmem>>, %arg13: memref<1x512x128xbf16, #tpu.memory_space<vmem>>, %arg14: memref<1x1x128xf32, #tpu.memory_space<vmem>>, %arg15: memref<2x128xf32, #tpu.memory_space<vmem>>, %arg16: memref<128x32xf32, #tpu.memory_space<vmem>>, %arg17: memref<1x32xf32, #tpu.memory_space<vmem>>, %arg18: memref<2x1x32xf32, #tpu.memory_space<vmem>>, %arg19: memref<2x8x128xf32, #tpu.memory_space<vmem>>) attributes {dimension_semantics = [#tpu.dimension_semantics<arbitrary>], iteration_bounds = array<i64: 2>, scalar_prefetch = 0 : i64, scratch_operands = 1 : i64, tpu.core_type = #tpu.core_type<tc>, window_params = [{pipeline_mode = #tpu.pipeline_mode<synchronous>, transform_indices = @transform_0, window_bounds = array<i64: 2, 8, 128>}, {pipeline_mode = #tpu.pipeline_mode<synchronous>, transform_indices = @transform_1, window_bounds = array<i64: 2, 8, 8>}, {pipeline_mode = #tpu.pipeline_mode<synchronous>, transform_indices = @transform_2, window_bounds = array<i64: 8, 128>}, {pipeline_mode = #tpu.pipeline_mode<synchronous>, transform_indices = @transform_3, window_bounds = array<i64: 2, 128>}, {transform_indices = @transform_4, window_bounds = array<i64: 1, 4, 128>}, {transform_indices = @transform_5, window_bounds = array<i64: 1, 4, 128>}, {transform_indices = @transform_6, window_bounds = array<i64: 1, 128, 384>}, {transform_indices = @transform_7, window_bounds = array<i64: 1, 1, 384>}, {transform_indices = @transform_8, window_bounds = array<i64: 1, 128, 128>}, {transform_indices = @transform_9, window_bounds = array<i64: 1, 1, 128>}, {transform_indices = @transform_10, window_bounds = array<i64: 1, 128, 1024>}, {transform_indices = @transform_11, window_bounds = array<i64: 1, 1, 1024>}, {transform_indices = @transform_12, window_bounds = array<i64: 1, 512, 128>}, {transform_indices = @transform_13, window_bounds = array<i64: 1, 1, 128>}, {pipeline_mode = #tpu.pipeline_mode<synchronous>, transform_indices = @transform_14, window_bounds = array<i64: 2, 128>}, {pipeline_mode = #tpu.pipeline_mode<synchronous>, transform_indices = @transform_15, window_bounds = array<i64: 128, 32>}, {pipeline_mode = #tpu.pipeline_mode<synchronous>, transform_indices = @transform_16, window_bounds = array<i64: 1, 32>}, {pipeline_mode = #tpu.pipeline_mode<synchronous>, transform_indices = @transform_17, window_bounds = array<i64: 2, 1, 32>}]} {
    %c0_i32 = arith.constant 0 : i32
    %0 = arith.cmpi eq, %arg0, %c0_i32 : i32
    %1 = arith.extui %0 : i1 to i32
    %c0_i32_0 = arith.constant 0 : i32
    %2 = arith.cmpi ne, %1, %c0_i32_0 : i32
    scf.if %2 {
      %c0_79 = arith.constant 0 : index
      %c0_80 = arith.constant 0 : index
      %c0_81 = arith.constant 0 : index
      %236 = vector.load %arg1[%c0_79, %c0_80, %c0_81] : memref<2x8x128xf32, #tpu.memory_space<vmem>>, vector<2x8x128xf32>
      %c0_82 = arith.constant 0 : index
      %c0_83 = arith.constant 0 : index
      %237 = vector.load %arg3[%c0_82, %c0_83] : memref<8x128xf32, #tpu.memory_space<vmem>>, vector<8x128xf32>
      %238 = vector.shape_cast %237 : vector<8x128xf32> to vector<1x8x128xf32>
      %239 = vector.broadcast %238 : vector<1x8x128xf32> to vector<2x8x128xf32>
      %240 = arith.addf %236, %239 : vector<2x8x128xf32>
      %c0_84 = arith.constant 0 : index
      %c0_85 = arith.constant 0 : index
      %241 = vector.load %arg4[%c0_84, %c0_85] : memref<2x128xf32, #tpu.memory_space<vmem>>, vector<1x128xf32>
      %c1 = arith.constant 1 : index
      %c0_86 = arith.constant 0 : index
      %242 = vector.load %arg4[%c1, %c0_86] : memref<2x128xf32, #tpu.memory_space<vmem>>, vector<1x128xf32>
      %cst_87 = arith.constant dense<0.000000e+00> : vector<2x8xf32>
      %243 = vector.multi_reduction <add>, %240, %cst_87 [2] : vector<2x8x128xf32> to vector<2x8xf32>
      %244 = vector.shape_cast %243 : vector<2x8xf32> to vector<2x8x1xf32>
      %cst_88 = arith.constant 1.280000e+02 : f32
      %245 = vector.broadcast %cst_88 : f32 to vector<2x8x1xf32>
      %246 = arith.divf %244, %245 : vector<2x8x1xf32>
      %247 = vector.broadcast %246 : vector<2x8x1xf32> to vector<2x8x128xf32>
      %248 = arith.subf %240, %247 : vector<2x8x128xf32>
      %249 = arith.mulf %248, %248 : vector<2x8x128xf32>
      %cst_89 = arith.constant dense<0.000000e+00> : vector<2x8xf32>
      %250 = vector.multi_reduction <add>, %249, %cst_89 [2] : vector<2x8x128xf32> to vector<2x8xf32>
      %251 = vector.shape_cast %250 : vector<2x8xf32> to vector<2x8x1xf32>
      %cst_90 = arith.constant 1.280000e+02 : f32
      %252 = vector.broadcast %cst_90 : f32 to vector<2x8x1xf32>
      %253 = arith.divf %251, %252 : vector<2x8x1xf32>
      %254 = vector.broadcast %246 : vector<2x8x1xf32> to vector<2x8x128xf32>
      %255 = arith.subf %240, %254 : vector<2x8x128xf32>
      %cst_91 = arith.constant 9.99999974E-6 : f32
      %256 = vector.broadcast %cst_91 : f32 to vector<2x8x1xf32>
      %257 = arith.addf %253, %256 : vector<2x8x1xf32>
      %258 = math.rsqrt %257 : vector<2x8x1xf32>
      %259 = vector.broadcast %258 : vector<2x8x1xf32> to vector<2x8x128xf32>
      %260 = arith.mulf %255, %259 : vector<2x8x128xf32>
      %261 = vector.shape_cast %241 : vector<1x128xf32> to vector<1x1x128xf32>
      %262 = vector.broadcast %261 : vector<1x1x128xf32> to vector<2x8x128xf32>
      %263 = arith.mulf %260, %262 : vector<2x8x128xf32>
      %264 = vector.shape_cast %242 : vector<1x128xf32> to vector<1x1x128xf32>
      %265 = vector.broadcast %264 : vector<1x1x128xf32> to vector<2x8x128xf32>
      %266 = arith.addf %263, %265 : vector<2x8x128xf32>
      %c0_92 = arith.constant 0 : index
      %c0_93 = arith.constant 0 : index
      %c0_94 = arith.constant 0 : index
      %267 = vector.load %arg19[%c0_92, %c0_93, %c0_94] : memref<2x8x128xf32, #tpu.memory_space<vmem>>, vector<2x8x128xf32>
      tpu.vector_store %arg19[%c0_92, %c0_93, %c0_94], %266 {strides = array<i32>} : memref<2x8x128xf32, #tpu.memory_space<vmem>>, vector<2x8x128xf32>,
    } else {
    }
    %c0 = arith.constant 0 : index
    %c0_1 = arith.constant 0 : index
    %c0_2 = arith.constant 0 : index
    %3 = vector.load %arg19[%c0, %c0_1, %c0_2] : memref<2x8x128xf32, #tpu.memory_space<vmem>>, vector<2x8x128xf32>
    %c0_3 = arith.constant 0 : index
    %c0_4 = arith.constant 0 : index
    %c0_5 = arith.constant 0 : index
    %4 = vector.load %arg2[%c0_3, %c0_4, %c0_5] : memref<2x8x8xf32, #tpu.memory_space<vmem>>, vector<2x8x8xf32>
    %c0_6 = arith.constant 0 : index
    %c0_7 = arith.constant 0 : index
    %c0_8 = arith.constant 0 : index
    %5 = vector.load %arg5[%c0_6, %c0_7, %c0_8] : memref<1x4x128xf32, #tpu.memory_space<vmem>>, vector<1x4x128xf32>
    %6 = vector.shape_cast %5 : vector<1x4x128xf32> to vector<4x128xf32>
    %c0_9 = arith.constant 0 : index
    %c0_10 = arith.constant 0 : index
    %c0_11 = arith.constant 0 : index
    %7 = vector.load %arg6[%c0_9, %c0_10, %c0_11] : memref<1x4x128xf32, #tpu.memory_space<vmem>>, vector<1x4x128xf32>
    %8 = vector.shape_cast %7 : vector<1x4x128xf32> to vector<4x128xf32>
    %9 = vector.extract_strided_slice %6 {offsets = [0, 0], sizes = [1, 128], strides = [1, 1]} : vector<4x128xf32> to vector<1x128xf32>
    %10 = vector.extract_strided_slice %8 {offsets = [0, 0], sizes = [1, 128], strides = [1, 1]} : vector<4x128xf32> to vector<1x128xf32>
    %cst = arith.constant dense<0.000000e+00> : vector<2x8xf32>
    %11 = vector.multi_reduction <add>, %3, %cst [2] : vector<2x8x128xf32> to vector<2x8xf32>
    %12 = vector.shape_cast %11 : vector<2x8xf32> to vector<2x8x1xf32>
    %cst_12 = arith.constant 1.280000e+02 : f32
    %13 = vector.broadcast %cst_12 : f32 to vector<2x8x1xf32>
    %14 = arith.divf %12, %13 : vector<2x8x1xf32>
    %15 = vector.broadcast %14 : vector<2x8x1xf32> to vector<2x8x128xf32>
    %16 = arith.subf %3, %15 : vector<2x8x128xf32>
    %17 = arith.mulf %16, %16 : vector<2x8x128xf32>
    %cst_13 = arith.constant dense<0.000000e+00> : vector<2x8xf32>
    %18 = vector.multi_reduction <add>, %17, %cst_13 [2] : vector<2x8x128xf32> to vector<2x8xf32>
    %19 = vector.shape_cast %18 : vector<2x8xf32> to vector<2x8x1xf32>
    %cst_14 = arith.constant 1.280000e+02 : f32
    %20 = vector.broadcast %cst_14 : f32 to vector<2x8x1xf32>
    %21 = arith.divf %19, %20 : vector<2x8x1xf32>
    %22 = vector.broadcast %14 : vector<2x8x1xf32> to vector<2x8x128xf32>
    %23 = arith.subf %3, %22 : vector<2x8x128xf32>
    %cst_15 = arith.constant 9.99999974E-6 : f32
    %24 = vector.broadcast %cst_15 : f32 to vector<2x8x1xf32>
    %25 = arith.addf %21, %24 : vector<2x8x1xf32>
    %26 = math.rsqrt %25 : vector<2x8x1xf32>
    %27 = vector.broadcast %26 : vector<2x8x1xf32> to vector<2x8x128xf32>
    %28 = arith.mulf %23, %27 : vector<2x8x128xf32>
    %29 = vector.shape_cast %9 : vector<1x128xf32> to vector<1x1x128xf32>
    %30 = vector.broadcast %29 : vector<1x1x128xf32> to vector<2x8x128xf32>
    %31 = arith.mulf %28, %30 : vector<2x8x128xf32>
    %32 = vector.shape_cast %10 : vector<1x128xf32> to vector<1x1x128xf32>
    %33 = vector.broadcast %32 : vector<1x1x128xf32> to vector<2x8x128xf32>
    %34 = arith.addf %31, %33 : vector<2x8x128xf32>
    %c0_16 = arith.constant 0 : index
    %c0_17 = arith.constant 0 : index
    %c0_18 = arith.constant 0 : index
    %35 = vector.load %arg7[%c0_16, %c0_17, %c0_18] : memref<1x128x384xbf16, #tpu.memory_space<vmem>>, vector<1x128x384xbf16>
    %36 = vector.shape_cast %35 : vector<1x128x384xbf16> to vector<128x384xbf16>
    %c0_19 = arith.constant 0 : index
    %c0_20 = arith.constant 0 : index
    %c0_21 = arith.constant 0 : index
    %37 = vector.load %arg8[%c0_19, %c0_20, %c0_21] : memref<1x1x384xf32, #tpu.memory_space<vmem>>, vector<1x1x384xf32>
    %38 = vector.shape_cast %37 : vector<1x1x384xf32> to vector<1x384xf32>
    %39 = vector.shape_cast %34 : vector<2x8x128xf32> to vector<16x128xf32>
    %40 = arith.truncf %39 : vector<16x128xf32> to vector<16x128xbf16>
    %cst_22 = arith.constant dense<0.000000e+00> : vector<16x384xf32>
    %41 = tpu.matmul %40, %36, %cst_22 {dimension_numbers = #tpu.dot_dimension_numbers<[1], [0], [0], [1], [0, 0, 1, 1], [], []>} : vector<16x128xbf16>, vector<128x384xbf16>, vector<16x384xf32> -> vector<16x384xf32>
    %42 = vector.broadcast %38 : vector<1x384xf32> to vector<16x384xf32>
    %43 = arith.addf %41, %42 : vector<16x384xf32>
    %44 = vector.shape_cast %43 : vector<16x384xf32> to vector<2x8x384xf32>
    %45 = vector.extract_strided_slice %44 {offsets = [0, 0, 0], sizes = [2, 8, 128], strides = [1, 1, 1]} : vector<2x8x384xf32> to vector<2x8x128xf32>
    %46 = vector.extract_strided_slice %6 {offsets = [1, 0], sizes = [1, 128], strides = [1, 1]} : vector<4x128xf32> to vector<1x128xf32>
    %47 = vector.extract_strided_slice %8 {offsets = [1, 0], sizes = [1, 128], strides = [1, 1]} : vector<4x128xf32> to vector<1x128xf32>
    %cst_23 = arith.constant dense<0.000000e+00> : vector<2x8xf32>
    %48 = vector.multi_reduction <add>, %45, %cst_23 [2] : vector<2x8x128xf32> to vector<2x8xf32>
    %49 = vector.shape_cast %48 : vector<2x8xf32> to vector<2x8x1xf32>
    %cst_24 = arith.constant 1.280000e+02 : f32
    %50 = vector.broadcast %cst_24 : f32 to vector<2x8x1xf32>
    %51 = arith.divf %49, %50 : vector<2x8x1xf32>
    %52 = vector.broadcast %51 : vector<2x8x1xf32> to vector<2x8x128xf32>
    %53 = arith.subf %45, %52 : vector<2x8x128xf32>
    %54 = arith.mulf %53, %53 : vector<2x8x128xf32>
    %cst_25 = arith.constant dense<0.000000e+00> : vector<2x8xf32>
    %55 = vector.multi_reduction <add>, %54, %cst_25 [2] : vector<2x8x128xf32> to vector<2x8xf32>
    %56 = vector.shape_cast %55 : vector<2x8xf32> to vector<2x8x1xf32>
    %cst_26 = arith.constant 1.280000e+02 : f32
    %57 = vector.broadcast %cst_26 : f32 to vector<2x8x1xf32>
    %58 = arith.divf %56, %57 : vector<2x8x1xf32>
    %59 = vector.broadcast %51 : vector<2x8x1xf32> to vector<2x8x128xf32>
    %60 = arith.subf %45, %59 : vector<2x8x128xf32>
    %cst_27 = arith.constant 9.99999974E-6 : f32
    %61 = vector.broadcast %cst_27 : f32 to vector<2x8x1xf32>
    %62 = arith.addf %58, %61 : vector<2x8x1xf32>
    %63 = math.rsqrt %62 : vector<2x8x1xf32>
    %64 = vector.broadcast %63 : vector<2x8x1xf32> to vector<2x8x128xf32>
    %65 = arith.mulf %60, %64 : vector<2x8x128xf32>
    %66 = vector.shape_cast %46 : vector<1x128xf32> to vector<1x1x128xf32>
    %67 = vector.broadcast %66 : vector<1x1x128xf32> to vector<2x8x128xf32>
    %68 = arith.mulf %65, %67 : vector<2x8x128xf32>
    %69 = vector.shape_cast %47 : vector<1x128xf32> to vector<1x1x128xf32>
    %70 = vector.broadcast %69 : vector<1x1x128xf32> to vector<2x8x128xf32>
    %71 = arith.addf %68, %70 : vector<2x8x128xf32>
    %cst_28 = arith.constant 1.250000e-01 : f32
    %72 = vector.broadcast %cst_28 : f32 to vector<2x8x128xf32>
    %73 = arith.mulf %71, %72 : vector<2x8x128xf32>
    %74 = vector.extract_strided_slice %44 {offsets = [0, 0, 128], sizes = [2, 8, 128], strides = [1, 1, 1]} : vector<2x8x384xf32> to vector<2x8x128xf32>
    %75 = vector.extract_strided_slice %6 {offsets = [2, 0], sizes = [1, 128], strides = [1, 1]} : vector<4x128xf32> to vector<1x128xf32>
    %76 = vector.extract_strided_slice %8 {offsets = [2, 0], sizes = [1, 128], strides = [1, 1]} : vector<4x128xf32> to vector<1x128xf32>
    %cst_29 = arith.constant dense<0.000000e+00> : vector<2x8xf32>
    %77 = vector.multi_reduction <add>, %74, %cst_29 [2] : vector<2x8x128xf32> to vector<2x8xf32>
    %78 = vector.shape_cast %77 : vector<2x8xf32> to vector<2x8x1xf32>
    %cst_30 = arith.constant 1.280000e+02 : f32
    %79 = vector.broadcast %cst_30 : f32 to vector<2x8x1xf32>
    %80 = arith.divf %78, %79 : vector<2x8x1xf32>
    %81 = vector.broadcast %80 : vector<2x8x1xf32> to vector<2x8x128xf32>
    %82 = arith.subf %74, %81 : vector<2x8x128xf32>
    %83 = arith.mulf %82, %82 : vector<2x8x128xf32>
    %cst_31 = arith.constant dense<0.000000e+00> : vector<2x8xf32>
    %84 = vector.multi_reduction <add>, %83, %cst_31 [2] : vector<2x8x128xf32> to vector<2x8xf32>
    %85 = vector.shape_cast %84 : vector<2x8xf32> to vector<2x8x1xf32>
    %cst_32 = arith.constant 1.280000e+02 : f32
    %86 = vector.broadcast %cst_32 : f32 to vector<2x8x1xf32>
    %87 = arith.divf %85, %86 : vector<2x8x1xf32>
    %88 = vector.broadcast %80 : vector<2x8x1xf32> to vector<2x8x128xf32>
    %89 = arith.subf %74, %88 : vector<2x8x128xf32>
    %cst_33 = arith.constant 9.99999974E-6 : f32
    %90 = vector.broadcast %cst_33 : f32 to vector<2x8x1xf32>
    %91 = arith.addf %87, %90 : vector<2x8x1xf32>
    %92 = math.rsqrt %91 : vector<2x8x1xf32>
    %93 = vector.broadcast %92 : vector<2x8x1xf32> to vector<2x8x128xf32>
    %94 = arith.mulf %89, %93 : vector<2x8x128xf32>
    %95 = vector.shape_cast %75 : vector<1x128xf32> to vector<1x1x128xf32>
    %96 = vector.broadcast %95 : vector<1x1x128xf32> to vector<2x8x128xf32>
    %97 = arith.mulf %94, %96 : vector<2x8x128xf32>
    %98 = vector.shape_cast %76 : vector<1x128xf32> to vector<1x1x128xf32>
    %99 = vector.broadcast %98 : vector<1x1x128xf32> to vector<2x8x128xf32>
    %100 = arith.addf %97, %99 : vector<2x8x128xf32>
    %101 = vector.extract_strided_slice %44 {offsets = [0, 0, 256], sizes = [2, 8, 128], strides = [1, 1, 1]} : vector<2x8x384xf32> to vector<2x8x128xf32>
    %102 = tpu.iota {dimensions = array<i32: 1>} : vector<1x128xi32>
    %cst_34 = arith.constant 0.000000e+00 : f32
    %103 = vector.broadcast %cst_34 : f32 to vector<2x8x128xf32>
    %c0_i32_35 = arith.constant 0 : i32
    %104 = vector.broadcast %c0_i32_35 : i32 to vector<1x128xi32>
    %105 = arith.cmpi sge, %102, %104 : vector<1x128xi32>
    %c64_i32 = arith.constant 64 : i32
    %106 = vector.broadcast %c64_i32 : i32 to vector<1x128xi32>
    %107 = arith.cmpi slt, %102, %106 : vector<1x128xi32>
    %108 = arith.andi %105, %107 : vector<1x128xi1>
    %109 = arith.extui %108 : vector<1x128xi1> to vector<1x128xi32>
    %110 = arith.sitofp %109 : vector<1x128xi32> to vector<1x128xf32>
    %111 = vector.shape_cast %110 : vector<1x128xf32> to vector<1x1x128xf32>
    %112 = vector.broadcast %111 : vector<1x1x128xf32> to vector<2x8x128xf32>
    %113 = arith.mulf %73, %112 : vector<2x8x128xf32>
    "tpu.trace_start"() <{level = 10 : i32, message = "nsd,ntd->nst"}> : () -> ()
    %cst_36 = arith.constant dense<0.000000e+00> : vector<2x8x8xf32>
    %114 = tpu.matmul %113, %100, %cst_36 {dimension_numbers = #tpu.dot_dimension_numbers<[2], [2], [1], [1], [0, 0, 0, 1, 1, 1], [0], [0]>} : vector<2x8x128xf32>, vector<2x8x128xf32>, vector<2x8x8xf32> -> vector<2x8x8xf32>
    "tpu.trace_stop"() : () -> ()
    %115 = arith.addf %114, %4 : vector<2x8x8xf32>
    %cst_37 = arith.constant dense<0xFF800000> : vector<2x8xf32>
    %116 = vector.multi_reduction <maximumf>, %115, %cst_37 [2] : vector<2x8x8xf32> to vector<2x8xf32>
    %117 = vector.shape_cast %116 : vector<2x8xf32> to vector<2x8x1xf32>
    %118 = vector.broadcast %117 : vector<2x8x1xf32> to vector<2x8x8xf32>
    %119 = arith.subf %115, %118 : vector<2x8x8xf32>
    %120 = math.exp %119 : vector<2x8x8xf32>
    %cst_38 = arith.constant dense<0.000000e+00> : vector<2x8xf32>
    %121 = vector.multi_reduction <add>, %120, %cst_38 [2] : vector<2x8x8xf32> to vector<2x8xf32>
    %122 = vector.shape_cast %121 : vector<2x8xf32> to vector<2x8x1xf32>
    %123 = tpu.reciprocal %122 {approx = true} : vector<2x8x1xf32> -> vector<2x8x1xf32>
    %124 = vector.broadcast %123 : vector<2x8x1xf32> to vector<2x8x8xf32>
    %125 = arith.mulf %120, %124 : vector<2x8x8xf32>
    %126 = vector.shape_cast %110 : vector<1x128xf32> to vector<1x1x128xf32>
    %127 = vector.broadcast %126 : vector<1x1x128xf32> to vector<2x8x128xf32>
    %128 = arith.mulf %101, %127 : vector<2x8x128xf32>
    "tpu.trace_start"() <{level = 10 : i32, message = "nst,ntd->nsd"}> : () -> ()
    %cst_39 = arith.constant dense<0.000000e+00> : vector<2x8x128xf32>
    %129 = tpu.matmul %125, %128, %cst_39 {dimension_numbers = #tpu.dot_dimension_numbers<[2], [1], [1], [2], [0, 0, 0, 1, 1, 2], [0], [0]>} : vector<2x8x8xf32>, vector<2x8x128xf32>, vector<2x8x128xf32> -> vector<2x8x128xf32>
    "tpu.trace_stop"() : () -> ()
    %130 = arith.addf %103, %129 : vector<2x8x128xf32>
    %c64_i32_40 = arith.constant 64 : i32
    %131 = vector.broadcast %c64_i32_40 : i32 to vector<1x128xi32>
    %132 = arith.cmpi sge, %102, %131 : vector<1x128xi32>
    %c128_i32 = arith.constant 128 : i32
    %133 = vector.broadcast %c128_i32 : i32 to vector<1x128xi32>
    %134 = arith.cmpi slt, %102, %133 : vector<1x128xi32>
    %135 = arith.andi %132, %134 : vector<1x128xi1>
    %136 = arith.extui %135 : vector<1x128xi1> to vector<1x128xi32>
    %137 = arith.sitofp %136 : vector<1x128xi32> to vector<1x128xf32>
    %138 = vector.shape_cast %137 : vector<1x128xf32> to vector<1x1x128xf32>
    %139 = vector.broadcast %138 : vector<1x1x128xf32> to vector<2x8x128xf32>
    %140 = arith.mulf %73, %139 : vector<2x8x128xf32>
    "tpu.trace_start"() <{level = 10 : i32, message = "nsd,ntd->nst"}> : () -> ()
    %cst_41 = arith.constant dense<0.000000e+00> : vector<2x8x8xf32>
    %141 = tpu.matmul %140, %100, %cst_41 {dimension_numbers = #tpu.dot_dimension_numbers<[2], [2], [1], [1], [0, 0, 0, 1, 1, 1], [0], [0]>} : vector<2x8x128xf32>, vector<2x8x128xf32>, vector<2x8x8xf32> -> vector<2x8x8xf32>
    "tpu.trace_stop"() : () -> ()
    %142 = arith.addf %141, %4 : vector<2x8x8xf32>
    %cst_42 = arith.constant dense<0xFF800000> : vector<2x8xf32>
    %143 = vector.multi_reduction <maximumf>, %142, %cst_42 [2] : vector<2x8x8xf32> to vector<2x8xf32>
    %144 = vector.shape_cast %143 : vector<2x8xf32> to vector<2x8x1xf32>
    %145 = vector.broadcast %144 : vector<2x8x1xf32> to vector<2x8x8xf32>
    %146 = arith.subf %142, %145 : vector<2x8x8xf32>
    %147 = math.exp %146 : vector<2x8x8xf32>
    %cst_43 = arith.constant dense<0.000000e+00> : vector<2x8xf32>
    %148 = vector.multi_reduction <add>, %147, %cst_43 [2] : vector<2x8x8xf32> to vector<2x8xf32>
    %149 = vector.shape_cast %148 : vector<2x8xf32> to vector<2x8x1xf32>
    %150 = tpu.reciprocal %149 {approx = true} : vector<2x8x1xf32> -> vector<2x8x1xf32>
    %151 = vector.broadcast %150 : vector<2x8x1xf32> to vector<2x8x8xf32>
    %152 = arith.mulf %147, %151 : vector<2x8x8xf32>
    %153 = vector.shape_cast %137 : vector<1x128xf32> to vector<1x1x128xf32>
    %154 = vector.broadcast %153 : vector<1x1x128xf32> to vector<2x8x128xf32>
    %155 = arith.mulf %101, %154 : vector<2x8x128xf32>
    "tpu.trace_start"() <{level = 10 : i32, message = "nst,ntd->nsd"}> : () -> ()
    %cst_44 = arith.constant dense<0.000000e+00> : vector<2x8x128xf32>
    %156 = tpu.matmul %152, %155, %cst_44 {dimension_numbers = #tpu.dot_dimension_numbers<[2], [1], [1], [2], [0, 0, 0, 1, 1, 2], [0], [0]>} : vector<2x8x8xf32>, vector<2x8x128xf32>, vector<2x8x128xf32> -> vector<2x8x128xf32>
    "tpu.trace_stop"() : () -> ()
    %157 = arith.addf %130, %156 : vector<2x8x128xf32>
    %c0_45 = arith.constant 0 : index
    %c0_46 = arith.constant 0 : index
    %c0_47 = arith.constant 0 : index
    %158 = vector.load %arg9[%c0_45, %c0_46, %c0_47] : memref<1x128x128xbf16, #tpu.memory_space<vmem>>, vector<1x128x128xbf16>
    %159 = vector.shape_cast %158 : vector<1x128x128xbf16> to vector<128x128xbf16>
    %c0_48 = arith.constant 0 : index
    %c0_49 = arith.constant 0 : index
    %c0_50 = arith.constant 0 : index
    %160 = vector.load %arg10[%c0_48, %c0_49, %c0_50] : memref<1x1x128xf32, #tpu.memory_space<vmem>>, vector<1x1x128xf32>
    %161 = vector.shape_cast %160 : vector<1x1x128xf32> to vector<1x128xf32>
    %162 = vector.shape_cast %157 : vector<2x8x128xf32> to vector<16x128xf32>
    %163 = arith.truncf %162 : vector<16x128xf32> to vector<16x128xbf16>
    %cst_51 = arith.constant dense<0.000000e+00> : vector<16x128xf32>
    %164 = tpu.matmul %163, %159, %cst_51 {dimension_numbers = #tpu.dot_dimension_numbers<[1], [0], [0], [1], [0, 0, 1, 1], [], []>} : vector<16x128xbf16>, vector<128x128xbf16>, vector<16x128xf32> -> vector<16x128xf32>
    %165 = vector.broadcast %161 : vector<1x128xf32> to vector<16x128xf32>
    %166 = arith.addf %164, %165 : vector<16x128xf32>
    %167 = vector.shape_cast %166 : vector<16x128xf32> to vector<2x8x128xf32>
    %168 = arith.addf %3, %167 : vector<2x8x128xf32>
    %169 = vector.extract_strided_slice %6 {offsets = [3, 0], sizes = [1, 128], strides = [1, 1]} : vector<4x128xf32> to vector<1x128xf32>
    %170 = vector.extract_strided_slice %8 {offsets = [3, 0], sizes = [1, 128], strides = [1, 1]} : vector<4x128xf32> to vector<1x128xf32>
    %cst_52 = arith.constant dense<0.000000e+00> : vector<2x8xf32>
    %171 = vector.multi_reduction <add>, %168, %cst_52 [2] : vector<2x8x128xf32> to vector<2x8xf32>
    %172 = vector.shape_cast %171 : vector<2x8xf32> to vector<2x8x1xf32>
    %cst_53 = arith.constant 1.280000e+02 : f32
    %173 = vector.broadcast %cst_53 : f32 to vector<2x8x1xf32>
    %174 = arith.divf %172, %173 : vector<2x8x1xf32>
    %175 = vector.broadcast %174 : vector<2x8x1xf32> to vector<2x8x128xf32>
    %176 = arith.subf %168, %175 : vector<2x8x128xf32>
    %177 = arith.mulf %176, %176 : vector<2x8x128xf32>
    %cst_54 = arith.constant dense<0.000000e+00> : vector<2x8xf32>
    %178 = vector.multi_reduction <add>, %177, %cst_54 [2] : vector<2x8x128xf32> to vector<2x8xf32>
    %179 = vector.shape_cast %178 : vector<2x8xf32> to vector<2x8x1xf32>
    %cst_55 = arith.constant 1.280000e+02 : f32
    %180 = vector.broadcast %cst_55 : f32 to vector<2x8x1xf32>
    %181 = arith.divf %179, %180 : vector<2x8x1xf32>
    %182 = vector.broadcast %174 : vector<2x8x1xf32> to vector<2x8x128xf32>
    %183 = arith.subf %168, %182 : vector<2x8x128xf32>
    %cst_56 = arith.constant 9.99999974E-6 : f32
    %184 = vector.broadcast %cst_56 : f32 to vector<2x8x1xf32>
    %185 = arith.addf %181, %184 : vector<2x8x1xf32>
    %186 = math.rsqrt %185 : vector<2x8x1xf32>
    %187 = vector.broadcast %186 : vector<2x8x1xf32> to vector<2x8x128xf32>
    %188 = arith.mulf %183, %187 : vector<2x8x128xf32>
    %189 = vector.shape_cast %169 : vector<1x128xf32> to vector<1x1x128xf32>
    %190 = vector.broadcast %189 : vector<1x1x128xf32> to vector<2x8x128xf32>
    %191 = arith.mulf %188, %190 : vector<2x8x128xf32>
    %192 = vector.shape_cast %170 : vector<1x128xf32> to vector<1x1x128xf32>
    %193 = vector.broadcast %192 : vector<1x1x128xf32> to vector<2x8x128xf32>
    %194 = arith.addf %191, %193 : vector<2x8x128xf32>
    %c0_57 = arith.constant 0 : index
    %c0_58 = arith.constant 0 : index
    %c0_59 = arith.constant 0 : index
    %195 = vector.load %arg11[%c0_57, %c0_58, %c0_59] : memref<1x128x1024xbf16, #tpu.memory_space<vmem>>, vector<1x128x1024xbf16>
    %196 = vector.shape_cast %195 : vector<1x128x1024xbf16> to vector<128x1024xbf16>
    %c0_60 = arith.constant 0 : index
    %c0_61 = arith.constant 0 : index
    %c0_62 = arith.constant 0 : index
    %197 = vector.load %arg12[%c0_60, %c0_61, %c0_62] : memref<1x1x1024xf32, #tpu.memory_space<vmem>>, vector<1x1x1024xf32>
    %198 = vector.shape_cast %197 : vector<1x1x1024xf32> to vector<1x1024xf32>
    %199 = vector.shape_cast %194 : vector<2x8x128xf32> to vector<16x128xf32>
    %200 = arith.truncf %199 : vector<16x128xf32> to vector<16x128xbf16>
    %cst_63 = arith.constant dense<0.000000e+00> : vector<16x1024xf32>
    %201 = tpu.matmul %200, %196, %cst_63 {dimension_numbers = #tpu.dot_dimension_numbers<[1], [0], [0], [1], [0, 0, 1, 1], [], []>} : vector<16x128xbf16>, vector<128x1024xbf16>, vector<16x1024xf32> -> vector<16x1024xf32>
    %202 = vector.broadcast %198 : vector<1x1024xf32> to vector<16x1024xf32>
    %203 = arith.addf %201, %202 : vector<16x1024xf32>
    %204 = vector.shape_cast %203 : vector<16x1024xf32> to vector<2x8x1024xf32>
    %205 = vector.extract_strided_slice %204 {offsets = [0, 0, 0], sizes = [2, 8, 512], strides = [1, 1, 1]} : vector<2x8x1024xf32> to vector<2x8x512xf32>
    %206 = vector.extract_strided_slice %204 {offsets = [0, 0, 512], sizes = [2, 8, 512], strides = [1, 1, 1]} : vector<2x8x1024xf32> to vector<2x8x512xf32>
    %cst_64 = arith.constant 5.000000e-01 : f32
    %207 = vector.broadcast %cst_64 : f32 to vector<2x8x512xf32>
    %208 = arith.mulf %207, %206 : vector<2x8x512xf32>
    %cst_65 = arith.constant 4.471500e-02 : f32
    %209 = vector.broadcast %cst_65 : f32 to vector<2x8x512xf32>
    %210 = arith.mulf %209, %206 : vector<2x8x512xf32>
    %211 = arith.mulf %210, %206 : vector<2x8x512xf32>
    %212 = arith.mulf %211, %206 : vector<2x8x512xf32>
    %213 = arith.addf %206, %212 : vector<2x8x512xf32>
    %cst_66 = arith.constant 0.797884583 : f32
    %214 = vector.broadcast %cst_66 : f32 to vector<2x8x512xf32>
    %215 = arith.mulf %214, %213 : vector<2x8x512xf32>
    %216 = math.tanh %215 : vector<2x8x512xf32>
    %cst_67 = arith.constant 1.000000e+00 : f32
    %217 = vector.broadcast %cst_67 : f32 to vector<2x8x512xf32>
    %218 = arith.addf %217, %216 : vector<2x8x512xf32>
    %219 = arith.mulf %208, %218 : vector<2x8x512xf32>
    %220 = arith.mulf %219, %205 : vector<2x8x512xf32>
    %c0_68 = arith.constant 0 : index
    %c0_69 = arith.constant 0 : index
    %c0_70 = arith.constant 0 : index
    %221 = vector.load %arg13[%c0_68, %c0_69, %c0_70] : memref<1x512x128xbf16, #tpu.memory_space<vmem>>, vector<1x512x128xbf16>
    %222 = vector.shape_cast %221 : vector<1x512x128xbf16> to vector<512x128xbf16>
    %c0_71 = arith.constant 0 : index
    %c0_72 = arith.constant 0 : index
    %c0_73 = arith.constant 0 : index
    %223 = vector.load %arg14[%c0_71, %c0_72, %c0_73] : memref<1x1x128xf32, #tpu.memory_space<vmem>>, vector<1x1x128xf32>
    %224 = vector.shape_cast %223 : vector<1x1x128xf32> to vector<1x128xf32>
    %225 = vector.shape_cast %220 : vector<2x8x512xf32> to vector<16x512xf32>
    %226 = arith.truncf %225 : vector<16x512xf32> to vector<16x512xbf16>
    %cst_74 = arith.constant dense<0.000000e+00> : vector<16x128xf32>
    %227 = tpu.matmul %226, %222, %cst_74 {dimension_numbers = #tpu.dot_dimension_numbers<[1], [0], [0], [1], [0, 0, 1, 1], [], []>} : vector<16x512xbf16>, vector<512x128xbf16>, vector<16x128xf32> -> vector<16x128xf32>
    %228 = vector.broadcast %224 : vector<1x128xf32> to vector<16x128xf32>
    %229 = arith.addf %227, %228 : vector<16x128xf32>
    %230 = vector.shape_cast %229 : vector<16x128xf32> to vector<2x8x128xf32>
    %231 = arith.addf %168, %230 : vector<2x8x128xf32>
    %c0_75 = arith.constant 0 : index
    %c0_76 = arith.constant 0 : index
    %c0_77 = arith.constant 0 : index
    %232 = vector.load %arg19[%c0_75, %c0_76, %c0_77] : memref<2x8x128xf32, #tpu.memory_space<vmem>>, vector<2x8x128xf32>
    tpu.vector_store %arg19[%c0_75, %c0_76, %c0_77], %231 {strides = array<i32>} : memref<2x8x128xf32, #tpu.memory_space<vmem>>, vector<2x8x128xf32>,
    %c1_i32 = arith.constant 1 : i32
    %233 = arith.cmpi eq, %arg0, %c1_i32 : i32
    %234 = arith.extui %233 : i1 to i32
    %c0_i32_78 = arith.constant 0 : i32
    %235 = arith.cmpi ne, %234, %c0_i32_78 : i32
    scf.if %235 {
      %c0_79 = arith.constant 0 : index
      %c0_80 = arith.constant 0 : index
      %236 = vector.load %arg15[%c0_79, %c0_80] : memref<2x128xf32, #tpu.memory_space<vmem>>, vector<1x128xf32>
      %c1 = arith.constant 1 : index
      %c0_81 = arith.constant 0 : index
      %237 = vector.load %arg15[%c1, %c0_81] : memref<2x128xf32, #tpu.memory_space<vmem>>, vector<1x128xf32>
      %cst_82 = arith.constant dense<0.000000e+00> : vector<2x8xf32>
      %238 = vector.multi_reduction <add>, %231, %cst_82 [2] : vector<2x8x128xf32> to vector<2x8xf32>
      %239 = vector.shape_cast %238 : vector<2x8xf32> to vector<2x8x1xf32>
      %cst_83 = arith.constant 1.280000e+02 : f32
      %240 = vector.broadcast %cst_83 : f32 to vector<2x8x1xf32>
      %241 = arith.divf %239, %240 : vector<2x8x1xf32>
      %242 = vector.broadcast %241 : vector<2x8x1xf32> to vector<2x8x128xf32>
      %243 = arith.subf %231, %242 : vector<2x8x128xf32>
      %244 = arith.mulf %243, %243 : vector<2x8x128xf32>
      %cst_84 = arith.constant dense<0.000000e+00> : vector<2x8xf32>
      %245 = vector.multi_reduction <add>, %244, %cst_84 [2] : vector<2x8x128xf32> to vector<2x8xf32>
      %246 = vector.shape_cast %245 : vector<2x8xf32> to vector<2x8x1xf32>
      %cst_85 = arith.constant 1.280000e+02 : f32
      %247 = vector.broadcast %cst_85 : f32 to vector<2x8x1xf32>
      %248 = arith.divf %246, %247 : vector<2x8x1xf32>
      %249 = vector.broadcast %241 : vector<2x8x1xf32> to vector<2x8x128xf32>
      %250 = arith.subf %231, %249 : vector<2x8x128xf32>
      %cst_86 = arith.constant 9.99999974E-6 : f32
      %251 = vector.broadcast %cst_86 : f32 to vector<2x8x1xf32>
      %252 = arith.addf %248, %251 : vector<2x8x1xf32>
      %253 = math.rsqrt %252 : vector<2x8x1xf32>
      %254 = vector.broadcast %253 : vector<2x8x1xf32> to vector<2x8x128xf32>
      %255 = arith.mulf %250, %254 : vector<2x8x128xf32>
      %256 = vector.shape_cast %236 : vector<1x128xf32> to vector<1x1x128xf32>
      %257 = vector.broadcast %256 : vector<1x1x128xf32> to vector<2x8x128xf32>
      %258 = arith.mulf %255, %257 : vector<2x8x128xf32>
      %259 = vector.shape_cast %237 : vector<1x128xf32> to vector<1x1x128xf32>
      %260 = vector.broadcast %259 : vector<1x1x128xf32> to vector<2x8x128xf32>
      %261 = arith.addf %258, %260 : vector<2x8x128xf32>
      %262 = vector.extract_strided_slice %261 {offsets = [0, 1, 0], sizes = [2, 1, 128], strides = [1, 1, 1]} : vector<2x8x128xf32> to vector<2x1x128xf32>
      %c0_87 = arith.constant 0 : index
      %c0_88 = arith.constant 0 : index
      %263 = vector.load %arg16[%c0_87, %c0_88] : memref<128x32xf32, #tpu.memory_space<vmem>>, vector<128x32xf32>
      %c0_89 = arith.constant 0 : index
      %c0_90 = arith.constant 0 : index
      %264 = vector.load %arg17[%c0_89, %c0_90] : memref<1x32xf32, #tpu.memory_space<vmem>>, vector<1x32xf32>
      %265 = vector.shape_cast %262 : vector<2x1x128xf32> to vector<2x128xf32>
      %cst_91 = arith.constant dense<0.000000e+00> : vector<2x32xf32>
      %266 = tpu.matmul %265, %263, %cst_91 {dimension_numbers = #tpu.dot_dimension_numbers<[1], [0], [0], [1], [0, 0, 1, 1], [], []>} : vector<2x128xf32>, vector<128x32xf32>, vector<2x32xf32> -> vector<2x32xf32>
      %267 = vector.broadcast %264 : vector<1x32xf32> to vector<2x32xf32>
      %268 = arith.addf %266, %267 : vector<2x32xf32>
      %269 = vector.shape_cast %268 : vector<2x32xf32> to vector<2x1x32xf32>
      %c0_92 = arith.constant 0 : index
      %c0_93 = arith.constant 0 : index
      %c0_94 = arith.constant 0 : index
      %270 = vector.load %arg18[%c0_92, %c0_93, %c0_94] : memref<2x1x32xf32, #tpu.memory_space<vmem>>, vector<2x1x32xf32>
      tpu.vector_store %arg18[%c0_92, %c0_93, %c0_94], %269 {strides = array<i32>} : memref<2x1x32xf32, #tpu.memory_space<vmem>>, vector<2x1x32xf32>,
    } else {
    }
    return
  }
  func.func @transform_0(%arg0: i32) -> (i32, i32, i32) {
    %c0_i32 = arith.constant 0 : i32
    %c0_i32_0 = arith.constant 0 : i32
    %c0_i32_1 = arith.constant 0 : i32
    %c0_i32_2 = arith.constant 0 : i32
    return %c0_i32, %c0_i32_0, %c0_i32_1 : i32, i32, i32
  }
  func.func @transform_1(%arg0: i32) -> (i32, i32, i32) {
    %c0_i32 = arith.constant 0 : i32
    %c0_i32_0 = arith.constant 0 : i32
    %c0_i32_1 = arith.constant 0 : i32
    %c0_i32_2 = arith.constant 0 : i32
    return %c0_i32, %c0_i32_0, %c0_i32_1 : i32, i32, i32
  }
  func.func @transform_2(%arg0: i32) -> (i32, i32) {
    %c0_i32 = arith.constant 0 : i32
    %c0_i32_0 = arith.constant 0 : i32
    %c0_i32_1 = arith.constant 0 : i32
    return %c0_i32, %c0_i32_0 : i32, i32
  }
  func.func @transform_3(%arg0: i32) -> (i32, i32) {
    %c0_i32 = arith.constant 0 : i32
    %c0_i32_0 = arith.constant 0 : i32
    %c0_i32_1 = arith.constant 0 : i32
    return %c0_i32, %c0_i32_0 : i32, i32
  }
  func.func @transform_4(%arg0: i32) -> (i32, i32, i32) {
    %c0_i32 = arith.constant 0 : i32
    %c0_i32_0 = arith.constant 0 : i32
    %c0_i32_1 = arith.constant 0 : i32
    return %arg0, %c0_i32, %c0_i32_0 : i32, i32, i32
  }
  func.func @transform_5(%arg0: i32) -> (i32, i32, i32) {
    %c0_i32 = arith.constant 0 : i32
    %c0_i32_0 = arith.constant 0 : i32
    %c0_i32_1 = arith.constant 0 : i32
    return %arg0, %c0_i32, %c0_i32_0 : i32, i32, i32
  }
  func.func @transform_6(%arg0: i32) -> (i32, i32, i32) {
    %c0_i32 = arith.constant 0 : i32
    %c0_i32_0 = arith.constant 0 : i32
    %c0_i32_1 = arith.constant 0 : i32
    return %arg0, %c0_i32, %c0_i32_0 : i32, i32, i32
  }
  func.func @transform_7(%arg0: i32) -> (i32, i32, i32) {
    %c0_i32 = arith.constant 0 : i32
    %c0_i32_0 = arith.constant 0 : i32
    %c0_i32_1 = arith.constant 0 : i32
    return %arg0, %c0_i32, %c0_i32_0 : i32, i32, i32
  }
  func.func @transform_8(%arg0: i32) -> (i32, i32, i32) {
    %c0_i32 = arith.constant 0 : i32
    %c0_i32_0 = arith.constant 0 : i32
    %c0_i32_1 = arith.constant 0 : i32
    return %arg0, %c0_i32, %c0_i32_0 : i32, i32, i32
  }
  func.func @transform_9(%arg0: i32) -> (i32, i32, i32) {
    %c0_i32 = arith.constant 0 : i32
    %c0_i32_0 = arith.constant 0 : i32
    %c0_i32_1 = arith.constant 0 : i32
    return %arg0, %c0_i32, %c0_i32_0 : i32, i32, i32
  }
  func.func @transform_10(%arg0: i32) -> (i32, i32, i32) {
    %c0_i32 = arith.constant 0 : i32
    %c0_i32_0 = arith.constant 0 : i32
    %c0_i32_1 = arith.constant 0 : i32
    return %arg0, %c0_i32, %c0_i32_0 : i32, i32, i32
  }
  func.func @transform_11(%arg0: i32) -> (i32, i32, i32) {
    %c0_i32 = arith.constant 0 : i32
    %c0_i32_0 = arith.constant 0 : i32
    %c0_i32_1 = arith.constant 0 : i32
    return %arg0, %c0_i32, %c0_i32_0 : i32, i32, i32
  }
  func.func @transform_12(%arg0: i32) -> (i32, i32, i32) {
    %c0_i32 = arith.constant 0 : i32
    %c0_i32_0 = arith.constant 0 : i32
    %c0_i32_1 = arith.constant 0 : i32
    return %arg0, %c0_i32, %c0_i32_0 : i32, i32, i32
  }
  func.func @transform_13(%arg0: i32) -> (i32, i32, i32) {
    %c0_i32 = arith.constant 0 : i32
    %c0_i32_0 = arith.constant 0 : i32
    %c0_i32_1 = arith.constant 0 : i32
    return %arg0, %c0_i32, %c0_i32_0 : i32, i32, i32
  }
  func.func @transform_14(%arg0: i32) -> (i32, i32) {
    %c0_i32 = arith.constant 0 : i32
    %c0_i32_0 = arith.constant 0 : i32
    %c0_i32_1 = arith.constant 0 : i32
    return %c0_i32, %c0_i32_0 : i32, i32
  }
  func.func @transform_15(%arg0: i32) -> (i32, i32) {
    %c0_i32 = arith.constant 0 : i32
    %c0_i32_0 = arith.constant 0 : i32
    %c0_i32_1 = arith.constant 0 : i32
    return %c0_i32, %c0_i32_0 : i32, i32
  }
  func.func @transform_16(%arg0: i32) -> (i32, i32) {
    %c0_i32 = arith.constant 0 : i32
    %c0_i32_0 = arith.constant 0 : i32
    %c0_i32_1 = arith.constant 0 : i32
    return %c0_i32, %c0_i32_0 : i32, i32
  }
  func.func @transform_17(%arg0: i32) -> (i32, i32, i32) {
    %c0_i32 = arith.constant 0 : i32
    %c0_i32_0 = arith.constant 0 : i32
    %c0_i32_1 = arith.constant 0 : i32
    %c0_i32_2 = arith.constant 0 : i32
    return %c0_i32, %c0_i32_0, %c0_i32_1 : i32, i32, i32
  }
}

</mosaic_0001>

<llo_original>
// kernel: ldlm_forward.1
$region0: #{ldlm_forward.1}
  #allocation0 [shape = 'u32[]', space=smem, size = 0x4, offset = 0x4, fixed_abs, tag = 'smem constant byte address 0x4 - core index']
  #allocation1 [shape = 'u32[144,128]{1,0:T(1,128)}', space=vmem, size = 0x12000, scoped, tag = 'internal scratch']
  #allocation2 [shape = 'f32[2,8,128]{2,1,0:T(8,128)}', space=vmem, size = 0x2000, scoped, tag = 'scratch operand']
  %s0 = inlined_call_operand.vmem [shape: f32[2,8,128], index: 0, kind: input, shape index: {}]
  %s1 = inlined_call_operand.vmem [shape: f32[2,8,8], index: 1, kind: input, shape index: {}]
  %s2 = inlined_call_operand.vmem [shape: f32[8,128], index: 2, kind: input, shape index: {}]
  %s3 = inlined_call_operand.vmem [shape: f32[2,128], index: 3, kind: input, shape index: {}]
  %s4 = inlined_call_operand.vmem [shape: f32[2,4,128], index: 4, kind: input, shape index: {}]
  %s5 = inlined_call_operand.vmem [shape: f32[2,4,128], index: 5, kind: input, shape index: {}]
  %s6 = inlined_call_operand.hbm [shape: bf16[2,128,384], index: 6, kind: input, shape index: {}]
  %s7 = inlined_call_operand.vmem [shape: f32[2,1,384], index: 7, kind: input, shape index: {}]
  %s8 = inlined_call_operand.vmem [shape: bf16[2,128,128], index: 8, kind: input, shape index: {}]
  %s9 = inlined_call_operand.vmem [shape: f32[2,1,128], index: 9, kind: input, shape index: {}]
  %s10 = inlined_call_operand.hbm [shape: bf16[2,128,1024], index: 10, kind: input, shape index: {}]
  %s11 = inlined_call_operand.vmem [shape: f32[2,1,1024], index: 11, kind: input, shape index: {}]
  %s12 = inlined_call_operand.hbm [shape: bf16[2,512,128], index: 12, kind: input, shape index: {}]
  %s13 = inlined_call_operand.vmem [shape: f32[2,1,128], index: 13, kind: input, shape index: {}]
  %s14 = inlined_call_operand.vmem [shape: f32[2,128], index: 14, kind: input, shape index: {}]
  %s15 = inlined_call_operand.vmem [shape: f32[128,32], index: 15, kind: input, shape index: {}]
  %s16 = inlined_call_operand.vmem [shape: f32[1,32], index: 16, kind: input, shape index: {}]
  %s17 = inlined_call_operand.hbm [shape: f32[2,1,32], index: 17, kind: output, shape index: {}]
  %s18 = sld [smem:[#allocation0]]
  $region121: #{ldlm_forward.1} parent=0
    _
  %s20 = ssub.s32 1, %s18
  %s21 = scalar_select 0, %s20, %s18
  $region1: #{ldlm_forward.1} parent=0
    #allocation3 [shape = 'u8[196608]{0}', space=vmem, size = 0x30000, scoped, tag = 'input window, operand 6']
    #allocation4 [shape = 's32[2]{0}', space=sflag, size = 0x8, scoped, tag = 'scoped memory for ldlm_forward.1']
    #allocation5 [shape = 's32[2]{0}', space=sflag, size = 0x8, scoped, tag = 'scoped memory for ldlm_forward.1']
    #allocation6 [shape = 'u8[524288]{0}', space=vmem, size = 0x80000, scoped, tag = 'input window, operand 10']
    #allocation7 [shape = 's32[2]{0}', space=sflag, size = 0x8, scoped, tag = 'scoped memory for ldlm_forward.1']
    #allocation8 [shape = 'u8[262144]{0}', space=vmem, size = 0x40000, scoped, tag = 'input window, operand 12']
    #allocation9 [shape = 'u8[1024]{0}', space=vmem, size = 0x400, scoped, tag = 'output window, operand 0, single buffered']
    %22 = vsyncpa [#allocation4], 0
    %s23 = scalar_lea.sflag [#allocation4], 1
    %24 = vsyncpa %s23, 0
    %25 = vsyncpa [#allocation7], 0
    %s26 = scalar_lea.sflag [#allocation7], 1
    %27 = vsyncpa %s26, 0
    %28 = vsyncpa [#allocation5], 0
    loop: start=0, step=1, limit=4
    $region2: #{ldlm_forward.1} parent=1 // loop_pre_header
      _
    $region3: #{ldlm_forward.1} parent=1 // loop_header
      %s30 = sphi 0, %s34
      %p31 = scmp.ge.s32.totalorder %s30, 4
      %s38 = sphi 0, %s38
      %s40 = sphi 0, %s38
      %s41 = sphi 0, %s40
      %s55 = sphi 0, %s41
      %s59 = sphi 0, %s59
      %s61 = sphi 0, %s59
      %s62 = sphi 0, %s61
      %s76 = sphi 0, %s62
      %s80 = sphi 0, %s80
      %s82 = sphi 0, %s80
      %s83 = sphi 0, %s82
      %s97 = sphi 0, %s83
      %s101 = sphi 0, %s101
      %s103 = sphi 0, %s101
      %s104 = sphi 0, %s103
      %s118 = sphi 0, %s104
      %s124 = sphi 0, %s126
      %s127 = sphi 0, %s124
      %s128 = sphi 0, %s127
      %s144 = sphi 0, %s128
      %s150 = sphi 0, %s152
      %s153 = sphi 0, %s150
      %s154 = sphi 0, %s153
      %s170 = sphi 0, %s154
      %s176 = sphi 0, %s178
      %s179 = sphi 0, %s176
      %s180 = sphi 0, %s179
      %s196 = sphi 0, %s180
      %s202 = sphi 0, %s204
      %s205 = sphi 0, %s202
      %s206 = sphi 0, %s205
      %s222 = sphi 0, %s206
      %s228 = sphi 0, %s230
      %s231 = sphi 0, %s228
      %s232 = sphi 0, %s231
      %s248 = sphi 0, %s232
      %s254 = sphi 0, %s256
      %s257 = sphi 0, %s254
      %s258 = sphi 0, %s257
      %s274 = sphi 0, %s258
      %s280 = sphi 0, %s282
      %s283 = sphi 0, %s280
      %s284 = sphi 0, %s283
      %s300 = sphi 0, %s284
      %s306 = sphi 0, %s308
      %s309 = sphi 0, %s306
      %s310 = sphi 0, %s309
      %s326 = sphi 0, %s310
      %s332 = sphi 0, %s334
      %s335 = sphi 0, %s332
      %s336 = sphi 0, %s335
      %s352 = sphi 0, %s336
      %s358 = sphi 0, %s360
      %s361 = sphi 0, %s358
      %s362 = sphi 0, %s361
      %s378 = sphi 0, %s362
      %s382 = sphi 0, %s382
      %s384 = sphi 0, %s382
      %s385 = sphi 0, %s384
      %s399 = sphi 0, %s385
      %s403 = sphi 0, %s403
      %s405 = sphi 0, %s403
      %s406 = sphi 0, %s405
      %s420 = sphi 0, %s406
      %s424 = sphi 0, %s424
      %s426 = sphi 0, %s424
      %s427 = sphi 0, %s426
      %s441 = sphi 0, %s427
      %s445 = sphi 0, %s445
      %s447 = sphi 0, %s445
      %s448 = sphi 0, %s447
      %s462 = sphi 0, %s448
    $region4: #{ldlm_forward.1} parent=1 // loop_header_branch
      %33 = sbr.rel (%p31) target = $region8
    $region5: #{ldlm_forward.1} parent=1 // loop_body
      %s35 = ssub.s32 %s30, 1
      %s36 = ssub.s32 %s30, 2
      %s37 = sadd.s32 %s30, 1
      %s39 = sadd.s32 %s38, 1
      %p42 = scmp.eq.s32.totalorder %s30, 1
      %p43 = scmp.ne.s32.totalorder %s38, %s40
      %p44 = scmp.eq.s32.totalorder %s30, 0
      %p45 = por %p43, %p44
      %p46 = scmp.ne.s32.totalorder %s38, %s40
      %p47 = scmp.eq.s32.totalorder %s35, 1
      %p48 = por %p46, %p47
      %p49 = scmp.ne.s32.totalorder %s40, %s41
      %p50 = scmp.eq.s32.totalorder %s35, 0
      %p51 = por %p49, %p50
      %p52 = scmp.ne.s32.totalorder %s40, %s41
      %p53 = scmp.eq.s32.totalorder %s36, 1
      %p54 = por %p52, %p53
      %p56 = scmp.ne.s32.totalorder %s41, %s55
      %p57 = scmp.eq.s32.totalorder %s36, 0
      %p58 = por %p56, %p57
      %s60 = sadd.s32 %s59, 1
      %p63 = scmp.eq.s32.totalorder %s30, 1
      %p64 = scmp.ne.s32.totalorder %s59, %s61
      %p65 = scmp.eq.s32.totalorder %s30, 0
      %p66 = por %p64, %p65
      %p67 = scmp.ne.s32.totalorder %s59, %s61
      %p68 = scmp.eq.s32.totalorder %s35, 1
      %p69 = por %p67, %p68
      %p70 = scmp.ne.s32.totalorder %s61, %s62
      %p71 = scmp.eq.s32.totalorder %s35, 0
      %p72 = por %p70, %p71
      %p73 = scmp.ne.s32.totalorder %s61, %s62
      %p74 = scmp.eq.s32.totalorder %s36, 1
      %p75 = por %p73, %p74
      %p77 = scmp.ne.s32.totalorder %s62, %s76
      %p78 = scmp.eq.s32.totalorder %s36, 0
      %p79 = por %p77, %p78
      %s81 = sadd.s32 %s80, 1
      %p84 = scmp.eq.s32.totalorder %s30, 1
      %p85 = scmp.ne.s32.totalorder %s80, %s82
      %p86 = scmp.eq.s32.totalorder %s30, 0
      %p87 = por %p85, %p86
      %p88 = scmp.ne.s32.totalorder %s80, %s82
      %p89 = scmp.eq.s32.totalorder %s35, 1
      %p90 = por %p88, %p89
      %p91 = scmp.ne.s32.totalorder %s82, %s83
      %p92 = scmp.eq.s32.totalorder %s35, 0
      %p93 = por %p91, %p92
      %p94 = scmp.ne.s32.totalorder %s82, %s83
      %p95 = scmp.eq.s32.totalorder %s36, 1
      %p96 = por %p94, %p95
      %p98 = scmp.ne.s32.totalorder %s83, %s97
      %p99 = scmp.eq.s32.totalorder %s36, 0
      %p100 = por %p98, %p99
      %s102 = sadd.s32 %s101, 1
      %p105 = scmp.eq.s32.totalorder %s30, 1
      %p106 = scmp.ne.s32.totalorder %s101, %s103
      %p107 = scmp.eq.s32.totalorder %s30, 0
      %p108 = por %p106, %p107
      %p109 = scmp.ne.s32.totalorder %s101, %s103
      %p110 = scmp.eq.s32.totalorder %s35, 1
      %p111 = por %p109, %p110
      %p112 = scmp.ne.s32.totalorder %s103, %s104
      %p113 = scmp.eq.s32.totalorder %s35, 0
      %p114 = por %p112, %p113
      %p115 = scmp.ne.s32.totalorder %s103, %s104
      %p116 = scmp.eq.s32.totalorder %s36, 1
      %p117 = por %p115, %p116
      %p119 = scmp.ne.s32.totalorder %s104, %s118
      %p120 = scmp.eq.s32.totalorder %s36, 0
      %p121 = por %p119, %p120
      %s122 = ssub.s32 %s30, %s37
      %p123 = scmp.eq.s32.totalorder %s122, 0
      %s125 = sadd.s32 %s124, 1
      %s126 = scalar_select %p123, %s124, %s125
      %p129 = pneg %p123
      %p130 = scmp.eq.s32.totalorder %s30, 1
      %p131 = por %p129, %p130
      %p132 = scmp.ne.s32.totalorder %s124, %s127
      %p133 = scmp.eq.s32.totalorder %s30, 0
      %p134 = por %p132, %p133
      %p135 = scmp.ne.s32.totalorder %s124, %s127
      %p136 = scmp.eq.s32.totalorder %s35, 1
      %p137 = por %p135, %p136
      %p138 = scmp.ne.s32.totalorder %s127, %s128
      %p139 = scmp.eq.s32.totalorder %s35, 0
      %p140 = por %p138, %p139
      %p141 = scmp.ne.s32.totalorder %s127, %s128
      %p142 = scmp.eq.s32.totalorder %s36, 1
      %p143 = por %p141, %p142
      %p145 = scmp.ne.s32.totalorder %s128, %s144
      %p146 = scmp.eq.s32.totalorder %s36, 0
      %p147 = por %p145, %p146
      %s148 = ssub.s32 %s30, %s37
      %p149 = scmp.eq.s32.totalorder %s148, 0
      %s151 = sadd.s32 %s150, 1
      %s152 = scalar_select %p149, %s150, %s151
      %p155 = pneg %p149
      %p156 = scmp.eq.s32.totalorder %s30, 1
      %p157 = por %p155, %p156
      %p158 = scmp.ne.s32.totalorder %s150, %s153
      %p159 = scmp.eq.s32.totalorder %s30, 0
      %p160 = por %p158, %p159
      %p161 = scmp.ne.s32.totalorder %s150, %s153
      %p162 = scmp.eq.s32.totalorder %s35, 1
      %p163 = por %p161, %p162
      %p164 = scmp.ne.s32.totalorder %s153, %s154
      %p165 = scmp.eq.s32.totalorder %s35, 0
      %p166 = por %p164, %p165
      %p167 = scmp.ne.s32.totalorder %s153, %s154
      %p168 = scmp.eq.s32.totalorder %s36, 1
      %p169 = por %p167, %p168
      %p171 = scmp.ne.s32.totalorder %s154, %s170
      %p172 = scmp.eq.s32.totalorder %s36, 0
      %p173 = por %p171, %p172
      %s174 = ssub.s32 %s30, %s37
      %p175 = scmp.eq.s32.totalorder %s174, 0
      %s177 = sadd.s32 %s176, 1
      %s178 = scalar_select %p175, %s176, %s177
      %p181 = pneg %p175
      %p182 = scmp.eq.s32.totalorder %s30, 1
      %p183 = por %p181, %p182
      %p184 = scmp.ne.s32.totalorder %s176, %s179
      %p185 = scmp.eq.s32.totalorder %s30, 0
      %p186 = por %p184, %p185
      %p187 = scmp.ne.s32.totalorder %s176, %s179
      %p188 = scmp.eq.s32.totalorder %s35, 1
      %p189 = por %p187, %p188
      %p190 = scmp.ne.s32.totalorder %s179, %s180
      %p191 = scmp.eq.s32.totalorder %s35, 0
      %p192 = por %p190, %p191
      %p193 = scmp.ne.s32.totalorder %s179, %s180
      %p194 = scmp.eq.s32.totalorder %s36, 1
      %p195 = por %p193, %p194
      %p197 = scmp.ne.s32.totalorder %s180, %s196
      %p198 = scmp.eq.s32.totalorder %s36, 0
      %p199 = por %p197, %p198
      %s200 = ssub.s32 %s30, %s37
      %p201 = scmp.eq.s32.totalorder %s200, 0
      %s203 = sadd.s32 %s202, 1
      %s204 = scalar_select %p201, %s202, %s203
      %p207 = pneg %p201
      %p208 = scmp.eq.s32.totalorder %s30, 1
      %p209 = por %p207, %p208
      %p210 = scmp.ne.s32.totalorder %s202, %s205
      %p211 = scmp.eq.s32.totalorder %s30, 0
      %p212 = por %p210, %p211
      %p213 = scmp.ne.s32.totalorder %s202, %s205
      %p214 = scmp.eq.s32.totalorder %s35, 1
      %p215 = por %p213, %p214
      %p216 = scmp.ne.s32.totalorder %s205, %s206
      %p217 = scmp.eq.s32.totalorder %s35, 0
      %p218 = por %p216, %p217
      %p219 = scmp.ne.s32.totalorder %s205, %s206
      %p220 = scmp.eq.s32.totalorder %s36, 1
      %p221 = por %p219, %p220
      %p223 = scmp.ne.s32.totalorder %s206, %s222
      %p224 = scmp.eq.s32.totalorder %s36, 0
      %p225 = por %p223, %p224
      %s226 = ssub.s32 %s30, %s37
      %p227 = scmp.eq.s32.totalorder %s226, 0
      %s229 = sadd.s32 %s228, 1
      %s230 = scalar_select %p227, %s228, %s229
      %p233 = pneg %p227
      %p234 = scmp.eq.s32.totalorder %s30, 1
      %p235 = por %p233, %p234
      %p236 = scmp.ne.s32.totalorder %s228, %s231
      %p237 = scmp.eq.s32.totalorder %s30, 0
      %p238 = por %p236, %p237
      %p239 = scmp.ne.s32.totalorder %s228, %s231
      %p240 = scmp.eq.s32.totalorder %s35, 1
      %p241 = por %p239, %p240
      %p242 = scmp.ne.s32.totalorder %s231, %s232
      %p243 = scmp.eq.s32.totalorder %s35, 0
      %p244 = por %p242, %p243
      %p245 = scmp.ne.s32.totalorder %s231, %s232
      %p246 = scmp.eq.s32.totalorder %s36, 1
      %p247 = por %p245, %p246
      %p249 = scmp.ne.s32.totalorder %s232, %s248
      %p250 = scmp.eq.s32.totalorder %s36, 0
      %p251 = por %p249, %p250
      %s252 = ssub.s32 %s30, %s37
      %p253 = scmp.eq.s32.totalorder %s252, 0
      %s255 = sadd.s32 %s254, 1
      %s256 = scalar_select %p253, %s254, %s255
      %p259 = pneg %p253
      %p260 = scmp.eq.s32.totalorder %s30, 1
      %p261 = por %p259, %p260
      %p262 = scmp.ne.s32.totalorder %s254, %s257
      %p263 = scmp.eq.s32.totalorder %s30, 0
      %p264 = por %p262, %p263
      %p265 = scmp.ne.s32.totalorder %s254, %s257
      %p266 = scmp.eq.s32.totalorder %s35, 1
      %p267 = por %p265, %p266
      %p268 = scmp.ne.s32.totalorder %s257, %s258
      %p269 = scmp.eq.s32.totalorder %s35, 0
      %p270 = por %p268, %p269
      %p271 = scmp.ne.s32.totalorder %s257, %s258
      %p272 = scmp.eq.s32.totalorder %s36, 1
      %p273 = por %p271, %p272
      %p275 = scmp.ne.s32.totalorder %s258, %s274
      %p276 = scmp.eq.s32.totalorder %s36, 0
      %p277 = por %p275, %p276
      %s278 = ssub.s32 %s30, %s37
      %p279 = scmp.eq.s32.totalorder %s278, 0
      %s281 = sadd.s32 %s280, 1
      %s282 = scalar_select %p279, %s280, %s281
      %p285 = pneg %p279
      %p286 = scmp.eq.s32.totalorder %s30, 1
      %p287 = por %p285, %p286
      %p288 = scmp.ne.s32.totalorder %s280, %s283
      %p289 = scmp.eq.s32.totalorder %s30, 0
      %p290 = por %p288, %p289
      %p291 = scmp.ne.s32.totalorder %s280, %s283
      %p292 = scmp.eq.s32.totalorder %s35, 1
      %p293 = por %p291, %p292
      %p294 = scmp.ne.s32.totalorder %s283, %s284
      %p295 = scmp.eq.s32.totalorder %s35, 0
      %p296 = por %p294, %p295
      %p297 = scmp.ne.s32.totalorder %s283, %s284
      %p298 = scmp.eq.s32.totalorder %s36, 1
      %p299 = por %p297, %p298
      %p301 = scmp.ne.s32.totalorder %s284, %s300
      %p302 = scmp.eq.s32.totalorder %s36, 0
      %p303 = por %p301, %p302
      %s304 = ssub.s32 %s30, %s37
      %p305 = scmp.eq.s32.totalorder %s304, 0
      %s307 = sadd.s32 %s306, 1
      %s308 = scalar_select %p305, %s306, %s307
      %p311 = pneg %p305
      %p312 = scmp.eq.s32.totalorder %s30, 1
      %p313 = por %p311, %p312
      %p314 = scmp.ne.s32.totalorder %s306, %s309
      %p315 = scmp.eq.s32.totalorder %s30, 0
      %p316 = por %p314, %p315
      %p317 = scmp.ne.s32.totalorder %s306, %s309
      %p318 = scmp.eq.s32.totalorder %s35, 1
      %p319 = por %p317, %p318
      %p320 = scmp.ne.s32.totalorder %s309, %s310
      %p321 = scmp.eq.s32.totalorder %s35, 0
      %p322 = por %p320, %p321
      %p323 = scmp.ne.s32.totalorder %s309, %s310
      %p324 = scmp.eq.s32.totalorder %s36, 1
      %p325 = por %p323, %p324
      %p327 = scmp.ne.s32.totalorder %s310, %s326
      %p328 = scmp.eq.s32.totalorder %s36, 0
      %p329 = por %p327, %p328
      %s330 = ssub.s32 %s30, %s37
      %p331 = scmp.eq.s32.totalorder %s330, 0
      %s333 = sadd.s32 %s332, 1
      %s334 = scalar_select %p331, %s332, %s333
      %p337 = pneg %p331
      %p338 = scmp.eq.s32.totalorder %s30, 1
      %p339 = por %p337, %p338
      %p340 = scmp.ne.s32.totalorder %s332, %s335
      %p341 = scmp.eq.s32.totalorder %s30, 0
      %p342 = por %p340, %p341
      %p343 = scmp.ne.s32.totalorder %s332, %s335
      %p344 = scmp.eq.s32.totalorder %s35, 1
      %p345 = por %p343, %p344
      %p346 = scmp.ne.s32.totalorder %s335, %s336
      %p347 = scmp.eq.s32.totalorder %s35, 0
      %p348 = por %p346, %p347
      %p349 = scmp.ne.s32.totalorder %s335, %s336
      %p350 = scmp.eq.s32.totalorder %s36, 1
      %p351 = por %p349, %p350
      %p353 = scmp.ne.s32.totalorder %s336, %s352
      %p354 = scmp.eq.s32.totalorder %s36, 0
      %p355 = por %p353, %p354
      %s356 = ssub.s32 %s30, %s37
      %p357 = scmp.eq.s32.totalorder %s356, 0
      %s359 = sadd.s32 %s358, 1
      %s360 = scalar_select %p357, %s358, %s359
      %p363 = pneg %p357
      %p364 = scmp.eq.s32.totalorder %s30, 1
      %p365 = por %p363, %p364
      %p366 = scmp.ne.s32.totalorder %s358, %s361
      %p367 = scmp.eq.s32.totalorder %s30, 0
      %p368 = por %p366, %p367
      %p369 = scmp.ne.s32.totalorder %s358, %s361
      %p370 = scmp.eq.s32.totalorder %s35, 1
      %p371 = por %p369, %p370
      %p372 = scmp.ne.s32.totalorder %s361, %s362
      %p373 = scmp.eq.s32.totalorder %s35, 0
      %p374 = por %p372, %p373
      %p375 = scmp.ne.s32.totalorder %s361, %s362
      %p376 = scmp.eq.s32.totalorder %s36, 1
      %p377 = por %p375, %p376
      %p379 = scmp.ne.s32.totalorder %s362, %s378
      %p380 = scmp.eq.s32.totalorder %s36, 0
      %p381 = por %p379, %p380
      %s383 = sadd.s32 %s382, 1
      %p386 = scmp.eq.s32.totalorder %s30, 1
      %p387 = scmp.ne.s32.totalorder %s382, %s384
      %p388 = scmp.eq.s32.totalorder %s30, 0
      %p389 = por %p387, %p388
      %p390 = scmp.ne.s32.totalorder %s382, %s384
      %p391 = scmp.eq.s32.totalorder %s35, 1
      %p392 = por %p390, %p391
      %p393 = scmp.ne.s32.totalorder %s384, %s385
      %p394 = scmp.eq.s32.totalorder %s35, 0
      %p395 = por %p393, %p394
      %p396 = scmp.ne.s32.totalorder %s384, %s385
      %p397 = scmp.eq.s32.totalorder %s36, 1
      %p398 = por %p396, %p397
      %p400 = scmp.ne.s32.totalorder %s385, %s399
      %p401 = scmp.eq.s32.totalorder %s36, 0
      %p402 = por %p400, %p401
      %s404 = sadd.s32 %s403, 1
      %p407 = scmp.eq.s32.totalorder %s30, 1
      %p408 = scmp.ne.s32.totalorder %s403, %s405
      %p409 = scmp.eq.s32.totalorder %s30, 0
      %p410 = por %p408, %p409
      %p411 = scmp.ne.s32.totalorder %s403, %s405
      %p412 = scmp.eq.s32.totalorder %s35, 1
      %p413 = por %p411, %p412
      %p414 = scmp.ne.s32.totalorder %s405, %s406
      %p415 = scmp.eq.s32.totalorder %s35, 0
      %p416 = por %p414, %p415
      %p417 = scmp.ne.s32.totalorder %s405, %s406
      %p418 = scmp.eq.s32.totalorder %s36, 1
      %p419 = por %p417, %p418
      %p421 = scmp.ne.s32.totalorder %s406, %s420
      %p422 = scmp.eq.s32.totalorder %s36, 0
      %p423 = por %p421, %p422
      %s425 = sadd.s32 %s424, 1
      %p428 = scmp.eq.s32.totalorder %s30, 1
      %p429 = scmp.ne.s32.totalorder %s424, %s426
      %p430 = scmp.eq.s32.totalorder %s30, 0
      %p431 = por %p429, %p430
      %p432 = scmp.ne.s32.totalorder %s424, %s426
      %p433 = scmp.eq.s32.totalorder %s35, 1
      %p434 = por %p432, %p433
      %p435 = scmp.ne.s32.totalorder %s426, %s427
      %p436 = scmp.eq.s32.totalorder %s35, 0
      %p437 = por %p435, %p436
      %p438 = scmp.ne.s32.totalorder %s426, %s427
      %p439 = scmp.eq.s32.totalorder %s36, 1
      %p440 = por %p438, %p439
      %p442 = scmp.ne.s32.totalorder %s427, %s441
      %p443 = scmp.eq.s32.totalorder %s36, 0
      %p444 = por %p442, %p443
      %s446 = sadd.s32 %s445, 1
      %p449 = scmp.eq.s32.totalorder %s30, 1
      %p450 = scmp.ne.s32.totalorder %s445, %s447
      %p451 = scmp.eq.s32.totalorder %s30, 0
      %p452 = por %p450, %p451
      %p453 = scmp.ne.s32.totalorder %s445, %s447
      %p454 = scmp.eq.s32.totalorder %s35, 1
      %p455 = por %p453, %p454
      %p456 = scmp.ne.s32.totalorder %s447, %s448
      %p457 = scmp.eq.s32.totalorder %s35, 0
      %p458 = por %p456, %p457
      %p459 = scmp.ne.s32.totalorder %s447, %s448
      %p460 = scmp.eq.s32.totalorder %s36, 1
      %p461 = por %p459, %p460
      %p463 = scmp.ne.s32.totalorder %s448, %s462
      %p464 = scmp.eq.s32.totalorder %s36, 0
      %p465 = por %p463, %p464
      %p466 = scmp.le.s32.totalorder 1, %s30
      %p467 = scmp.lt.s32.totalorder %s30, 3
      %p468 = pnand %p466, %p467
      %p469 = pneg %p468
      // Predicated region
      $region9: #{ldlm_forward.1} parent=5 // pred_check
        _
      $region10: #{ldlm_forward.1} parent=5 // pred_check_branch
        %471 = sbr.rel (%p468) target = $region12
      $region11: #{ldlm_forward.1} parent=5 // pred_region
        %s472 = ssub.s32 %s30, 1
        // Predicated region
        $region13: #{ldlm_forward.1} parent=11 // pred_check
          %p473 = pneg %p51
        $region14: #{ldlm_forward.1} parent=11 // pred_check_branch
          %475 = sbr.rel (%p473) target = $region16
        $region15: #{ldlm_forward.1} parent=11 // pred_region
          _
        $region16: #{ldlm_forward.1} parent=11 // pred_fallthru
          _
        // Predicated region
        $region17: #{ldlm_forward.1} parent=11 // pred_check
          %p476 = pneg %p72
        $region18: #{ldlm_forward.1} parent=11 // pred_check_branch
          %478 = sbr.rel (%p476) target = $region20
        $region19: #{ldlm_forward.1} parent=11 // pred_region
          _
        $region20: #{ldlm_forward.1} parent=11 // pred_fallthru
          _
        // Predicated region
        $region21: #{ldlm_forward.1} parent=11 // pred_check
          %p479 = pneg %p93
        $region22: #{ldlm_forward.1} parent=11 // pred_check_branch
          %481 = sbr.rel (%p479) target = $region24
        $region23: #{ldlm_forward.1} parent=11 // pred_region
          _
        $region24: #{ldlm_forward.1} parent=11 // pred_fallthru
          _
        // Predicated region
        $region25: #{ldlm_forward.1} parent=11 // pred_check
          %p482 = pneg %p114
        $region26: #{ldlm_forward.1} parent=11 // pred_check_branch
          %484 = sbr.rel (%p482) target = $region28
        $region27: #{ldlm_forward.1} parent=11 // pred_region
          _
        $region28: #{ldlm_forward.1} parent=11 // pred_fallthru
          _
        // Predicated region
        $region29: #{ldlm_forward.1} parent=11 // pred_check
          %p485 = pneg %p395
        $region30: #{ldlm_forward.1} parent=11 // pred_check_branch
          %487 = sbr.rel (%p485) target = $region32
        $region31: #{ldlm_forward.1} parent=11 // pred_region
          _
        $region32: #{ldlm_forward.1} parent=11 // pred_fallthru
          _
        // Predicated region
        $region33: #{ldlm_forward.1} parent=11 // pred_check
          %p488 = pneg %p416
        $region34: #{ldlm_forward.1} parent=11 // pred_check_branch
          %490 = sbr.rel (%p488) target = $region36
        $region35: #{ldlm_forward.1} parent=11 // pred_region
          _
        $region36: #{ldlm_forward.1} parent=11 // pred_fallthru
          _
        // Predicated region
        $region37: #{ldlm_forward.1} parent=11 // pred_check
          %p491 = pneg %p437
        $region38: #{ldlm_forward.1} parent=11 // pred_check_branch
          %493 = sbr.rel (%p491) target = $region40
        $region39: #{ldlm_forward.1} parent=11 // pred_region
          _
        $region40: #{ldlm_forward.1} parent=11 // pred_fallthru
          _
      $region12: #{ldlm_forward.1} parent=5 // pred_fallthru
        _
      %p494 = scmp.lt.s32.totalorder %s30, 2
      // Predicated region
      $region41: #{ldlm_forward.1} parent=5 // pred_check
        %p495 = pneg %p494
      $region42: #{ldlm_forward.1} parent=5 // pred_check_branch
        %497 = sbr.rel (%p495) target = $region44
      $region43: #{ldlm_forward.1} parent=5 // pred_region
        // Predicated region
        $region45: #{ldlm_forward.1} parent=43 // pred_check
          %p498 = pneg %p134
        $region46: #{ldlm_forward.1} parent=43 // pred_check_branch
          %500 = sbr.rel (%p498) target = $region48
        $region47: #{ldlm_forward.1} parent=43 // pred_region
          %p501 = scmp.lt.s32.totalorder %s30, 1
          %s502 = scalar_select %p501, %s30, 1
          %s503 = smul.addr %s502, 4
          %s504 = scalar_lea.vmem %s4, %s503
        $region48: #{ldlm_forward.1} parent=43 // pred_fallthru
          _
        // Predicated region
        $region49: #{ldlm_forward.1} parent=43 // pred_check
          %p505 = pneg %p160
        $region50: #{ldlm_forward.1} parent=43 // pred_check_branch
          %507 = sbr.rel (%p505) target = $region52
        $region51: #{ldlm_forward.1} parent=43 // pred_region
          %p508 = scmp.lt.s32.totalorder %s30, 1
          %s509 = scalar_select %p508, %s30, 1
          %s510 = smul.addr %s509, 4
          %s511 = scalar_lea.vmem %s5, %s510
        $region52: #{ldlm_forward.1} parent=43 // pred_fallthru
          _
        // Predicated region
        $region53: #{ldlm_forward.1} parent=43 // pred_check
          %p512 = pneg %p186
        $region54: #{ldlm_forward.1} parent=43 // pred_check_branch
          %514 = sbr.rel (%p512) target = $region56
        $region55: #{ldlm_forward.1} parent=43 // pred_region
          %s515 = sand.u32 %s176, 1
          %s516 = scalar_lea.sflag [#allocation4], %s515
          %s517 = sand.u32 %s176, 1
          %s518 = smul.addr %s517, 192
          %s519 = scalar_lea.vmem [#allocation3], %s518
          %s521 = ssub.s32 3072, 3072
          %522 = vsyncadd %s516, %s521
          %s523 = smul.addr %s30, 48
          %s524 = smul.addr %s523, 64
          %s525 = scalar_lea.hbm %s6, %s524
          %s526 = sshll.u32 %s519, 4
          %s527 = int_to_ptr.vmem [resolvable:$true] %s526
          %532 = dma.hbm_to_vmem [thread:$0]  %s525, 3072, %s527, %s516, 192, 192, 12
        $region56: #{ldlm_forward.1} parent=43 // pred_fallthru
          _
        // Predicated region
        $region57: #{ldlm_forward.1} parent=43 // pred_check
          %p533 = pneg %p212
        $region58: #{ldlm_forward.1} parent=43 // pred_check_branch
          %535 = sbr.rel (%p533) target = $region60
        $region59: #{ldlm_forward.1} parent=43 // pred_region
          %p536 = scmp.lt.s32.totalorder %s30, 1
          %s537 = scalar_select %p536, %s30, 1
          %s538 = smul.addr %s537, 3
          %s539 = scalar_lea.vmem %s7, %s538
        $region60: #{ldlm_forward.1} parent=43 // pred_fallthru
          _
        // Predicated region
        $region61: #{ldlm_forward.1} parent=43 // pred_check
          %p540 = pneg %p238
        $region62: #{ldlm_forward.1} parent=43 // pred_check_branch
          %542 = sbr.rel (%p540) target = $region64
        $region63: #{ldlm_forward.1} parent=43 // pred_region
          %p543 = scmp.lt.s32.totalorder %s30, 1
          %s544 = scalar_select %p543, %s30, 1
          %s545 = smul.addr %s544, 16
          %s546 = smul.addr %s545, 4
          %s547 = scalar_lea.vmem %s8, %s546
        $region64: #{ldlm_forward.1} parent=43 // pred_fallthru
          _
        // Predicated region
        $region65: #{ldlm_forward.1} parent=43 // pred_check
          %p548 = pneg %p264
        $region66: #{ldlm_forward.1} parent=43 // pred_check_branch
          %550 = sbr.rel (%p548) target = $region68
        $region67: #{ldlm_forward.1} parent=43 // pred_region
          %p551 = scmp.lt.s32.totalorder %s30, 1
          %s552 = scalar_select %p551, %s30, 1
          %s553 = scalar_lea.vmem %s9, %s552
        $region68: #{ldlm_forward.1} parent=43 // pred_fallthru
          _
        // Predicated region
        $region69: #{ldlm_forward.1} parent=43 // pred_check
          %p554 = pneg %p290
        $region70: #{ldlm_forward.1} parent=43 // pred_check_branch
          %556 = sbr.rel (%p554) target = $region72
        $region71: #{ldlm_forward.1} parent=43 // pred_region
          %s557 = sand.u32 %s30, 1
          %s558 = scalar_lea.sflag [#allocation7], %s557
          %s559 = sand.u32 %s280, 1
          %s560 = smul.addr %s559, 512
          %s561 = scalar_lea.vmem [#allocation6], %s560
          %s563 = ssub.s32 8192, 8192
          %564 = vsyncadd %s558, %s563
          %s565 = smul.addr %s30, 128
          %s566 = smul.addr %s565, 64
          %s567 = scalar_lea.hbm %s10, %s566
          %s568 = sshll.u32 %s561, 4
          %s569 = int_to_ptr.vmem [resolvable:$true] %s568
          %574 = dma.hbm_to_vmem [thread:$0]  %s567, 8192, %s569, %s558, 512, 512, 32
        $region72: #{ldlm_forward.1} parent=43 // pred_fallthru
          _
        // Predicated region
        $region73: #{ldlm_forward.1} parent=43 // pred_check
          %p575 = pneg %p316
        $region74: #{ldlm_forward.1} parent=43 // pred_check_branch
          %577 = sbr.rel (%p575) target = $region76
        $region75: #{ldlm_forward.1} parent=43 // pred_region
          %p578 = scmp.lt.s32.totalorder %s30, 1
          %s579 = scalar_select %p578, %s30, 1
          %s580 = smul.addr %s579, 8
          %s581 = scalar_lea.vmem %s11, %s580
        $region76: #{ldlm_forward.1} parent=43 // pred_fallthru
          _
        // Predicated region
        $region77: #{ldlm_forward.1} parent=43 // pred_check
          %p582 = pneg %p342
        $region78: #{ldlm_forward.1} parent=43 // pred_check_branch
          %584 = sbr.rel (%p582) target = $region80
        $region79: #{ldlm_forward.1} parent=43 // pred_region
          %s585 = sand.u32 %s30, 1
          %s586 = scalar_lea.sflag [#allocation7], %s585
          %s587 = sand.u32 %s332, 1
          %s588 = smul.addr %s587, 256
          %s589 = scalar_lea.vmem [#allocation8], %s588
          %s591 = ssub.s32 4096, 4096
          %592 = vsyncadd %s586, %s591
          %s593 = smul.addr %s30, 64
          %s594 = smul.addr %s593, 64
          %s595 = scalar_lea.hbm %s12, %s594
          %s596 = sshll.u32 %s589, 4
          %s597 = int_to_ptr.vmem [resolvable:$true] %s596
          %602 = dma.hbm_to_vmem [thread:$0]  %s595, 4096, %s597, %s586, 64, 64, 4
        $region80: #{ldlm_forward.1} parent=43 // pred_fallthru
          _
        // Predicated region
        $region81: #{ldlm_forward.1} parent=43 // pred_check
          %p603 = pneg %p368
        $region82: #{ldlm_forward.1} parent=43 // pred_check_branch
          %605 = sbr.rel (%p603) target = $region84
        $region83: #{ldlm_forward.1} parent=43 // pred_region
          %p606 = scmp.lt.s32.totalorder %s30, 1
          %s607 = scalar_select %p606, %s30, 1
          %s608 = scalar_lea.vmem %s13, %s607
        $region84: #{ldlm_forward.1} parent=43 // pred_fallthru
          _
      $region44: #{ldlm_forward.1} parent=5 // pred_fallthru
        _
      %p609 = scmp.le.s32.totalorder 1, %s30
      %p610 = scmp.lt.s32.totalorder %s30, 3
      %p611 = pnand %p609, %p610
      %p612 = pneg %p611
      // Predicated region
      $region85: #{ldlm_forward.1} parent=5 // pred_check
        _
      $region86: #{ldlm_forward.1} parent=5 // pred_check_branch
        %614 = sbr.rel (%p611) target = $region88
      $region87: #{ldlm_forward.1} parent=5 // pred_region
        %s615 = ssub.s32 %s30, 1
        %s616 = sand.u32 %s179, 1
        %s617 = scalar_lea.sflag [#allocation4], %s616
        %s618 = sand.u32 %s179, 1
        %s619 = smul.addr %s618, 192
        %s620 = scalar_lea.vmem [#allocation3], %s619
        // Predicated region
        $region89: #{ldlm_forward.1} parent=87 // pred_check
          %p621 = pneg %p192
        $region90: #{ldlm_forward.1} parent=87 // pred_check_branch
          %623 = sbr.rel (%p621) target = $region92
        $region91: #{ldlm_forward.1} parent=87 // pred_region
          %624 = dma.done %s617, 3072
        $region92: #{ldlm_forward.1} parent=87 // pred_fallthru
          _
        %s625 = sand.u32 %s35, 1
        %s626 = scalar_lea.sflag [#allocation7], %s625
        %s627 = sand.u32 %s283, 1
        %s628 = smul.addr %s627, 512
        %s629 = scalar_lea.vmem [#allocation6], %s628
        // Predicated region
        $region93: #{ldlm_forward.1} parent=87 // pred_check
          %p630 = pneg %p296
        $region94: #{ldlm_forward.1} parent=87 // pred_check_branch
          %632 = sbr.rel (%p630) target = $region96
        $region95: #{ldlm_forward.1} parent=87 // pred_region
          %633 = dma.done %s626, 8192
        $region96: #{ldlm_forward.1} parent=87 // pred_fallthru
          _
        %s634 = sand.u32 %s35, 1
        %s635 = scalar_lea.sflag [#allocation7], %s634
        %s636 = sand.u32 %s335, 1
        %s637 = smul.addr %s636, 256
        %s638 = scalar_lea.vmem [#allocation8], %s637
        // Predicated region
        $region97: #{ldlm_forward.1} parent=87 // pred_check
          %p639 = pneg %p348
        $region98: #{ldlm_forward.1} parent=87 // pred_check_branch
          %641 = sbr.rel (%p639) target = $region100
        $region99: #{ldlm_forward.1} parent=87 // pred_region
          %642 = dma.done %s635, 4096
        $region100: #{ldlm_forward.1} parent=87 // pred_fallthru
          _
        %p643 = pneg %p51
        %p644 = pneg %p48
        %p645 = pneg %p72
        %p646 = pneg %p69
        %p647 = pneg %p93
        %p648 = pneg %p90
        %p649 = pneg %p114
        %p650 = pneg %p111
        %p651 = scmp.lt.s32.totalorder %s35, 1
        %s652 = scalar_select %p651, %s35, 1
        %s653 = smul.addr %s652, 4
        %s654 = scalar_lea.vmem %s4, %s653
        %p655 = pneg %p140
        %p656 = pneg %p137
        %p657 = scmp.lt.s32.totalorder %s35, 1
        %s658 = scalar_select %p657, %s35, 1
        %s659 = smul.addr %s658, 4
        %s660 = scalar_lea.vmem %s5, %s659
        %p661 = pneg %p166
        %p662 = pneg %p163
        %s663 = sand.u32 %s179, 1
        %s664 = scalar_lea.sflag [#allocation4], %s663
        %s665 = sand.u32 %s179, 1
        %s666 = smul.addr %s665, 192
        %s667 = scalar_lea.vmem [#allocation3], %s666
        %p668 = pneg %p192
        %p669 = pneg %p189
        %p670 = scmp.lt.s32.totalorder %s35, 1
        %s671 = scalar_select %p670, %s35, 1
        %s672 = smul.addr %s671, 3
        %s673 = scalar_lea.vmem %s7, %s672
        %p674 = pneg %p218
        %p675 = pneg %p215
        %p676 = scmp.lt.s32.totalorder %s35, 1
        %s677 = scalar_select %p676, %s35, 1
        %s678 = smul.addr %s677, 16
        %s679 = smul.addr %s678, 4
        %s680 = scalar_lea.vmem %s8, %s679
        %p681 = pneg %p244
        %p682 = pneg %p241
        %p683 = scmp.lt.s32.totalorder %s35, 1
        %s684 = scalar_select %p683, %s35, 1
        %s685 = scalar_lea.vmem %s9, %s684
        %p686 = pneg %p270
        %p687 = pneg %p267
        %s688 = sand.u32 %s35, 1
        %s689 = scalar_lea.sflag [#allocation7], %s688
        %s690 = sand.u32 %s283, 1
        %s691 = smul.addr %s690, 512
        %s692 = scalar_lea.vmem [#allocation6], %s691
        %p693 = pneg %p296
        %p694 = pneg %p293
        %p695 = scmp.lt.s32.totalorder %s35, 1
        %s696 = scalar_select %p695, %s35, 1
        %s697 = smul.addr %s696, 8
        %s698 = scalar_lea.vmem %s11, %s697
        %p699 = pneg %p322
        %p700 = pneg %p319
        %s701 = sand.u32 %s35, 1
        %s702 = scalar_lea.sflag [#allocation7], %s701
        %s703 = sand.u32 %s335, 1
        %s704 = smul.addr %s703, 256
        %s705 = scalar_lea.vmem [#allocation8], %s704
        %p706 = pneg %p348
        %p707 = pneg %p345
        %p708 = scmp.lt.s32.totalorder %s35, 1
        %s709 = scalar_select %p708, %s35, 1
        %s710 = scalar_lea.vmem %s13, %s709
        %p711 = pneg %p374
        %p712 = pneg %p371
        %p713 = pneg %p395
        %p714 = pneg %p392
        %p715 = pneg %p416
        %p716 = pneg %p413
        %p717 = pneg %p437
        %p718 = pneg %p434
        %p719 = pneg %p458
        %p720 = pneg %p455
        %p721 = scmp.lt.s32.totalorder %s35, 1
        %s722 = scalar_select %p721, %s35, 1
        %s723 = smul.addr %s722, 4
        %s724 = scalar_lea.vmem %s4, %s723
        %p725 = scmp.lt.s32.totalorder %s35, 1
        %s726 = scalar_select %p725, %s35, 1
        %s727 = smul.addr %s726, 4
        %s728 = scalar_lea.vmem %s5, %s727
        %p729 = scmp.lt.s32.totalorder %s35, 1
        %s730 = scalar_select %p729, %s35, 1
        %s731 = smul.addr %s730, 3
        %s732 = scalar_lea.vmem %s7, %s731
        %p733 = scmp.lt.s32.totalorder %s35, 1
        %s734 = scalar_select %p733, %s35, 1
        %s735 = smul.addr %s734, 16
        %s736 = smul.addr %s735, 4
        %s737 = scalar_lea.vmem %s8, %s736
        %p738 = scmp.lt.s32.totalorder %s35, 1
        %s739 = scalar_select %p738, %s35, 1
        %s740 = scalar_lea.vmem %s9, %s739
        %p741 = scmp.lt.s32.totalorder %s35, 1
        %s742 = scalar_select %p741, %s35, 1
        %s743 = smul.addr %s742, 8
        %s744 = scalar_lea.vmem %s11, %s743
        %p745 = scmp.lt.s32.totalorder %s35, 1
        %s746 = scalar_select %p745, %s35, 1
        %s747 = scalar_lea.vmem %s13, %s746
        %p749 = scmp.eq.s32.totalorder %s35, 0
        // Predicated region
        $region101: #{ldlm_forward.1} parent=87 // pred_check
          %p750 = pneg %p749
        $region102: #{ldlm_forward.1} parent=87 // pred_check_branch
          %752 = sbr.rel (%p750) target = $region104
        $region103: #{ldlm_forward.1} parent=87 // pred_region
          %v753 = vld [vmem:[%s0] sm:$0xff]
          %v754 = vld [vmem:[%s0 + $0x8] sm:$0xff]
          %v755 = vld [vmem:[%s2] sm:$0xff]
          %v756 = vadd.f32 %v753, %v755
          %v757 = vadd.f32 %v754, %v755
          %v758 = vld [vmem:[%s3] sm:$0x1]
          %v759 = vld [vmem:[%s3 + $0x1] sm:$0x1]
          %760 = vadd.xlane.f32.xlu0 %v756
          %v761 = vpop.xlane.xlu0 %760
          %762 = vadd.xlane.f32.xlu0 %v757
          %v763 = vpop.xlane.xlu0 %762
          %v764 = vrcp.pop 128.0
          %v765 = vmul.f32 %v761, %v764
          %v766 = vmul.f32 %v763, %v764
          %v767 = vsub.f32 %v756, %v765
          %v768 = vsub.f32 %v757, %v766
          %v769 = vmul.f32 %v767, %v767
          %v770 = vmul.f32 %v768, %v768
          %771 = vadd.xlane.f32.xlu0 %v769
          %v772 = vpop.xlane.xlu0 %771
          %773 = vadd.xlane.f32.xlu0 %v770
          %v774 = vpop.xlane.xlu0 %773
          %v775 = vmul.f32 %v772, %v764
          %v776 = vmul.f32 %v774, %v764
          %v777 = vadd.f32 %v775, 1e-05
          %v778 = vadd.f32 %v776, 1e-05
          %v779 = vrsqrt.pop %v777
          %v780 = vrsqrt.pop %v778
          %v781 = vmul.f32 %v767, %v779
          %v782 = vmul.f32 %v768, %v780
          %v783 = vlaneseq
          %v784 = vshrl.u32 %v783, 7
          %v785 = vsub.s32 0, %v784
          %v786 = vrot.slane %v758, %v785
          %v787 = vmul.f32 %v781, %v786
          %v788 = vmul.f32 %v782, %v786
          %v789 = vlaneseq
          %v790 = vshrl.u32 %v789, 7
          %v791 = vsub.s32 0, %v790
          %v792 = vrot.slane %v759, %v791
          %v793 = vadd.f32 %v787, %v792
          %v794 = vadd.f32 %v788, %v792
          %795 = vst [vmem:[#allocation2] sm:$0xff] %v793
          %796 = vst [vmem:[#allocation2 + $0x8] sm:$0xff] %v794
        $region104: #{ldlm_forward.1} parent=87 // pred_fallthru
          _
        %v797 = vld [vmem:[#allocation2] sm:$0xff]
        %v798 = vld [vmem:[#allocation2 + $0x8] sm:$0xff]
        %v799 = vld [vmem:[%s1] sm:$0xff]
        %v800 = vld [vmem:[%s1 + $0x8] sm:$0xff]
        %v801 = vld [vmem:[%s724] sm:$0xf]
        %v802 = vld [vmem:[%s728] sm:$0xf]
        %803 = vadd.xlane.f32.xlu0 %v797
        %v804 = vpop.xlane.xlu0 %803
        %805 = vadd.xlane.f32.xlu0 %v798
        %v806 = vpop.xlane.xlu0 %805
        %v807 = vrcp.pop 128.0
        %v808 = vmul.f32 %v804, %v807
        %v809 = vmul.f32 %v806, %v807
        %v810 = vsub.f32 %v797, %v808
        %v811 = vsub.f32 %v798, %v809
        %v812 = vmul.f32 %v810, %v810
        %v813 = vmul.f32 %v811, %v811
        %814 = vadd.xlane.f32.xlu0 %v812
        %v815 = vpop.xlane.xlu0 %814
        %816 = vadd.xlane.f32.xlu0 %v813
        %v817 = vpop.xlane.xlu0 %816
        %v818 = vmul.f32 %v815, %v807
        %v819 = vmul.f32 %v817, %v807
        %v820 = vadd.f32 %v818, 1e-05
        %v821 = vadd.f32 %v819, 1e-05
        %v822 = vrsqrt.pop %v820
        %v823 = vrsqrt.pop %v821
        %v824 = vmul.f32 %v810, %v822
        %v825 = vmul.f32 %v811, %v823
        %v826 = vlaneseq
        %v827 = vshrl.u32 %v826, 7
        %v828 = vsub.s32 0, %v827
        %v829 = vrot.slane %v801, %v828
        %v830 = vmul.f32 %v824, %v829
        %v831 = vmul.f32 %v825, %v829
        %v832 = vlaneseq
        %v833 = vshrl.u32 %v832, 7
        %v834 = vsub.s32 0, %v833
        %v835 = vrot.slane %v802, %v834
        %v836 = vadd.f32 %v830, %v835
        %v837 = vadd.f32 %v831, %v835
        %v838 = vld [vmem:[%s620] sm:$0xff]
        %v839 = vld [vmem:[%s620 + $0x8] sm:$0xf]
        %v840 = vld [vmem:[%s620 + $0xc] sm:$0xff]
        %v841 = vld [vmem:[%s620 + $0x14] sm:$0xf]
        %v842 = vld [vmem:[%s620 + $0x18] sm:$0xff]
        %v843 = vld [vmem:[%s620 + $0x20] sm:$0xf]
        %v844 = vld [vmem:[%s620 + $0x24] sm:$0xff]
        %v845 = vld [vmem:[%s620 + $0x2c] sm:$0xf]
        %v846 = vld [vmem:[%s620 + $0x30] sm:$0xff]
        %v847 = vld [vmem:[%s620 + $0x38] sm:$0xf]
        %v848 = vld [vmem:[%s620 + $0x3c] sm:$0xff]
        %v849 = vld [vmem:[%s620 + $0x44] sm:$0xf]
        %v850 = vld [vmem:[%s620 + $0x48] sm:$0xff]
        %v851 = vld [vmem:[%s620 + $0x50] sm:$0xf]
        %v852 = vld [vmem:[%s620 + $0x54] sm:$0xff]
        %v853 = vld [vmem:[%s620 + $0x5c] sm:$0xf]
        %v854 = vld [vmem:[%s620 + $0x60] sm:$0xff]
        %v855 = vld [vmem:[%s620 + $0x68] sm:$0xf]
        %v856 = vld [vmem:[%s620 + $0x6c] sm:$0xff]
        %v857 = vld [vmem:[%s620 + $0x74] sm:$0xf]
        %v858 = vld [vmem:[%s620 + $0x78] sm:$0xff]
        %v859 = vld [vmem:[%s620 + $0x80] sm:$0xf]
        %v860 = vld [vmem:[%s620 + $0x84] sm:$0xff]
        %v861 = vld [vmem:[%s620 + $0x8c] sm:$0xf]
        %v862 = vld [vmem:[%s620 + $0x90] sm:$0xff]
        %v863 = vld [vmem:[%s620 + $0x98] sm:$0xf]
        %v864 = vld [vmem:[%s620 + $0x9c] sm:$0xff]
        %v865 = vld [vmem:[%s620 + $0xa4] sm:$0xf]
        %v866 = vld [vmem:[%s620 + $0xa8] sm:$0xff]
        %v867 = vld [vmem:[%s620 + $0xb0] sm:$0xf]
        %v868 = vld [vmem:[%s620 + $0xb4] sm:$0xff]
        %v869 = vld [vmem:[%s620 + $0xbc] sm:$0xf]
        %v870 = vld [vmem:[%s732] sm:$0x7]
        %v871 = vpack.c.bf16 %v837, %v836
        %v873 = vlaneseq
        %v874 = vshrl.u32 %v873, 7
        %v875 = vsub.s32 0, %v874
        %v876 = vrot.slane %v870, %v875
        %v877 = vlaneseq
        %v878 = vshrl.u32 %v877, 7
        %v879 = vsub.s32 1, %v878
        %v880 = vrot.slane %v870, %v879
        %v881 = vlaneseq
        %v882 = vshrl.u32 %v881, 7
        %v883 = vsub.s32 2, %v882
        %v884 = vrot.slane %v870, %v883
        %v920 = vunpack.c.l.b16 %v838
        %v921 = vunpack.c.h.b16 %v838
        %v922 = vunpack.c.l.b16 %v839
        %v923 = vunpack.c.l.b16 %v840
        %v924 = vunpack.c.h.b16 %v840
        %v925 = vunpack.c.l.b16 %v841
        %v926 = vunpack.c.l.b16 %v842
        %v927 = vunpack.c.h.b16 %v842
        %v928 = vunpack.c.l.b16 %v843
        %v929 = vunpack.c.l.b16 %v844
        %v930 = vunpack.c.h.b16 %v844
        %v931 = vunpack.c.l.b16 %v845
        %v932 = vunpack.c.l.b16 %v846
        %v933 = vunpack.c.h.b16 %v846
        %v934 = vunpack.c.l.b16 %v847
        %v935 = vunpack.c.l.b16 %v848
        %v936 = vunpack.c.h.b16 %v848
        %v937 = vunpack.c.l.b16 %v849
        %v938 = vunpack.c.l.b16 %v850
        %v939 = vunpack.c.h.b16 %v850
        %v940 = vunpack.c.l.b16 %v851
        %v941 = vunpack.c.l.b16 %v852
        %v942 = vunpack.c.h.b16 %v852
        %v943 = vunpack.c.l.b16 %v853
        %v944 = vunpack.c.l.b16 %v854
        %v945 = vunpack.c.h.b16 %v854
        %v946 = vunpack.c.l.b16 %v855
        %v947 = vunpack.c.l.b16 %v856
        %v948 = vunpack.c.h.b16 %v856
        %v949 = vunpack.c.l.b16 %v857
        %v950 = vunpack.c.l.b16 %v858
        %v951 = vunpack.c.h.b16 %v858
        %v952 = vunpack.c.l.b16 %v859
        %v953 = vunpack.c.l.b16 %v860
        %v954 = vunpack.c.h.b16 %v860
        %v955 = vunpack.c.l.b16 %v861
        %v956 = vunpack.c.l.b16 %v862
        %v957 = vunpack.c.h.b16 %v862
        %v958 = vunpack.c.l.b16 %v863
        %v959 = vunpack.c.l.b16 %v864
        %v960 = vunpack.c.h.b16 %v864
        %v961 = vunpack.c.l.b16 %v865
        %v962 = vunpack.c.l.b16 %v866
        %v963 = vunpack.c.h.b16 %v866
        %v964 = vunpack.c.l.b16 %v867
        %v965 = vunpack.c.l.b16 %v868
        %v966 = vunpack.c.h.b16 %v868
        %v967 = vunpack.c.l.b16 %v869
        %v968 = vpack.c.b16 %v923, %v920
        %v969 = vpack.c.b16 %v924, %v921
        %v970 = vpack.c.b16 %v925, %v922
        %v971 = vpack.c.b16 %v929, %v926
        %v972 = vpack.c.b16 %v930, %v927
        %v973 = vpack.c.b16 %v931, %v928
        %v974 = vpack.c.b16 %v935, %v932
        %v975 = vpack.c.b16 %v936, %v933
        %v976 = vpack.c.b16 %v937, %v934
        %v977 = vpack.c.b16 %v941, %v938
        %v978 = vpack.c.b16 %v942, %v939
        %v979 = vpack.c.b16 %v943, %v940
        %v980 = vpack.c.b16 %v947, %v944
        %v981 = vpack.c.b16 %v948, %v945
        %v982 = vpack.c.b16 %v949, %v946
        %v983 = vpack.c.b16 %v953, %v950
        %v984 = vpack.c.b16 %v954, %v951
        %v985 = vpack.c.b16 %v955, %v952
        %v986 = vpack.c.b16 %v959, %v956
        %v987 = vpack.c.b16 %v960, %v957
        %v988 = vpack.c.b16 %v961, %v958
        %v989 = vpack.c.b16 %v965, %v962
        %v990 = vpack.c.b16 %v966, %v963
        %v991 = vpack.c.b16 %v967, %v964
        %1016 = vmatprep.subr.bf16.mxu0 %v990
        %1017 = vmatpush1.bf16.msra.mxu0 %v989
        %1018 = vmatprep.subr.bf16.mxu0 %v987
        %1019 = vmatpush1.bf16.msra.mxu0 %v986
        %1020 = vmatprep.subr.bf16.mxu0 %v984
        %1021 = vmatpush1.bf16.msra.mxu0 %v983
        %1022 = vmatprep.subr.bf16.mxu0 %v981
        %1023 = vmatpush1.bf16.msra.mxu0 %v980
        %1024 = vmatprep.subr.bf16.mxu0 %v978
        %1025 = vmatpush1.bf16.msra.mxu0 %v977
        %1026 = vmatprep.subr.bf16.mxu0 %v975
        %1027 = vmatpush1.bf16.msra.mxu0 %v974
        %1028 = vmatprep.subr.bf16.mxu0 %v972
        %1029 = vmatpush1.bf16.msra.mxu0 %v971
        %1030 = vmatprep.subr.bf16.mxu0 %v969
        %1031 = vmatpush1.bf16.msra.mxu0 %v968
        %1032 = vmatprep.subr.bf16.mxu0 0
        %1033 = vmatpush2.bf16.msra.mxu0 0
        %1034 = vmatprep.subr.bf16.mxu0 0
        %1035 = vmatpush2.bf16.msra.mxu0 0
        %1036 = vmatprep.subr.bf16.mxu0 0
        %1037 = vmatpush2.bf16.msra.mxu0 0
        %1038 = vmatprep.subr.bf16.mxu0 0
        %1039 = vmatpush2.bf16.msra.mxu0 0
        %1040 = vmatprep.subr.bf16.mxu0 0
        %1041 = vmatpush2.bf16.msra.mxu0 0
        %1042 = vmatprep.subr.bf16.mxu0 0
        %1043 = vmatpush2.bf16.msra.mxu0 0
        %1044 = vmatprep.subr.bf16.mxu0 0
        %1045 = vmatpush2.bf16.msra.mxu0 0
        %1046 = vmatprep.subr.bf16.mxu0 0
        %1047 = vmatpush2.bf16.msra.mxu0 0
        %1048 = vmatprep.mubr.bf16.mxu0 0
        %1049 = vmatmul.mubr.bf16.gmra.mxu0 %v871
        %v1050 = vpop.f32.mrf.mxu0
        %v1051 = vadd.f32 %v876, %v1050
        %v1052 = vpop.f32.mrf.mxu0
        %v1053 = vadd.f32 %v880, %v1052
        %v1054 = vpop.f32.mrf.mxu0
        %v1055 = vadd.f32 %v876, %v1054
        %v1056 = vpop.f32.mrf.mxu0
        %v1057 = vadd.f32 %v880, %v1056
        %1058 = vdwg.mxu0
        %1059 = vmatprep.subr.bf16.mxu0 0
        %1060 = vmatpush1.bf16.msra.mxu0 %v991
        %1061 = vmatprep.subr.bf16.mxu0 0
        %1062 = vmatpush1.bf16.msra.mxu0 %v988
        %1063 = vmatprep.subr.bf16.mxu0 0
        %1064 = vmatpush1.bf16.msra.mxu0 %v985
        %1065 = vmatprep.subr.bf16.mxu0 0
        %1066 = vmatpush1.bf16.msra.mxu0 %v982
        %1067 = vmatprep.subr.bf16.mxu0 0
        %1068 = vmatpush1.bf16.msra.mxu0 %v979
        %1069 = vmatprep.subr.bf16.mxu0 0
        %1070 = vmatpush1.bf16.msra.mxu0 %v976
        %1071 = vmatprep.subr.bf16.mxu0 0
        %1072 = vmatpush1.bf16.msra.mxu0 %v973
        %1073 = vmatprep.subr.bf16.mxu0 0
        %1074 = vmatpush1.bf16.msra.mxu0 %v970
        %1075 = vmatprep.subr.bf16.mxu0 0
        %1076 = vmatpush2.bf16.msra.mxu0 0
        %1077 = vmatprep.subr.bf16.mxu0 0
        %1078 = vmatpush2.bf16.msra.mxu0 0
        %1079 = vmatprep.subr.bf16.mxu0 0
        %1080 = vmatpush2.bf16.msra.mxu0 0
        %1081 = vmatprep.subr.bf16.mxu0 0
        %1082 = vmatpush2.bf16.msra.mxu0 0
        %1083 = vmatprep.subr.bf16.mxu0 0
        %1084 = vmatpush2.bf16.msra.mxu0 0
        %1085 = vmatprep.subr.bf16.mxu0 0
        %1086 = vmatpush2.bf16.msra.mxu0 0
        %1087 = vmatprep.subr.bf16.mxu0 0
        %1088 = vmatpush2.bf16.msra.mxu0 0
        %1089 = vmatprep.subr.bf16.mxu0 0
        %1090 = vmatpush2.bf16.msra.mxu0 0
        %1091 = vmatprep.mubr.bf16.mxu0 0
        %1092 = vmatmul.mubr.bf16.gmra.mxu0 %v871
        %v1093 = vpop.f32.mrf.mxu0
        %v1094 = vadd.f32 %v884, %v1093
        %v1095 = vpop.f32.mrf.mxu0
        %v1096 = vpop.f32.mrf.mxu0
        %v1097 = vadd.f32 %v884, %v1096
        %v1098 = vpop.f32.mrf.mxu0
        %1099 = vdwg.mxu0
        %1100 = vadd.xlane.f32.xlu0 %v1051
        %v1101 = vpop.xlane.xlu0 %1100
        %1102 = vadd.xlane.f32.xlu0 %v1055
        %v1103 = vpop.xlane.xlu0 %1102
        %v1104 = vmul.f32 %v1101, %v807
        %v1105 = vmul.f32 %v1103, %v807
        %v1106 = vsub.f32 %v1051, %v1104
        %v1107 = vsub.f32 %v1055, %v1105
        %v1108 = vmul.f32 %v1106, %v1106
        %v1109 = vmul.f32 %v1107, %v1107
        %1110 = vadd.xlane.f32.xlu0 %v1108
        %v1111 = vpop.xlane.xlu0 %1110
        %1112 = vadd.xlane.f32.xlu0 %v1109
        %v1113 = vpop.xlane.xlu0 %1112
        %v1114 = vmul.f32 %v1111, %v807
        %v1115 = vmul.f32 %v1113, %v807
        %v1116 = vadd.f32 %v1114, 1e-05
        %v1117 = vadd.f32 %v1115, 1e-05
        %v1118 = vrsqrt.pop %v1116
        %v1119 = vrsqrt.pop %v1117
        %v1120 = vmul.f32 %v1106, %v1118
        %v1121 = vmul.f32 %v1107, %v1119
        %v1122 = vlaneseq
        %v1123 = vshrl.u32 %v1122, 7
        %v1124 = vsub.s32 1, %v1123
        %v1125 = vrot.slane %v801, %v1124
        %v1126 = vmul.f32 %v1120, %v1125
        %v1127 = vmul.f32 %v1121, %v1125
        %v1128 = vlaneseq
        %v1129 = vshrl.u32 %v1128, 7
        %v1130 = vsub.s32 1, %v1129
        %v1131 = vrot.slane %v802, %v1130
        %v1132 = vadd.f32 %v1126, %v1131
        %v1133 = vadd.f32 %v1127, %v1131
        %v1134 = vmul.f32 %v1132, 0.125
        %v1135 = vmul.f32 %v1133, 0.125
        %1136 = vadd.xlane.f32.xlu0 %v1053
        %v1137 = vpop.xlane.xlu0 %1136
        %1138 = vadd.xlane.f32.xlu0 %v1057
        %v1139 = vpop.xlane.xlu0 %1138
        %v1140 = vmul.f32 %v1137, %v807
        %v1141 = vmul.f32 %v1139, %v807
        %v1142 = vsub.f32 %v1053, %v1140
        %v1143 = vsub.f32 %v1057, %v1141
        %v1144 = vmul.f32 %v1142, %v1142
        %v1145 = vmul.f32 %v1143, %v1143
        %1146 = vadd.xlane.f32.xlu0 %v1144
        %v1147 = vpop.xlane.xlu0 %1146
        %1148 = vadd.xlane.f32.xlu0 %v1145
        %v1149 = vpop.xlane.xlu0 %1148
        %v1150 = vmul.f32 %v1147, %v807
        %v1151 = vmul.f32 %v1149, %v807
        %v1152 = vadd.f32 %v1150, 1e-05
        %v1153 = vadd.f32 %v1151, 1e-05
        %v1154 = vrsqrt.pop %v1152
        %v1155 = vrsqrt.pop %v1153
        %v1156 = vmul.f32 %v1142, %v1154
        %v1157 = vmul.f32 %v1143, %v1155
        %v1158 = vlaneseq
        %v1159 = vshrl.u32 %v1158, 7
        %v1160 = vsub.s32 2, %v1159
        %v1161 = vrot.slane %v801, %v1160
        %v1162 = vmul.f32 %v1156, %v1161
        %v1163 = vmul.f32 %v1157, %v1161
        %v1164 = vlaneseq
        %v1165 = vshrl.u32 %v1164, 7
        %v1166 = vsub.s32 2, %v1165
        %v1167 = vrot.slane %v802, %v1166
        %v1168 = vadd.f32 %v1162, %v1167
        %v1169 = vadd.f32 %v1163, %v1167
        %v1170 = vlaneseq
        %v1171 = vand.u32 %v1170, 127
        %vm1172 = vcmp.ge.s32.totalorder %v1171, 0
        %vm1173 = vcmp.lt.s32.totalorder %v1171, 64
        %vm1174 = vmand %vm1172, %vm1173
        %v1175 = vsel %vm1174, 1, 0
        %v1176 = vcvt.s32.f32 %v1175
        %v1177 = vmul.f32 %v1134, %v1176
        %v1178 = vmul.f32 %v1135, %v1176
        %1179 = vmatprep.subr.mxu0 0.0
        %1180 = vmatpush1.xpose.msra.mxu0 0.0
        %1181 = vmatprep.subr.mxu0 0.0
        %1182 = vmatpush1.xpose.msra.mxu0 0.0
        %1183 = vmatprep.subr.mxu0 0.0
        %1184 = vmatpush1.xpose.msra.mxu0 0.0
        %1185 = vmatprep.subr.mxu0 0.0
        %1186 = vmatpush1.xpose.msra.mxu0 0.0
        %1187 = vmatprep.subr.mxu0 0.0
        %1188 = vmatpush1.xpose.msra.mxu0 0.0
        %1189 = vmatprep.subr.mxu0 0.0
        %1190 = vmatpush1.xpose.msra.mxu0 0.0
        %1191 = vmatprep.subr.mxu0 0.0
        %1192 = vmatpush1.xpose.msra.mxu0 0.0
        %1193 = vmatprep.subr.mxu0 0.0
        %1194 = vmatpush1.xpose.msra.mxu0 0.0
        %1195 = vmatprep.subr.mxu0 0.0
        %1196 = vmatpush1.xpose.msra.mxu0 0.0
        %1197 = vmatprep.subr.mxu0 0.0
        %1198 = vmatpush1.xpose.msra.mxu0 0.0
        %1199 = vmatprep.subr.mxu0 0.0
        %1200 = vmatpush1.xpose.msra.mxu0 0.0
        %1201 = vmatprep.subr.mxu0 0.0
        %1202 = vmatpush1.xpose.msra.mxu0 0.0
        %1203 = vmatprep.subr.mxu0 0.0
        %1204 = vmatpush1.xpose.msra.mxu0 0.0
        %1205 = vmatprep.subr.mxu0 0.0
        %1206 = vmatpush1.xpose.msra.mxu0 0.0
        %1207 = vmatprep.subr.mxu0 0.0
        %1208 = vmatpush1.xpose.msra.mxu0 0.0
        %1209 = vmatprep.subr.mxu0 0.0
        %1210 = vmatpush1.xpose.msra.mxu0 %v1168
        %1211 = vmatprep.subr.mxu0 0.0
        %1212 = vmatpush2.xpose.msra.mxu0 0.0
        %1213 = vmatprep.subr.mxu0 0.0
        %1214 = vmatpush2.xpose.msra.mxu0 0.0
        %1215 = vmatprep.subr.mxu0 0.0
        %1216 = vmatpush2.xpose.msra.mxu0 0.0
        %1217 = vmatprep.subr.mxu0 0.0
        %1218 = vmatpush2.xpose.msra.mxu0 0.0
        %1219 = vmatprep.subr.mxu0 0.0
        %1220 = vmatpush2.xpose.msra.mxu0 0.0
        %1221 = vmatprep.subr.mxu0 0.0
        %1222 = vmatpush2.xpose.msra.mxu0 0.0
        %1223 = vmatprep.subr.mxu0 0.0
        %1224 = vmatpush2.xpose.msra.mxu0 0.0
        %1225 = vmatprep.subr.mxu0 0.0
        %1226 = vmatpush2.xpose.msra.mxu0 0.0
        %1227 = vmatprep.subr.mxu0 0.0
        %1228 = vmatpush2.xpose.msra.mxu0 0.0
        %1229 = vmatprep.subr.mxu0 0.0
        %1230 = vmatpush2.xpose.msra.mxu0 0.0
        %1231 = vmatprep.subr.mxu0 0.0
        %1232 = vmatpush2.xpose.msra.mxu0 0.0
        %1233 = vmatprep.subr.mxu0 0.0
        %1234 = vmatpush2.xpose.msra.mxu0 0.0
        %1235 = vmatprep.subr.mxu0 0.0
        %1236 = vmatpush2.xpose.msra.mxu0 0.0
        %1237 = vmatprep.subr.mxu0 0.0
        %1238 = vmatpush2.xpose.msra.mxu0 0.0
        %1239 = vmatprep.subr.mxu0 0.0
        %1240 = vmatpush2.xpose.msra.mxu0 0.0
        %1241 = vmatprep.subr.mxu0 0.0
        %1242 = vmatpush2.xpose.msra.mxu0 0.0
        %1243 = vmatprep.mubr.f32.mxu0 0.0
        %1244 = vmatmul.mubr.f32.gmra.mxu0 %v1177
        %v1245 = vpop.f32.mrf.mxu0
        %v1246 = vadd.f32 %v799, %v1245
        %v1247 = vpop.f32.mrf.mxu0
        %1248 = vdwg.mxu0
        %1249 = vmatprep.subr.mxu0 0.0
        %1250 = vmatpush1.xpose.msra.mxu0 0.0
        %1251 = vmatprep.subr.mxu0 0.0
        %1252 = vmatpush1.xpose.msra.mxu0 0.0
        %1253 = vmatprep.subr.mxu0 0.0
        %1254 = vmatpush1.xpose.msra.mxu0 0.0
        %1255 = vmatprep.subr.mxu0 0.0
        %1256 = vmatpush1.xpose.msra.mxu0 0.0
        %1257 = vmatprep.subr.mxu0 0.0
        %1258 = vmatpush1.xpose.msra.mxu0 0.0
        %1259 = vmatprep.subr.mxu0 0.0
        %1260 = vmatpush1.xpose.msra.mxu0 0.0
        %1261 = vmatprep.subr.mxu0 0.0
        %1262 = vmatpush1.xpose.msra.mxu0 0.0
        %1263 = vmatprep.subr.mxu0 0.0
        %1264 = vmatpush1.xpose.msra.mxu0 0.0
        %1265 = vmatprep.subr.mxu0 0.0
        %1266 = vmatpush1.xpose.msra.mxu0 0.0
        %1267 = vmatprep.subr.mxu0 0.0
        %1268 = vmatpush1.xpose.msra.mxu0 0.0
        %1269 = vmatprep.subr.mxu0 0.0
        %1270 = vmatpush1.xpose.msra.mxu0 0.0
        %1271 = vmatprep.subr.mxu0 0.0
        %1272 = vmatpush1.xpose.msra.mxu0 0.0
        %1273 = vmatprep.subr.mxu0 0.0
        %1274 = vmatpush1.xpose.msra.mxu0 0.0
        %1275 = vmatprep.subr.mxu0 0.0
        %1276 = vmatpush1.xpose.msra.mxu0 0.0
        %1277 = vmatprep.subr.mxu0 0.0
        %1278 = vmatpush1.xpose.msra.mxu0 0.0
        %1279 = vmatprep.subr.mxu0 0.0
        %1280 = vmatpush1.xpose.msra.mxu0 %v1169
        %1281 = vmatprep.subr.mxu0 0.0
        %1282 = vmatpush2.xpose.msra.mxu0 0.0
        %1283 = vmatprep.subr.mxu0 0.0
        %1284 = vmatpush2.xpose.msra.mxu0 0.0
        %1285 = vmatprep.subr.mxu0 0.0
        %1286 = vmatpush2.xpose.msra.mxu0 0.0
        %1287 = vmatprep.subr.mxu0 0.0
        %1288 = vmatpush2.xpose.msra.mxu0 0.0
        %1289 = vmatprep.subr.mxu0 0.0
        %1290 = vmatpush2.xpose.msra.mxu0 0.0
        %1291 = vmatprep.subr.mxu0 0.0
        %1292 = vmatpush2.xpose.msra.mxu0 0.0
        %1293 = vmatprep.subr.mxu0 0.0
        %1294 = vmatpush2.xpose.msra.mxu0 0.0
        %1295 = vmatprep.subr.mxu0 0.0
        %1296 = vmatpush2.xpose.msra.mxu0 0.0
        %1297 = vmatprep.subr.mxu0 0.0
        %1298 = vmatpush2.xpose.msra.mxu0 0.0
        %1299 = vmatprep.subr.mxu0 0.0
        %1300 = vmatpush2.xpose.msra.mxu0 0.0
        %1301 = vmatprep.subr.mxu0 0.0
        %1302 = vmatpush2.xpose.msra.mxu0 0.0
        %1303 = vmatprep.subr.mxu0 0.0
        %1304 = vmatpush2.xpose.msra.mxu0 0.0
        %1305 = vmatprep.subr.mxu0 0.0
        %1306 = vmatpush2.xpose.msra.mxu0 0.0
        %1307 = vmatprep.subr.mxu0 0.0
        %1308 = vmatpush2.xpose.msra.mxu0 0.0
        %1309 = vmatprep.subr.mxu0 0.0
        %1310 = vmatpush2.xpose.msra.mxu0 0.0
        %1311 = vmatprep.subr.mxu0 0.0
        %1312 = vmatpush2.xpose.msra.mxu0 0.0
        %1313 = vmatprep.mubr.f32.mxu0 0.0
        %1314 = vmatmul.mubr.f32.gmra.mxu0 %v1178
        %v1315 = vpop.f32.mrf.mxu0
        %v1316 = vadd.f32 %v800, %v1315
        %v1317 = vpop.f32.mrf.mxu0
        %1318 = vdwg.mxu0
        %vm1319 = vcmask 64512
        %v1320 = vsel %vm1319, %v1246, -inf
        %1321 = vmax.xlane.f32.xlu0 %v1320
        %v1322 = vpop.xlane.xlu0 %1321
        %v1323 = vsel %vm1319, %v1316, -inf
        %1324 = vmax.xlane.f32.xlu0 %v1323
        %v1325 = vpop.xlane.xlu0 %1324
        %v1326 = vsub.f32 %v1246, %v1322
        %v1327 = vsub.f32 %v1316, %v1325
        %v1328 = vmul.f32 %v1326, 1.442695
        %v1329 = vpow.pop %v1328
        %v1330 = vmul.f32 %v1327, 1.442695
        %v1331 = vpow.pop %v1330
        %v1332 = vsel %vm1319, %v1329, 0.0
        %1333 = vadd.xlane.f32.xlu0 %v1332
        %v1334 = vpop.xlane.xlu0 %1333
        %v1335 = vsel %vm1319, %v1331, 0.0
        %1336 = vadd.xlane.f32.xlu0 %v1335
        %v1337 = vpop.xlane.xlu0 %1336
        %v1338 = vrcp.pop %v1334
        %v1339 = vrcp.pop %v1337
        %v1340 = vmul.f32 %v1329, %v1338
        %v1341 = vmul.f32 %v1331, %v1339
        %v1342 = vmul.f32 %v1094, %v1176
        %v1343 = vmul.f32 %v1097, %v1176
        %vm1344 = vcmp.ge.s32.totalorder %v1171, 64
        %vm1345 = vcmp.lt.s32.totalorder %v1171, 128
        %vm1346 = vmand %vm1344, %vm1345
        %v1347 = vsel %vm1346, 1, 0
        %v1348 = vcvt.s32.f32 %v1347
        %v1349 = vmul.f32 %v1134, %v1348
        %v1350 = vmul.f32 %v1135, %v1348
        %1351 = vmatprep.subr.mxu0 0.0
        %1352 = vmatpush1.xpose.msra.mxu0 0.0
        %1353 = vmatprep.subr.mxu0 0.0
        %1354 = vmatpush1.xpose.msra.mxu0 0.0
        %1355 = vmatprep.subr.mxu0 0.0
        %1356 = vmatpush1.xpose.msra.mxu0 0.0
        %1357 = vmatprep.subr.mxu0 0.0
        %1358 = vmatpush1.xpose.msra.mxu0 0.0
        %1359 = vmatprep.subr.mxu0 0.0
        %1360 = vmatpush1.xpose.msra.mxu0 0.0
        %1361 = vmatprep.subr.mxu0 0.0
        %1362 = vmatpush1.xpose.msra.mxu0 0.0
        %1363 = vmatprep.subr.mxu0 0.0
        %1364 = vmatpush1.xpose.msra.mxu0 0.0
        %1365 = vmatprep.subr.mxu0 0.0
        %1366 = vmatpush1.xpose.msra.mxu0 0.0
        %1367 = vmatprep.subr.mxu0 0.0
        %1368 = vmatpush1.xpose.msra.mxu0 0.0
        %1369 = vmatprep.subr.mxu0 0.0
        %1370 = vmatpush1.xpose.msra.mxu0 0.0
        %1371 = vmatprep.subr.mxu0 0.0
        %1372 = vmatpush1.xpose.msra.mxu0 0.0
        %1373 = vmatprep.subr.mxu0 0.0
        %1374 = vmatpush1.xpose.msra.mxu0 0.0
        %1375 = vmatprep.subr.mxu0 0.0
        %1376 = vmatpush1.xpose.msra.mxu0 0.0
        %1377 = vmatprep.subr.mxu0 0.0
        %1378 = vmatpush1.xpose.msra.mxu0 0.0
        %1379 = vmatprep.subr.mxu0 0.0
        %1380 = vmatpush1.xpose.msra.mxu0 0.0
        %1381 = vmatprep.subr.mxu0 0.0
        %1382 = vmatpush1.xpose.msra.mxu0 %v1168
        %1383 = vmatprep.subr.mxu0 0.0
        %1384 = vmatpush2.xpose.msra.mxu0 0.0
        %1385 = vmatprep.subr.mxu0 0.0
        %1386 = vmatpush2.xpose.msra.mxu0 0.0
        %1387 = vmatprep.subr.mxu0 0.0
        %1388 = vmatpush2.xpose.msra.mxu0 0.0
        %1389 = vmatprep.subr.mxu0 0.0
        %1390 = vmatpush2.xpose.msra.mxu0 0.0
        %1391 = vmatprep.subr.mxu0 0.0
        %1392 = vmatpush2.xpose.msra.mxu0 0.0
        %1393 = vmatprep.subr.mxu0 0.0
        %1394 = vmatpush2.xpose.msra.mxu0 0.0
        %1395 = vmatprep.subr.mxu0 0.0
        %1396 = vmatpush2.xpose.msra.mxu0 0.0
        %1397 = vmatprep.subr.mxu0 0.0
        %1398 = vmatpush2.xpose.msra.mxu0 0.0
        %1399 = vmatprep.subr.mxu0 0.0
        %1400 = vmatpush2.xpose.msra.mxu0 0.0
        %1401 = vmatprep.subr.mxu0 0.0
        %1402 = vmatpush2.xpose.msra.mxu0 0.0
        %1403 = vmatprep.subr.mxu0 0.0
        %1404 = vmatpush2.xpose.msra.mxu0 0.0
        %1405 = vmatprep.subr.mxu0 0.0
        %1406 = vmatpush2.xpose.msra.mxu0 0.0
        %1407 = vmatprep.subr.mxu0 0.0
        %1408 = vmatpush2.xpose.msra.mxu0 0.0
        %1409 = vmatprep.subr.mxu0 0.0
        %1410 = vmatpush2.xpose.msra.mxu0 0.0
        %1411 = vmatprep.subr.mxu0 0.0
        %1412 = vmatpush2.xpose.msra.mxu0 0.0
        %1413 = vmatprep.subr.mxu0 0.0
        %1414 = vmatpush2.xpose.msra.mxu0 0.0
        %1415 = vmatprep.mubr.f32.mxu0 0.0
        %1416 = vmatmul.mubr.f32.gmra.mxu0 %v1349
        %v1417 = vpop.f32.mrf.mxu0
        %v1418 = vadd.f32 %v799, %v1417
        %v1419 = vpop.f32.mrf.mxu0
        %1420 = vdwg.mxu0
        %1421 = vmatprep.subr.mxu0 0.0
        %1422 = vmatpush1.xpose.msra.mxu0 0.0
        %1423 = vmatprep.subr.mxu0 0.0
        %1424 = vmatpush1.xpose.msra.mxu0 0.0
        %1425 = vmatprep.subr.mxu0 0.0
        %1426 = vmatpush1.xpose.msra.mxu0 0.0
        %1427 = vmatprep.subr.mxu0 0.0
        %1428 = vmatpush1.xpose.msra.mxu0 0.0
        %1429 = vmatprep.subr.mxu0 0.0
        %1430 = vmatpush1.xpose.msra.mxu0 0.0
        %1431 = vmatprep.subr.mxu0 0.0
        %1432 = vmatpush1.xpose.msra.mxu0 0.0
        %1433 = vmatprep.subr.mxu0 0.0
        %1434 = vmatpush1.xpose.msra.mxu0 0.0
        %1435 = vmatprep.subr.mxu0 0.0
        %1436 = vmatpush1.xpose.msra.mxu0 0.0
        %1437 = vmatprep.subr.mxu0 0.0
        %1438 = vmatpush1.xpose.msra.mxu0 0.0
        %1439 = vmatprep.subr.mxu0 0.0
        %1440 = vmatpush1.xpose.msra.mxu0 0.0
        %1441 = vmatprep.subr.mxu0 0.0
        %1442 = vmatpush1.xpose.msra.mxu0 0.0
        %1443 = vmatprep.subr.mxu0 0.0
        %1444 = vmatpush1.xpose.msra.mxu0 0.0
        %1445 = vmatprep.subr.mxu0 0.0
        %1446 = vmatpush1.xpose.msra.mxu0 0.0
        %1447 = vmatprep.subr.mxu0 0.0
        %1448 = vmatpush1.xpose.msra.mxu0 0.0
        %1449 = vmatprep.subr.mxu0 0.0
        %1450 = vmatpush1.xpose.msra.mxu0 0.0
        %1451 = vmatprep.subr.mxu0 0.0
        %1452 = vmatpush1.xpose.msra.mxu0 %v1169
        %1453 = vmatprep.subr.mxu0 0.0
        %1454 = vmatpush2.xpose.msra.mxu0 0.0
        %1455 = vmatprep.subr.mxu0 0.0
        %1456 = vmatpush2.xpose.msra.mxu0 0.0
        %1457 = vmatprep.subr.mxu0 0.0
        %1458 = vmatpush2.xpose.msra.mxu0 0.0
        %1459 = vmatprep.subr.mxu0 0.0
        %1460 = vmatpush2.xpose.msra.mxu0 0.0
        %1461 = vmatprep.subr.mxu0 0.0
        %1462 = vmatpush2.xpose.msra.mxu0 0.0
        %1463 = vmatprep.subr.mxu0 0.0
        %1464 = vmatpush2.xpose.msra.mxu0 0.0
        %1465 = vmatprep.subr.mxu0 0.0
        %1466 = vmatpush2.xpose.msra.mxu0 0.0
        %1467 = vmatprep.subr.mxu0 0.0
        %1468 = vmatpush2.xpose.msra.mxu0 0.0
        %1469 = vmatprep.subr.mxu0 0.0
        %1470 = vmatpush2.xpose.msra.mxu0 0.0
        %1471 = vmatprep.subr.mxu0 0.0
        %1472 = vmatpush2.xpose.msra.mxu0 0.0
        %1473 = vmatprep.subr.mxu0 0.0
        %1474 = vmatpush2.xpose.msra.mxu0 0.0
        %1475 = vmatprep.subr.mxu0 0.0
        %1476 = vmatpush2.xpose.msra.mxu0 0.0
        %1477 = vmatprep.subr.mxu0 0.0
        %1478 = vmatpush2.xpose.msra.mxu0 0.0
        %1479 = vmatprep.subr.mxu0 0.0
        %1480 = vmatpush2.xpose.msra.mxu0 0.0
        %1481 = vmatprep.subr.mxu0 0.0
        %1482 = vmatpush2.xpose.msra.mxu0 0.0
        %1483 = vmatprep.subr.mxu0 0.0
        %1484 = vmatpush2.xpose.msra.mxu0 0.0
        %1485 = vmatprep.mubr.f32.mxu0 0.0
        %1486 = vmatmul.mubr.f32.gmra.mxu0 %v1350
        %v1487 = vpop.f32.mrf.mxu0
        %v1488 = vadd.f32 %v800, %v1487
        %v1489 = vpop.f32.mrf.mxu0
        %1490 = vdwg.mxu0
        %v1491 = vsel %vm1319, %v1418, -inf
        %1492 = vmax.xlane.f32.xlu0 %v1491
        %v1493 = vpop.xlane.xlu0 %1492
        %v1494 = vsel %vm1319, %v1488, -inf
        %1495 = vmax.xlane.f32.xlu0 %v1494
        %v1496 = vpop.xlane.xlu0 %1495
        %v1497 = vsub.f32 %v1418, %v1493
        %v1498 = vsub.f32 %v1488, %v1496
        %v1499 = vmul.f32 %v1497, 1.442695
        %v1500 = vpow.pop %v1499
        %v1501 = vmul.f32 %v1498, 1.442695
        %v1502 = vpow.pop %v1501
        %v1503 = vsel %vm1319, %v1500, 0.0
        %1504 = vadd.xlane.f32.xlu0 %v1503
        %v1505 = vpop.xlane.xlu0 %1504
        %v1506 = vsel %vm1319, %v1502, 0.0
        %1507 = vadd.xlane.f32.xlu0 %v1506
        %v1508 = vpop.xlane.xlu0 %1507
        %v1509 = vrcp.pop %v1505
        %v1510 = vrcp.pop %v1508
        %v1511 = vmul.f32 %v1500, %v1509
        %v1512 = vmul.f32 %v1502, %v1510
        %v1513 = vmul.f32 %v1094, %v1348
        %v1514 = vmul.f32 %v1097, %v1348
        %v1516 = vsel %vm1319, %v1511, 0
        %1518 = vmatprep.subr.mxu0 0.0
        %1519 = vmatpush1.msra.mxu0 0.0
        %1520 = vmatprep.subr.mxu0 0.0
        %1521 = vmatpush1.msra.mxu0 0.0
        %1522 = vmatprep.subr.mxu0 0.0
        %1523 = vmatpush1.msra.mxu0 0.0
        %1524 = vmatprep.subr.mxu0 0.0
        %1525 = vmatpush1.msra.mxu0 0.0
        %1526 = vmatprep.subr.mxu0 0.0
        %1527 = vmatpush1.msra.mxu0 0.0
        %1528 = vmatprep.subr.mxu0 0.0
        %1529 = vmatpush1.msra.mxu0 0.0
        %1530 = vmatprep.subr.mxu0 0.0
        %1531 = vmatpush1.msra.mxu0 0.0
        %1532 = vmatprep.subr.mxu0 0.0
        %1533 = vmatpush1.msra.mxu0 0.0
        %1534 = vmatprep.subr.mxu0 0.0
        %1535 = vmatpush1.msra.mxu0 0.0
        %1536 = vmatprep.subr.mxu0 0.0
        %1537 = vmatpush1.msra.mxu0 0.0
        %1538 = vmatprep.subr.mxu0 0.0
        %1539 = vmatpush1.msra.mxu0 0.0
        %1540 = vmatprep.subr.mxu0 0.0
        %1541 = vmatpush1.msra.mxu0 0.0
        %1542 = vmatprep.subr.mxu0 0.0
        %1543 = vmatpush1.msra.mxu0 0.0
        %1544 = vmatprep.subr.mxu0 0.0
        %1545 = vmatpush1.msra.mxu0 0.0
        %1546 = vmatprep.subr.mxu0 0.0
        %1547 = vmatpush1.msra.mxu0 0.0
        %1548 = vmatprep.subr.mxu0 0.0
        %1549 = vmatpush1.msra.mxu0 %v1513
        %1550 = vmatprep.subr.mxu0 0.0
        %1551 = vmatpush2.msra.mxu0 0.0
        %1552 = vmatprep.subr.mxu0 0.0
        %1553 = vmatpush2.msra.mxu0 0.0
        %1554 = vmatprep.subr.mxu0 0.0
        %1555 = vmatpush2.msra.mxu0 0.0
        %1556 = vmatprep.subr.mxu0 0.0
        %1557 = vmatpush2.msra.mxu0 0.0
        %1558 = vmatprep.subr.mxu0 0.0
        %1559 = vmatpush2.msra.mxu0 0.0
        %1560 = vmatprep.subr.mxu0 0.0
        %1561 = vmatpush2.msra.mxu0 0.0
        %1562 = vmatprep.subr.mxu0 0.0
        %1563 = vmatpush2.msra.mxu0 0.0
        %1564 = vmatprep.subr.mxu0 0.0
        %1565 = vmatpush2.msra.mxu0 0.0
        %1566 = vmatprep.subr.mxu0 0.0
        %1567 = vmatpush2.msra.mxu0 0.0
        %1568 = vmatprep.subr.mxu0 0.0
        %1569 = vmatpush2.msra.mxu0 0.0
        %1570 = vmatprep.subr.mxu0 0.0
        %1571 = vmatpush2.msra.mxu0 0.0
        %1572 = vmatprep.subr.mxu0 0.0
        %1573 = vmatpush2.msra.mxu0 0.0
        %1574 = vmatprep.subr.mxu0 0.0
        %1575 = vmatpush2.msra.mxu0 0.0
        %1576 = vmatprep.subr.mxu0 0.0
        %1577 = vmatpush2.msra.mxu0 0.0
        %1578 = vmatprep.subr.mxu0 0.0
        %1579 = vmatpush2.msra.mxu0 0.0
        %1580 = vmatprep.subr.mxu0 0.0
        %1581 = vmatpush2.msra.mxu0 0.0
        %1582 = vmatprep.mubr.f32.mxu0 0.0
        %1583 = vmatmul.mubr.f32.gmra.mxu0 %v1516
        %v1584 = vpop.f32.mrf.mxu0
        %v1585 = vadd.f32 0.0, %v1584
        %v1586 = vpop.f32.mrf.mxu0
        %1587 = vdwg.mxu0
        %v1589 = vsel %vm1319, %v1512, 0
        %1591 = vmatprep.subr.mxu0 0.0
        %1592 = vmatpush1.msra.mxu0 0.0
        %1593 = vmatprep.subr.mxu0 0.0
        %1594 = vmatpush1.msra.mxu0 0.0
        %1595 = vmatprep.subr.mxu0 0.0
        %1596 = vmatpush1.msra.mxu0 0.0
        %1597 = vmatprep.subr.mxu0 0.0
        %1598 = vmatpush1.msra.mxu0 0.0
        %1599 = vmatprep.subr.mxu0 0.0
        %1600 = vmatpush1.msra.mxu0 0.0
        %1601 = vmatprep.subr.mxu0 0.0
        %1602 = vmatpush1.msra.mxu0 0.0
        %1603 = vmatprep.subr.mxu0 0.0
        %1604 = vmatpush1.msra.mxu0 0.0
        %1605 = vmatprep.subr.mxu0 0.0
        %1606 = vmatpush1.msra.mxu0 0.0
        %1607 = vmatprep.subr.mxu0 0.0
        %1608 = vmatpush1.msra.mxu0 0.0
        %1609 = vmatprep.subr.mxu0 0.0
        %1610 = vmatpush1.msra.mxu0 0.0
        %1611 = vmatprep.subr.mxu0 0.0
        %1612 = vmatpush1.msra.mxu0 0.0
        %1613 = vmatprep.subr.mxu0 0.0
        %1614 = vmatpush1.msra.mxu0 0.0
        %1615 = vmatprep.subr.mxu0 0.0
        %1616 = vmatpush1.msra.mxu0 0.0
        %1617 = vmatprep.subr.mxu0 0.0
        %1618 = vmatpush1.msra.mxu0 0.0
        %1619 = vmatprep.subr.mxu0 0.0
        %1620 = vmatpush1.msra.mxu0 0.0
        %1621 = vmatprep.subr.mxu0 0.0
        %1622 = vmatpush1.msra.mxu0 %v1514
        %1623 = vmatprep.subr.mxu0 0.0
        %1624 = vmatpush2.msra.mxu0 0.0
        %1625 = vmatprep.subr.mxu0 0.0
        %1626 = vmatpush2.msra.mxu0 0.0
        %1627 = vmatprep.subr.mxu0 0.0
        %1628 = vmatpush2.msra.mxu0 0.0
        %1629 = vmatprep.subr.mxu0 0.0
        %1630 = vmatpush2.msra.mxu0 0.0
        %1631 = vmatprep.subr.mxu0 0.0
        %1632 = vmatpush2.msra.mxu0 0.0
        %1633 = vmatprep.subr.mxu0 0.0
        %1634 = vmatpush2.msra.mxu0 0.0
        %1635 = vmatprep.subr.mxu0 0.0
        %1636 = vmatpush2.msra.mxu0 0.0
        %1637 = vmatprep.subr.mxu0 0.0
        %1638 = vmatpush2.msra.mxu0 0.0
        %1639 = vmatprep.subr.mxu0 0.0
        %1640 = vmatpush2.msra.mxu0 0.0
        %1641 = vmatprep.subr.mxu0 0.0
        %1642 = vmatpush2.msra.mxu0 0.0
        %1643 = vmatprep.subr.mxu0 0.0
        %1644 = vmatpush2.msra.mxu0 0.0
        %1645 = vmatprep.subr.mxu0 0.0
        %1646 = vmatpush2.msra.mxu0 0.0
        %1647 = vmatprep.subr.mxu0 0.0
        %1648 = vmatpush2.msra.mxu0 0.0
        %1649 = vmatprep.subr.mxu0 0.0
        %1650 = vmatpush2.msra.mxu0 0.0
        %1651 = vmatprep.subr.mxu0 0.0
        %1652 = vmatpush2.msra.mxu0 0.0
        %1653 = vmatprep.subr.mxu0 0.0
        %1654 = vmatpush2.msra.mxu0 0.0
        %1655 = vmatprep.mubr.f32.mxu0 0.0
        %1656 = vmatmul.mubr.f32.gmra.mxu0 %v1589
        %v1657 = vpop.f32.mrf.mxu0
        %v1658 = vadd.f32 0.0, %v1657
        %v1659 = vpop.f32.mrf.mxu0
        %1660 = vdwg.mxu0
        %v1662 = vsel %vm1319, %v1340, 0
        %1664 = vmatprep.subr.mxu0 0.0
        %1665 = vmatpush1.msra.mxu0 0.0
        %1666 = vmatprep.subr.mxu0 0.0
        %1667 = vmatpush1.msra.mxu0 0.0
        %1668 = vmatprep.subr.mxu0 0.0
        %1669 = vmatpush1.msra.mxu0 0.0
        %1670 = vmatprep.subr.mxu0 0.0
        %1671 = vmatpush1.msra.mxu0 0.0
        %1672 = vmatprep.subr.mxu0 0.0
        %1673 = vmatpush1.msra.mxu0 0.0
        %1674 = vmatprep.subr.mxu0 0.0
        %1675 = vmatpush1.msra.mxu0 0.0
        %1676 = vmatprep.subr.mxu0 0.0
        %1677 = vmatpush1.msra.mxu0 0.0
        %1678 = vmatprep.subr.mxu0 0.0
        %1679 = vmatpush1.msra.mxu0 0.0
        %1680 = vmatprep.subr.mxu0 0.0
        %1681 = vmatpush1.msra.mxu0 0.0
        %1682 = vmatprep.subr.mxu0 0.0
        %1683 = vmatpush1.msra.mxu0 0.0
        %1684 = vmatprep.subr.mxu0 0.0
        %1685 = vmatpush1.msra.mxu0 0.0
        %1686 = vmatprep.subr.mxu0 0.0
        %1687 = vmatpush1.msra.mxu0 0.0
        %1688 = vmatprep.subr.mxu0 0.0
        %1689 = vmatpush1.msra.mxu0 0.0
        %1690 = vmatprep.subr.mxu0 0.0
        %1691 = vmatpush1.msra.mxu0 0.0
        %1692 = vmatprep.subr.mxu0 0.0
        %1693 = vmatpush1.msra.mxu0 0.0
        %1694 = vmatprep.subr.mxu0 0.0
        %1695 = vmatpush1.msra.mxu0 %v1342
        %1696 = vmatprep.subr.mxu0 0.0
        %1697 = vmatpush2.msra.mxu0 0.0
        %1698 = vmatprep.subr.mxu0 0.0
        %1699 = vmatpush2.msra.mxu0 0.0
        %1700 = vmatprep.subr.mxu0 0.0
        %1701 = vmatpush2.msra.mxu0 0.0
        %1702 = vmatprep.subr.mxu0 0.0
        %1703 = vmatpush2.msra.mxu0 0.0
        %1704 = vmatprep.subr.mxu0 0.0
        %1705 = vmatpush2.msra.mxu0 0.0
        %1706 = vmatprep.subr.mxu0 0.0
        %1707 = vmatpush2.msra.mxu0 0.0
        %1708 = vmatprep.subr.mxu0 0.0
        %1709 = vmatpush2.msra.mxu0 0.0
        %1710 = vmatprep.subr.mxu0 0.0
        %1711 = vmatpush2.msra.mxu0 0.0
        %1712 = vmatprep.subr.mxu0 0.0
        %1713 = vmatpush2.msra.mxu0 0.0
        %1714 = vmatprep.subr.mxu0 0.0
        %1715 = vmatpush2.msra.mxu0 0.0
        %1716 = vmatprep.subr.mxu0 0.0
        %1717 = vmatpush2.msra.mxu0 0.0
        %1718 = vmatprep.subr.mxu0 0.0
        %1719 = vmatpush2.msra.mxu0 0.0
        %1720 = vmatprep.subr.mxu0 0.0
        %1721 = vmatpush2.msra.mxu0 0.0
        %1722 = vmatprep.subr.mxu0 0.0
        %1723 = vmatpush2.msra.mxu0 0.0
        %1724 = vmatprep.subr.mxu0 0.0
        %1725 = vmatpush2.msra.mxu0 0.0
        %1726 = vmatprep.subr.mxu0 0.0
        %1727 = vmatpush2.msra.mxu0 0.0
        %1728 = vmatprep.mubr.f32.mxu0 0.0
        %1729 = vmatmul.mubr.f32.gmra.mxu0 %v1662
        %v1730 = vpop.f32.mrf.mxu0
        %v1731 = vadd.f32 %v1585, %v1730
        %v1732 = vpop.f32.mrf.mxu0
        %1733 = vdwg.mxu0
        %v1735 = vsel %vm1319, %v1341, 0
        %1737 = vmatprep.subr.mxu0 0.0
        %1738 = vmatpush1.msra.mxu0 0.0
        %1739 = vmatprep.subr.mxu0 0.0
        %1740 = vmatpush1.msra.mxu0 0.0
        %1741 = vmatprep.subr.mxu0 0.0
        %1742 = vmatpush1.msra.mxu0 0.0
        %1743 = vmatprep.subr.mxu0 0.0
        %1744 = vmatpush1.msra.mxu0 0.0
        %1745 = vmatprep.subr.mxu0 0.0
        %1746 = vmatpush1.msra.mxu0 0.0
        %1747 = vmatprep.subr.mxu0 0.0
        %1748 = vmatpush1.msra.mxu0 0.0
        %1749 = vmatprep.subr.mxu0 0.0
        %1750 = vmatpush1.msra.mxu0 0.0
        %1751 = vmatprep.subr.mxu0 0.0
        %1752 = vmatpush1.msra.mxu0 0.0
        %1753 = vmatprep.subr.mxu0 0.0
        %1754 = vmatpush1.msra.mxu0 0.0
        %1755 = vmatprep.subr.mxu0 0.0
        %1756 = vmatpush1.msra.mxu0 0.0
        %1757 = vmatprep.subr.mxu0 0.0
        %1758 = vmatpush1.msra.mxu0 0.0
        %1759 = vmatprep.subr.mxu0 0.0
        %1760 = vmatpush1.msra.mxu0 0.0
        %1761 = vmatprep.subr.mxu0 0.0
        %1762 = vmatpush1.msra.mxu0 0.0
        %1763 = vmatprep.subr.mxu0 0.0
        %1764 = vmatpush1.msra.mxu0 0.0
        %1765 = vmatprep.subr.mxu0 0.0
        %1766 = vmatpush1.msra.mxu0 0.0
        %1767 = vmatprep.subr.mxu0 0.0
        %1768 = vmatpush1.msra.mxu0 %v1343
        %1769 = vmatprep.subr.mxu0 0.0
        %1770 = vmatpush2.msra.mxu0 0.0
        %1771 = vmatprep.subr.mxu0 0.0
        %1772 = vmatpush2.msra.mxu0 0.0
        %1773 = vmatprep.subr.mxu0 0.0
        %1774 = vmatpush2.msra.mxu0 0.0
        %1775 = vmatprep.subr.mxu0 0.0
        %1776 = vmatpush2.msra.mxu0 0.0
        %1777 = vmatprep.subr.mxu0 0.0
        %1778 = vmatpush2.msra.mxu0 0.0
        %1779 = vmatprep.subr.mxu0 0.0
        %1780 = vmatpush2.msra.mxu0 0.0
        %1781 = vmatprep.subr.mxu0 0.0
        %1782 = vmatpush2.msra.mxu0 0.0
        %1783 = vmatprep.subr.mxu0 0.0
        %1784 = vmatpush2.msra.mxu0 0.0
        %1785 = vmatprep.subr.mxu0 0.0
        %1786 = vmatpush2.msra.mxu0 0.0
        %1787 = vmatprep.subr.mxu0 0.0
        %1788 = vmatpush2.msra.mxu0 0.0
        %1789 = vmatprep.subr.mxu0 0.0
        %1790 = vmatpush2.msra.mxu0 0.0
        %1791 = vmatprep.subr.mxu0 0.0
        %1792 = vmatpush2.msra.mxu0 0.0
        %1793 = vmatprep.subr.mxu0 0.0
        %1794 = vmatpush2.msra.mxu0 0.0
        %1795 = vmatprep.subr.mxu0 0.0
        %1796 = vmatpush2.msra.mxu0 0.0
        %1797 = vmatprep.subr.mxu0 0.0
        %1798 = vmatpush2.msra.mxu0 0.0
        %1799 = vmatprep.subr.mxu0 0.0
        %1800 = vmatpush2.msra.mxu0 0.0
        %1801 = vmatprep.mubr.f32.mxu0 0.0
        %1802 = vmatmul.mubr.f32.gmra.mxu0 %v1735
        %v1803 = vpop.f32.mrf.mxu0
        %v1804 = vadd.f32 %v1658, %v1803
        %v1805 = vpop.f32.mrf.mxu0
        %1806 = vdwg.mxu0
        %v1807 = vld [vmem:[%s737] sm:$0xf]
        %v1808 = vld [vmem:[%s737 + $0x4] sm:$0xf]
        %v1809 = vld [vmem:[%s737 + $0x8] sm:$0xf]
        %v1810 = vld [vmem:[%s737 + $0xc] sm:$0xf]
        %v1811 = vld [vmem:[%s737 + $0x10] sm:$0xf]
        %v1812 = vld [vmem:[%s737 + $0x14] sm:$0xf]
        %v1813 = vld [vmem:[%s737 + $0x18] sm:$0xf]
        %v1814 = vld [vmem:[%s737 + $0x1c] sm:$0xf]
        %v1815 = vld [vmem:[%s737 + $0x20] sm:$0xf]
        %v1816 = vld [vmem:[%s737 + $0x24] sm:$0xf]
        %v1817 = vld [vmem:[%s737 + $0x28] sm:$0xf]
        %v1818 = vld [vmem:[%s737 + $0x2c] sm:$0xf]
        %v1819 = vld [vmem:[%s737 + $0x30] sm:$0xf]
        %v1820 = vld [vmem:[%s737 + $0x34] sm:$0xf]
        %v1821 = vld [vmem:[%s737 + $0x38] sm:$0xf]
        %v1822 = vld [vmem:[%s737 + $0x3c] sm:$0xf]
        %v1823 = vld [vmem:[%s740] sm:$0x1]
        %v1824 = vpack.c.bf16 %v1804, %v1731
        %v1826 = vlaneseq
        %v1827 = vshrl.u32 %v1826, 7
        %v1828 = vsub.s32 0, %v1827
        %v1829 = vrot.slane %v1823, %v1828
        %v1847 = vunpack.c.l.b16 %v1807
        %v1848 = vunpack.c.l.b16 %v1808
        %v1849 = vunpack.c.l.b16 %v1809
        %v1850 = vunpack.c.l.b16 %v1810
        %v1851 = vunpack.c.l.b16 %v1811
        %v1852 = vunpack.c.l.b16 %v1812
        %v1853 = vunpack.c.l.b16 %v1813
        %v1854 = vunpack.c.l.b16 %v1814
        %v1855 = vunpack.c.l.b16 %v1815
        %v1856 = vunpack.c.l.b16 %v1816
        %v1857 = vunpack.c.l.b16 %v1817
        %v1858 = vunpack.c.l.b16 %v1818
        %v1859 = vunpack.c.l.b16 %v1819
        %v1860 = vunpack.c.l.b16 %v1820
        %v1861 = vunpack.c.l.b16 %v1821
        %v1862 = vunpack.c.l.b16 %v1822
        %v1863 = vpack.c.b16 %v1848, %v1847
        %v1864 = vpack.c.b16 %v1850, %v1849
        %v1865 = vpack.c.b16 %v1852, %v1851
        %v1866 = vpack.c.b16 %v1854, %v1853
        %v1867 = vpack.c.b16 %v1856, %v1855
        %v1868 = vpack.c.b16 %v1858, %v1857
        %v1869 = vpack.c.b16 %v1860, %v1859
        %v1870 = vpack.c.b16 %v1862, %v1861
        %1879 = vmatprep.subr.bf16.mxu0 0
        %1880 = vmatpush1.bf16.msra.mxu0 %v1870
        %1881 = vmatprep.subr.bf16.mxu0 0
        %1882 = vmatpush1.bf16.msra.mxu0 %v1869
        %1883 = vmatprep.subr.bf16.mxu0 0
        %1884 = vmatpush1.bf16.msra.mxu0 %v1868
        %1885 = vmatprep.subr.bf16.mxu0 0
        %1886 = vmatpush1.bf16.msra.mxu0 %v1867
        %1887 = vmatprep.subr.bf16.mxu0 0
        %1888 = vmatpush1.bf16.msra.mxu0 %v1866
        %1889 = vmatprep.subr.bf16.mxu0 0
        %1890 = vmatpush1.bf16.msra.mxu0 %v1865
        %1891 = vmatprep.subr.bf16.mxu0 0
        %1892 = vmatpush1.bf16.msra.mxu0 %v1864
        %1893 = vmatprep.subr.bf16.mxu0 0
        %1894 = vmatpush1.bf16.msra.mxu0 %v1863
        %1895 = vmatprep.subr.bf16.mxu0 0
        %1896 = vmatpush2.bf16.msra.mxu0 0
        %1897 = vmatprep.subr.bf16.mxu0 0
        %1898 = vmatpush2.bf16.msra.mxu0 0
        %1899 = vmatprep.subr.bf16.mxu0 0
        %1900 = vmatpush2.bf16.msra.mxu0 0
        %1901 = vmatprep.subr.bf16.mxu0 0
        %1902 = vmatpush2.bf16.msra.mxu0 0
        %1903 = vmatprep.subr.bf16.mxu0 0
        %1904 = vmatpush2.bf16.msra.mxu0 0
        %1905 = vmatprep.subr.bf16.mxu0 0
        %1906 = vmatpush2.bf16.msra.mxu0 0
        %1907 = vmatprep.subr.bf16.mxu0 0
        %1908 = vmatpush2.bf16.msra.mxu0 0
        %1909 = vmatprep.subr.bf16.mxu0 0
        %1910 = vmatpush2.bf16.msra.mxu0 0
        %1911 = vmatprep.mubr.bf16.mxu0 0
        %1912 = vmatmul.mubr.bf16.gmra.mxu0 %v1824
        %v1913 = vpop.f32.mrf.mxu0
        %v1914 = vadd.f32 %v1829, %v1913
        %v1915 = vpop.f32.mrf.mxu0
        %v1916 = vpop.f32.mrf.mxu0
        %v1917 = vadd.f32 %v1829, %v1916
        %v1918 = vpop.f32.mrf.mxu0
        %1919 = vdwg.mxu0
        %v1920 = vadd.f32 %v797, %v1914
        %v1921 = vadd.f32 %v798, %v1917
        %1922 = vadd.xlane.f32.xlu0 %v1920
        %v1923 = vpop.xlane.xlu0 %1922
        %1924 = vadd.xlane.f32.xlu0 %v1921
        %v1925 = vpop.xlane.xlu0 %1924
        %v1926 = vmul.f32 %v1923, %v807
        %v1927 = vmul.f32 %v1925, %v807
        %v1928 = vsub.f32 %v1920, %v1926
        %v1929 = vsub.f32 %v1921, %v1927
        %v1930 = vmul.f32 %v1928, %v1928
        %v1931 = vmul.f32 %v1929, %v1929
        %1932 = vadd.xlane.f32.xlu0 %v1930
        %v1933 = vpop.xlane.xlu0 %1932
        %1934 = vadd.xlane.f32.xlu0 %v1931
        %v1935 = vpop.xlane.xlu0 %1934
        %v1936 = vmul.f32 %v1933, %v807
        %v1937 = vmul.f32 %v1935, %v807
        %v1938 = vadd.f32 %v1936, 1e-05
        %v1939 = vadd.f32 %v1937, 1e-05
        %v1940 = vrsqrt.pop %v1938
        %v1941 = vrsqrt.pop %v1939
        %v1942 = vmul.f32 %v1928, %v1940
        %v1943 = vmul.f32 %v1929, %v1941
        %v1944 = vlaneseq
        %v1945 = vshrl.u32 %v1944, 7
        %v1946 = vsub.s32 3, %v1945
        %v1947 = vrot.slane %v801, %v1946
        %v1948 = vmul.f32 %v1942, %v1947
        %v1949 = vmul.f32 %v1943, %v1947
        %v1950 = vlaneseq
        %v1951 = vshrl.u32 %v1950, 7
        %v1952 = vsub.s32 3, %v1951
        %v1953 = vrot.slane %v802, %v1952
        %v1954 = vadd.f32 %v1948, %v1953
        %v1955 = vadd.f32 %v1949, %v1953
        %v1956 = vld [vmem:[%s629] sm:$0xff]
        %v1957 = vld [vmem:[%s629 + $0x8] sm:$0xff]
        %v1958 = vld [vmem:[%s629 + $0x10] sm:$0xff]
        %v1959 = vld [vmem:[%s629 + $0x18] sm:$0xff]
        %v1960 = vld [vmem:[%s629 + $0x20] sm:$0xff]
        %v1961 = vld [vmem:[%s629 + $0x28] sm:$0xff]
        %v1962 = vld [vmem:[%s629 + $0x30] sm:$0xff]
        %v1963 = vld [vmem:[%s629 + $0x38] sm:$0xff]
        %v1964 = vld [vmem:[%s629 + $0x40] sm:$0xff]
        %v1965 = vld [vmem:[%s629 + $0x48] sm:$0xff]
        %v1966 = vld [vmem:[%s629 + $0x50] sm:$0xff]
        %v1967 = vld [vmem:[%s629 + $0x58] sm:$0xff]
        %v1968 = vld [vmem:[%s629 + $0x60] sm:$0xff]
        %v1969 = vld [vmem:[%s629 + $0x68] sm:$0xff]
        %v1970 = vld [vmem:[%s629 + $0x70] sm:$0xff]
        %v1971 = vld [vmem:[%s629 + $0x78] sm:$0xff]
        %v1972 = vld [vmem:[%s629 + $0x80] sm:$0xff]
        %v1973 = vld [vmem:[%s629 + $0x88] sm:$0xff]
        %v1974 = vld [vmem:[%s629 + $0x90] sm:$0xff]
        %v1975 = vld [vmem:[%s629 + $0x98] sm:$0xff]
        %v1976 = vld [vmem:[%s629 + $0xa0] sm:$0xff]
        %v1977 = vld [vmem:[%s629 + $0xa8] sm:$0xff]
        %v1978 = vld [vmem:[%s629 + $0xb0] sm:$0xff]
        %v1979 = vld [vmem:[%s629 + $0xb8] sm:$0xff]
        %v1980 = vld [vmem:[%s629 + $0xc0] sm:$0xff]
        %v1981 = vld [vmem:[%s629 + $0xc8] sm:$0xff]
        %v1982 = vld [vmem:[%s629 + $0xd0] sm:$0xff]
        %v1983 = vld [vmem:[%s629 + $0xd8] sm:$0xff]
        %v1984 = vld [vmem:[%s629 + $0xe0] sm:$0xff]
        %v1985 = vld [vmem:[%s629 + $0xe8] sm:$0xff]
        %v1986 = vld [vmem:[%s629 + $0xf0] sm:$0xff]
        %v1987 = vld [vmem:[%s629 + $0xf8] sm:$0xff]
        %v1988 = vld [vmem:[%s629 + $0x100] sm:$0xff]
        %v1989 = vld [vmem:[%s629 + $0x108] sm:$0xff]
        %v1990 = vld [vmem:[%s629 + $0x110] sm:$0xff]
        %v1991 = vld [vmem:[%s629 + $0x118] sm:$0xff]
        %v1992 = vld [vmem:[%s629 + $0x120] sm:$0xff]
        %v1993 = vld [vmem:[%s629 + $0x128] sm:$0xff]
        %v1994 = vld [vmem:[%s629 + $0x130] sm:$0xff]
        %v1995 = vld [vmem:[%s629 + $0x138] sm:$0xff]
        %v1996 = vld [vmem:[%s629 + $0x140] sm:$0xff]
        %v1997 = vld [vmem:[%s629 + $0x148] sm:$0xff]
        %v1998 = vld [vmem:[%s629 + $0x150] sm:$0xff]
        %v1999 = vld [vmem:[%s629 + $0x158] sm:$0xff]
        %v2000 = vld [vmem:[%s629 + $0x160] sm:$0xff]
        %v2001 = vld [vmem:[%s629 + $0x168] sm:$0xff]
        %v2002 = vld [vmem:[%s629 + $0x170] sm:$0xff]
        %v2003 = vld [vmem:[%s629 + $0x178] sm:$0xff]
        %v2004 = vld [vmem:[%s629 + $0x180] sm:$0xff]
        %v2005 = vld [vmem:[%s629 + $0x188] sm:$0xff]
        %v2006 = vld [vmem:[%s629 + $0x190] sm:$0xff]
        %v2007 = vld [vmem:[%s629 + $0x198] sm:$0xff]
        %v2008 = vld [vmem:[%s629 + $0x1a0] sm:$0xff]
        %v2009 = vld [vmem:[%s629 + $0x1a8] sm:$0xff]
        %v2010 = vld [vmem:[%s629 + $0x1b0] sm:$0xff]
        %v2011 = vld [vmem:[%s629 + $0x1b8] sm:$0xff]
        %v2012 = vld [vmem:[%s629 + $0x1c0] sm:$0xff]
        %v2013 = vld [vmem:[%s629 + $0x1c8] sm:$0xff]
        %v2014 = vld [vmem:[%s629 + $0x1d0] sm:$0xff]
        %v2015 = vld [vmem:[%s629 + $0x1d8] sm:$0xff]
        %v2016 = vld [vmem:[%s629 + $0x1e0] sm:$0xff]
        %v2017 = vld [vmem:[%s629 + $0x1e8] sm:$0xff]
        %v2018 = vld [vmem:[%s629 + $0x1f0] sm:$0xff]
        %v2019 = vld [vmem:[%s629 + $0x1f8] sm:$0xff]
        %v2020 = vld [vmem:[%s744] sm:$0xff]
        %v2021 = vpack.c.bf16 %v1955, %v1954
        %v2023 = vlaneseq
        %v2024 = vshrl.u32 %v2023, 7
        %v2025 = vsub.s32 0, %v2024
        %v2026 = vrot.slane %v2020, %v2025
        %v2027 = vlaneseq
        %v2028 = vshrl.u32 %v2027, 7
        %v2029 = vsub.s32 1, %v2028
        %v2030 = vrot.slane %v2020, %v2029
        %v2031 = vlaneseq
        %v2032 = vshrl.u32 %v2031, 7
        %v2033 = vsub.s32 2, %v2032
        %v2034 = vrot.slane %v2020, %v2033
        %v2035 = vlaneseq
        %v2036 = vshrl.u32 %v2035, 7
        %v2037 = vsub.s32 3, %v2036
        %v2038 = vrot.slane %v2020, %v2037
        %v2039 = vlaneseq
        %v2040 = vshrl.u32 %v2039, 7
        %v2041 = vsub.s32 4, %v2040
        %v2042 = vrot.slane %v2020, %v2041
        %v2043 = vlaneseq
        %v2044 = vshrl.u32 %v2043, 7
        %v2045 = vsub.s32 5, %v2044
        %v2046 = vrot.slane %v2020, %v2045
        %v2047 = vlaneseq
        %v2048 = vshrl.u32 %v2047, 7
        %v2049 = vsub.s32 6, %v2048
        %v2050 = vrot.slane %v2020, %v2049
        %v2051 = vlaneseq
        %v2052 = vshrl.u32 %v2051, 7
        %v2053 = vsub.s32 7, %v2052
        %v2054 = vrot.slane %v2020, %v2053
        %v2127 = vunpack.c.l.b16 %v1956
        %v2128 = vunpack.c.h.b16 %v1956
        %v2129 = vunpack.c.l.b16 %v1957
        %v2130 = vunpack.c.h.b16 %v1957
        %v2131 = vunpack.c.l.b16 %v1958
        %v2132 = vunpack.c.h.b16 %v1958
        %v2133 = vunpack.c.l.b16 %v1959
        %v2134 = vunpack.c.h.b16 %v1959
        %v2135 = vunpack.c.l.b16 %v1960
        %v2136 = vunpack.c.h.b16 %v1960
        %v2137 = vunpack.c.l.b16 %v1961
        %v2138 = vunpack.c.h.b16 %v1961
        %v2139 = vunpack.c.l.b16 %v1962
        %v2140 = vunpack.c.h.b16 %v1962
        %v2141 = vunpack.c.l.b16 %v1963
        %v2142 = vunpack.c.h.b16 %v1963
        %v2143 = vunpack.c.l.b16 %v1964
        %v2144 = vunpack.c.h.b16 %v1964
        %v2145 = vunpack.c.l.b16 %v1965
        %v2146 = vunpack.c.h.b16 %v1965
        %v2147 = vunpack.c.l.b16 %v1966
        %v2148 = vunpack.c.h.b16 %v1966
        %v2149 = vunpack.c.l.b16 %v1967
        %v2150 = vunpack.c.h.b16 %v1967
        %v2151 = vunpack.c.l.b16 %v1968
        %v2152 = vunpack.c.h.b16 %v1968
        %v2153 = vunpack.c.l.b16 %v1969
        %v2154 = vunpack.c.h.b16 %v1969
        %v2155 = vunpack.c.l.b16 %v1970
        %v2156 = vunpack.c.h.b16 %v1970
        %v2157 = vunpack.c.l.b16 %v1971
        %v2158 = vunpack.c.h.b16 %v1971
        %v2159 = vunpack.c.l.b16 %v1972
        %v2160 = vunpack.c.h.b16 %v1972
        %v2161 = vunpack.c.l.b16 %v1973
        %v2162 = vunpack.c.h.b16 %v1973
        %v2163 = vunpack.c.l.b16 %v1974
        %v2164 = vunpack.c.h.b16 %v1974
        %v2165 = vunpack.c.l.b16 %v1975
        %v2166 = vunpack.c.h.b16 %v1975
        %v2167 = vunpack.c.l.b16 %v1976
        %v2168 = vunpack.c.h.b16 %v1976
        %v2169 = vunpack.c.l.b16 %v1977
        %v2170 = vunpack.c.h.b16 %v1977
        %v2171 = vunpack.c.l.b16 %v1978
        %v2172 = vunpack.c.h.b16 %v1978
        %v2173 = vunpack.c.l.b16 %v1979
        %v2174 = vunpack.c.h.b16 %v1979
        %v2175 = vunpack.c.l.b16 %v1980
        %v2176 = vunpack.c.h.b16 %v1980
        %v2177 = vunpack.c.l.b16 %v1981
        %v2178 = vunpack.c.h.b16 %v1981
        %v2179 = vunpack.c.l.b16 %v1982
        %v2180 = vunpack.c.h.b16 %v1982
        %v2181 = vunpack.c.l.b16 %v1983
        %v2182 = vunpack.c.h.b16 %v1983
        %v2183 = vunpack.c.l.b16 %v1984
        %v2184 = vunpack.c.h.b16 %v1984
        %v2185 = vunpack.c.l.b16 %v1985
        %v2186 = vunpack.c.h.b16 %v1985
        %v2187 = vunpack.c.l.b16 %v1986
        %v2188 = vunpack.c.h.b16 %v1986
        %v2189 = vunpack.c.l.b16 %v1987
        %v2190 = vunpack.c.h.b16 %v1987
        %v2191 = vunpack.c.l.b16 %v1988
        %v2192 = vunpack.c.h.b16 %v1988
        %v2193 = vunpack.c.l.b16 %v1989
        %v2194 = vunpack.c.h.b16 %v1989
        %v2195 = vunpack.c.l.b16 %v1990
        %v2196 = vunpack.c.h.b16 %v1990
        %v2197 = vunpack.c.l.b16 %v1991
        %v2198 = vunpack.c.h.b16 %v1991
        %v2199 = vunpack.c.l.b16 %v1992
        %v2200 = vunpack.c.h.b16 %v1992
        %v2201 = vunpack.c.l.b16 %v1993
        %v2202 = vunpack.c.h.b16 %v1993
        %v2203 = vunpack.c.l.b16 %v1994
        %v2204 = vunpack.c.h.b16 %v1994
        %v2205 = vunpack.c.l.b16 %v1995
        %v2206 = vunpack.c.h.b16 %v1995
        %v2207 = vunpack.c.l.b16 %v1996
        %v2208 = vunpack.c.h.b16 %v1996
        %v2209 = vunpack.c.l.b16 %v1997
        %v2210 = vunpack.c.h.b16 %v1997
        %v2211 = vunpack.c.l.b16 %v1998
        %v2212 = vunpack.c.h.b16 %v1998
        %v2213 = vunpack.c.l.b16 %v1999
        %v2214 = vunpack.c.h.b16 %v1999
        %v2215 = vunpack.c.l.b16 %v2000
        %v2216 = vunpack.c.h.b16 %v2000
        %v2217 = vunpack.c.l.b16 %v2001
        %v2218 = vunpack.c.h.b16 %v2001
        %v2219 = vunpack.c.l.b16 %v2002
        %v2220 = vunpack.c.h.b16 %v2002
        %v2221 = vunpack.c.l.b16 %v2003
        %v2222 = vunpack.c.h.b16 %v2003
        %v2223 = vunpack.c.l.b16 %v2004
        %v2224 = vunpack.c.h.b16 %v2004
        %v2225 = vunpack.c.l.b16 %v2005
        %v2226 = vunpack.c.h.b16 %v2005
        %v2227 = vunpack.c.l.b16 %v2006
        %v2228 = vunpack.c.h.b16 %v2006
        %v2229 = vunpack.c.l.b16 %v2007
        %v2230 = vunpack.c.h.b16 %v2007
        %v2231 = vunpack.c.l.b16 %v2008
        %v2232 = vunpack.c.h.b16 %v2008
        %v2233 = vunpack.c.l.b16 %v2009
        %v2234 = vunpack.c.h.b16 %v2009
        %v2235 = vunpack.c.l.b16 %v2010
        %v2236 = vunpack.c.h.b16 %v2010
        %v2237 = vunpack.c.l.b16 %v2011
        %v2238 = vunpack.c.h.b16 %v2011
        %v2239 = vunpack.c.l.b16 %v2012
        %v2240 = vunpack.c.h.b16 %v2012
        %v2241 = vunpack.c.l.b16 %v2013
        %v2242 = vunpack.c.h.b16 %v2013
        %v2243 = vunpack.c.l.b16 %v2014
        %v2244 = vunpack.c.h.b16 %v2014
        %v2245 = vunpack.c.l.b16 %v2015
        %v2246 = vunpack.c.h.b16 %v2015
        %v2247 = vunpack.c.l.b16 %v2016
        %v2248 = vunpack.c.h.b16 %v2016
        %v2249 = vunpack.c.l.b16 %v2017
        %v2250 = vunpack.c.h.b16 %v2017
        %v2251 = vunpack.c.l.b16 %v2018
        %v2252 = vunpack.c.h.b16 %v2018
        %v2253 = vunpack.c.l.b16 %v2019
        %v2254 = vunpack.c.h.b16 %v2019
        %v2255 = vpack.c.b16 %v2135, %v2127
        %v2256 = vpack.c.b16 %v2136, %v2128
        %v2257 = vpack.c.b16 %v2137, %v2129
        %v2258 = vpack.c.b16 %v2138, %v2130
        %v2259 = vpack.c.b16 %v2139, %v2131
        %v2260 = vpack.c.b16 %v2140, %v2132
        %v2261 = vpack.c.b16 %v2141, %v2133
        %v2262 = vpack.c.b16 %v2142, %v2134
        %v2263 = vpack.c.b16 %v2151, %v2143
        %v2264 = vpack.c.b16 %v2152, %v2144
        %v2265 = vpack.c.b16 %v2153, %v2145
        %v2266 = vpack.c.b16 %v2154, %v2146
        %v2267 = vpack.c.b16 %v2155, %v2147
        %v2268 = vpack.c.b16 %v2156, %v2148
        %v2269 = vpack.c.b16 %v2157, %v2149
        %v2270 = vpack.c.b16 %v2158, %v2150
        %v2271 = vpack.c.b16 %v2167, %v2159
        %v2272 = vpack.c.b16 %v2168, %v2160
        %v2273 = vpack.c.b16 %v2169, %v2161
        %v2274 = vpack.c.b16 %v2170, %v2162
        %v2275 = vpack.c.b16 %v2171, %v2163
        %v2276 = vpack.c.b16 %v2172, %v2164
        %v2277 = vpack.c.b16 %v2173, %v2165
        %v2278 = vpack.c.b16 %v2174, %v2166
        %v2279 = vpack.c.b16 %v2183, %v2175
        %v2280 = vpack.c.b16 %v2184, %v2176
        %v2281 = vpack.c.b16 %v2185, %v2177
        %v2282 = vpack.c.b16 %v2186, %v2178
        %v2283 = vpack.c.b16 %v2187, %v2179
        %v2284 = vpack.c.b16 %v2188, %v2180
        %v2285 = vpack.c.b16 %v2189, %v2181
        %v2286 = vpack.c.b16 %v2190, %v2182
        %v2287 = vpack.c.b16 %v2199, %v2191
        %v2288 = vpack.c.b16 %v2200, %v2192
        %v2289 = vpack.c.b16 %v2201, %v2193
        %v2290 = vpack.c.b16 %v2202, %v2194
        %v2291 = vpack.c.b16 %v2203, %v2195
        %v2292 = vpack.c.b16 %v2204, %v2196
        %v2293 = vpack.c.b16 %v2205, %v2197
        %v2294 = vpack.c.b16 %v2206, %v2198
        %v2295 = vpack.c.b16 %v2215, %v2207
        %v2296 = vpack.c.b16 %v2216, %v2208
        %v2297 = vpack.c.b16 %v2217, %v2209
        %v2298 = vpack.c.b16 %v2218, %v2210
        %v2299 = vpack.c.b16 %v2219, %v2211
        %v2300 = vpack.c.b16 %v2220, %v2212
        %v2301 = vpack.c.b16 %v2221, %v2213
        %v2302 = vpack.c.b16 %v2222, %v2214
        %v2303 = vpack.c.b16 %v2231, %v2223
        %v2304 = vpack.c.b16 %v2232, %v2224
        %v2305 = vpack.c.b16 %v2233, %v2225
        %v2306 = vpack.c.b16 %v2234, %v2226
        %v2307 = vpack.c.b16 %v2235, %v2227
        %v2308 = vpack.c.b16 %v2236, %v2228
        %v2309 = vpack.c.b16 %v2237, %v2229
        %v2310 = vpack.c.b16 %v2238, %v2230
        %v2311 = vpack.c.b16 %v2247, %v2239
        %v2312 = vpack.c.b16 %v2248, %v2240
        %v2313 = vpack.c.b16 %v2249, %v2241
        %v2314 = vpack.c.b16 %v2250, %v2242
        %v2315 = vpack.c.b16 %v2251, %v2243
        %v2316 = vpack.c.b16 %v2252, %v2244
        %v2317 = vpack.c.b16 %v2253, %v2245
        %v2318 = vpack.c.b16 %v2254, %v2246
        %2383 = vmatprep.subr.bf16.mxu0 %v2312
        %2384 = vmatpush1.bf16.msra.mxu0 %v2311
        %2385 = vmatprep.subr.bf16.mxu0 %v2304
        %2386 = vmatpush1.bf16.msra.mxu0 %v2303
        %2387 = vmatprep.subr.bf16.mxu0 %v2296
        %2388 = vmatpush1.bf16.msra.mxu0 %v2295
        %2389 = vmatprep.subr.bf16.mxu0 %v2288
        %2390 = vmatpush1.bf16.msra.mxu0 %v2287
        %2391 = vmatprep.subr.bf16.mxu0 %v2280
        %2392 = vmatpush1.bf16.msra.mxu0 %v2279
        %2393 = vmatprep.subr.bf16.mxu0 %v2272
        %2394 = vmatpush1.bf16.msra.mxu0 %v2271
        %2395 = vmatprep.subr.bf16.mxu0 %v2264
        %2396 = vmatpush1.bf16.msra.mxu0 %v2263
        %2397 = vmatprep.subr.bf16.mxu0 %v2256
        %2398 = vmatpush1.bf16.msra.mxu0 %v2255
        %2399 = vmatprep.subr.bf16.mxu0 0
        %2400 = vmatpush2.bf16.msra.mxu0 0
        %2401 = vmatprep.subr.bf16.mxu0 0
        %2402 = vmatpush2.bf16.msra.mxu0 0
        %2403 = vmatprep.subr.bf16.mxu0 0
        %2404 = vmatpush2.bf16.msra.mxu0 0
        %2405 = vmatprep.subr.bf16.mxu0 0
        %2406 = vmatpush2.bf16.msra.mxu0 0
        %2407 = vmatprep.subr.bf16.mxu0 0
        %2408 = vmatpush2.bf16.msra.mxu0 0
        %2409 = vmatprep.subr.bf16.mxu0 0
        %2410 = vmatpush2.bf16.msra.mxu0 0
        %2411 = vmatprep.subr.bf16.mxu0 0
        %2412 = vmatpush2.bf16.msra.mxu0 0
        %2413 = vmatprep.subr.bf16.mxu0 0
        %2414 = vmatpush2.bf16.msra.mxu0 0
        %2415 = vmatprep.mubr.bf16.mxu0 0
        %2416 = vmatmul.mubr.bf16.gmra.mxu0 %v2021
        %v2417 = vpop.f32.mrf.mxu0
        %v2418 = vadd.f32 %v2026, %v2417
        %v2419 = vpop.f32.mrf.mxu0
        %v2420 = vadd.f32 %v2030, %v2419
        %v2421 = vpop.f32.mrf.mxu0
        %v2422 = vadd.f32 %v2026, %v2421
        %v2423 = vpop.f32.mrf.mxu0
        %v2424 = vadd.f32 %v2030, %v2423
        %2425 = vdwg.mxu0
        %2426 = vmatprep.subr.bf16.mxu0 %v2314
        %2427 = vmatpush1.bf16.msra.mxu0 %v2313
        %2428 = vmatprep.subr.bf16.mxu0 %v2306
        %2429 = vmatpush1.bf16.msra.mxu0 %v2305
        %2430 = vmatprep.subr.bf16.mxu0 %v2298
        %2431 = vmatpush1.bf16.msra.mxu0 %v2297
        %2432 = vmatprep.subr.bf16.mxu0 %v2290
        %2433 = vmatpush1.bf16.msra.mxu0 %v2289
        %2434 = vmatprep.subr.bf16.mxu0 %v2282
        %2435 = vmatpush1.bf16.msra.mxu0 %v2281
        %2436 = vmatprep.subr.bf16.mxu0 %v2274
        %2437 = vmatpush1.bf16.msra.mxu0 %v2273
        %2438 = vmatprep.subr.bf16.mxu0 %v2266
        %2439 = vmatpush1.bf16.msra.mxu0 %v2265
        %2440 = vmatprep.subr.bf16.mxu0 %v2258
        %2441 = vmatpush1.bf16.msra.mxu0 %v2257
        %2442 = vmatprep.subr.bf16.mxu0 0
        %2443 = vmatpush2.bf16.msra.mxu0 0
        %2444 = vmatprep.subr.bf16.mxu0 0
        %2445 = vmatpush2.bf16.msra.mxu0 0
        %2446 = vmatprep.subr.bf16.mxu0 0
        %2447 = vmatpush2.bf16.msra.mxu0 0
        %2448 = vmatprep.subr.bf16.mxu0 0
        %2449 = vmatpush2.bf16.msra.mxu0 0
        %2450 = vmatprep.subr.bf16.mxu0 0
        %2451 = vmatpush2.bf16.msra.mxu0 0
        %2452 = vmatprep.subr.bf16.mxu0 0
        %2453 = vmatpush2.bf16.msra.mxu0 0
        %2454 = vmatprep.subr.bf16.mxu0 0
        %2455 = vmatpush2.bf16.msra.mxu0 0
        %2456 = vmatprep.subr.bf16.mxu0 0
        %2457 = vmatpush2.bf16.msra.mxu0 0
        %2458 = vmatprep.mubr.bf16.mxu0 0
        %2459 = vmatmul.mubr.bf16.gmra.mxu0 %v2021
        %v2460 = vpop.f32.mrf.mxu0
        %v2461 = vadd.f32 %v2034, %v2460
        %v2462 = vpop.f32.mrf.mxu0
        %v2463 = vadd.f32 %v2038, %v2462
        %v2464 = vpop.f32.mrf.mxu0
        %v2465 = vadd.f32 %v2034, %v2464
        %v2466 = vpop.f32.mrf.mxu0
        %v2467 = vadd.f32 %v2038, %v2466
        %2468 = vdwg.mxu0
        %2469 = vmatprep.subr.bf16.mxu0 %v2316
        %2470 = vmatpush1.bf16.msra.mxu0 %v2315
        %2471 = vmatprep.subr.bf16.mxu0 %v2308
        %2472 = vmatpush1.bf16.msra.mxu0 %v2307
        %2473 = vmatprep.subr.bf16.mxu0 %v2300
        %2474 = vmatpush1.bf16.msra.mxu0 %v2299
        %2475 = vmatprep.subr.bf16.mxu0 %v2292
        %2476 = vmatpush1.bf16.msra.mxu0 %v2291
        %2477 = vmatprep.subr.bf16.mxu0 %v2284
        %2478 = vmatpush1.bf16.msra.mxu0 %v2283
        %2479 = vmatprep.subr.bf16.mxu0 %v2276
        %2480 = vmatpush1.bf16.msra.mxu0 %v2275
        %2481 = vmatprep.subr.bf16.mxu0 %v2268
        %2482 = vmatpush1.bf16.msra.mxu0 %v2267
        %2483 = vmatprep.subr.bf16.mxu0 %v2260
        %2484 = vmatpush1.bf16.msra.mxu0 %v2259
        %2485 = vmatprep.subr.bf16.mxu0 0
        %2486 = vmatpush2.bf16.msra.mxu0 0
        %2487 = vmatprep.subr.bf16.mxu0 0
        %2488 = vmatpush2.bf16.msra.mxu0 0
        %2489 = vmatprep.subr.bf16.mxu0 0
        %2490 = vmatpush2.bf16.msra.mxu0 0
        %2491 = vmatprep.subr.bf16.mxu0 0
        %2492 = vmatpush2.bf16.msra.mxu0 0
        %2493 = vmatprep.subr.bf16.mxu0 0
        %2494 = vmatpush2.bf16.msra.mxu0 0
        %2495 = vmatprep.subr.bf16.mxu0 0
        %2496 = vmatpush2.bf16.msra.mxu0 0
        %2497 = vmatprep.subr.bf16.mxu0 0
        %2498 = vmatpush2.bf16.msra.mxu0 0
        %2499 = vmatprep.subr.bf16.mxu0 0
        %2500 = vmatpush2.bf16.msra.mxu0 0
        %2501 = vmatprep.mubr.bf16.mxu0 0
        %2502 = vmatmul.mubr.bf16.gmra.mxu0 %v2021
        %v2503 = vpop.f32.mrf.mxu0
        %v2504 = vadd.f32 %v2042, %v2503
        %v2505 = vpop.f32.mrf.mxu0
        %v2506 = vadd.f32 %v2046, %v2505
        %v2507 = vpop.f32.mrf.mxu0
        %v2508 = vadd.f32 %v2042, %v2507
        %v2509 = vpop.f32.mrf.mxu0
        %v2510 = vadd.f32 %v2046, %v2509
        %2511 = vdwg.mxu0
        %2512 = vmatprep.subr.bf16.mxu0 %v2318
        %2513 = vmatpush1.bf16.msra.mxu0 %v2317
        %2514 = vmatprep.subr.bf16.mxu0 %v2310
        %2515 = vmatpush1.bf16.msra.mxu0 %v2309
        %2516 = vmatprep.subr.bf16.mxu0 %v2302
        %2517 = vmatpush1.bf16.msra.mxu0 %v2301
        %2518 = vmatprep.subr.bf16.mxu0 %v2294
        %2519 = vmatpush1.bf16.msra.mxu0 %v2293
        %2520 = vmatprep.subr.bf16.mxu0 %v2286
        %2521 = vmatpush1.bf16.msra.mxu0 %v2285
        %2522 = vmatprep.subr.bf16.mxu0 %v2278
        %2523 = vmatpush1.bf16.msra.mxu0 %v2277
        %2524 = vmatprep.subr.bf16.mxu0 %v2270
        %2525 = vmatpush1.bf16.msra.mxu0 %v2269
        %2526 = vmatprep.subr.bf16.mxu0 %v2262
        %2527 = vmatpush1.bf16.msra.mxu0 %v2261
        %2528 = vmatprep.subr.bf16.mxu0 0
        %2529 = vmatpush2.bf16.msra.mxu0 0
        %2530 = vmatprep.subr.bf16.mxu0 0
        %2531 = vmatpush2.bf16.msra.mxu0 0
        %2532 = vmatprep.subr.bf16.mxu0 0
        %2533 = vmatpush2.bf16.msra.mxu0 0
        %2534 = vmatprep.subr.bf16.mxu0 0
        %2535 = vmatpush2.bf16.msra.mxu0 0
        %2536 = vmatprep.subr.bf16.mxu0 0
        %2537 = vmatpush2.bf16.msra.mxu0 0
        %2538 = vmatprep.subr.bf16.mxu0 0
        %2539 = vmatpush2.bf16.msra.mxu0 0
        %2540 = vmatprep.subr.bf16.mxu0 0
        %2541 = vmatpush2.bf16.msra.mxu0 0
        %2542 = vmatprep.subr.bf16.mxu0 0
        %2543 = vmatpush2.bf16.msra.mxu0 0
        %2544 = vmatprep.mubr.bf16.mxu0 0
        %2545 = vmatmul.mubr.bf16.gmra.mxu0 %v2021
        %v2546 = vpop.f32.mrf.mxu0
        %v2547 = vadd.f32 %v2050, %v2546
        %v2548 = vpop.f32.mrf.mxu0
        %v2549 = vadd.f32 %v2054, %v2548
        %v2550 = vpop.f32.mrf.mxu0
        %v2551 = vadd.f32 %v2050, %v2550
        %v2552 = vpop.f32.mrf.mxu0
        %v2553 = vadd.f32 %v2054, %v2552
        %2554 = vdwg.mxu0
        %v2555 = vmul.f32 %v2504, 0.5
        %v2556 = vmul.f32 %v2506, 0.5
        %v2557 = vmul.f32 %v2547, 0.5
        %v2558 = vmul.f32 %v2549, 0.5
        %v2559 = vmul.f32 %v2508, 0.5
        %v2560 = vmul.f32 %v2510, 0.5
        %v2561 = vmul.f32 %v2551, 0.5
        %v2562 = vmul.f32 %v2553, 0.5
        %v2563 = vmul.f32 %v2504, 0.044715
        %v2564 = vmul.f32 %v2506, 0.044715
        %v2565 = vmul.f32 %v2547, 0.044715
        %v2566 = vmul.f32 %v2549, 0.044715
        %v2567 = vmul.f32 %v2508, 0.044715
        %v2568 = vmul.f32 %v2510, 0.044715
        %v2569 = vmul.f32 %v2551, 0.044715
        %v2570 = vmul.f32 %v2553, 0.044715
        %v2571 = vmul.f32 %v2563, %v2504
        %v2572 = vmul.f32 %v2564, %v2506
        %v2573 = vmul.f32 %v2565, %v2547
        %v2574 = vmul.f32 %v2566, %v2549
        %v2575 = vmul.f32 %v2567, %v2508
        %v2576 = vmul.f32 %v2568, %v2510
        %v2577 = vmul.f32 %v2569, %v2551
        %v2578 = vmul.f32 %v2570, %v2553
        %v2579 = vmul.f32 %v2571, %v2504
        %v2580 = vmul.f32 %v2572, %v2506
        %v2581 = vmul.f32 %v2573, %v2547
        %v2582 = vmul.f32 %v2574, %v2549
        %v2583 = vmul.f32 %v2575, %v2508
        %v2584 = vmul.f32 %v2576, %v2510
        %v2585 = vmul.f32 %v2577, %v2551
        %v2586 = vmul.f32 %v2578, %v2553
        %v2587 = vadd.f32 %v2504, %v2579
        %v2588 = vadd.f32 %v2506, %v2580
        %v2589 = vadd.f32 %v2547, %v2581
        %v2590 = vadd.f32 %v2549, %v2582
        %v2591 = vadd.f32 %v2508, %v2583
        %v2592 = vadd.f32 %v2510, %v2584
        %v2593 = vadd.f32 %v2551, %v2585
        %v2594 = vadd.f32 %v2553, %v2586
        %v2595 = vmul.f32 %v2587, 0.7978846
        %v2596 = vmul.f32 %v2588, 0.7978846
        %v2597 = vmul.f32 %v2589, 0.7978846
        %v2598 = vmul.f32 %v2590, 0.7978846
        %v2599 = vmul.f32 %v2591, 0.7978846
        %v2600 = vmul.f32 %v2592, 0.7978846
        %v2601 = vmul.f32 %v2593, 0.7978846
        %v2602 = vmul.f32 %v2594, 0.7978846
        %v2603 = vtanh.pop %v2595
        %v2604 = vtanh.pop %v2596
        %v2605 = vtanh.pop %v2597
        %v2606 = vtanh.pop %v2598
        %v2607 = vtanh.pop %v2599
        %v2608 = vtanh.pop %v2600
        %v2609 = vtanh.pop %v2601
        %v2610 = vtanh.pop %v2602
        %v2611 = vadd.f32 %v2603, 1.0
        %v2612 = vadd.f32 %v2604, 1.0
        %v2613 = vadd.f32 %v2605, 1.0
        %v2614 = vadd.f32 %v2606, 1.0
        %v2615 = vadd.f32 %v2607, 1.0
        %v2616 = vadd.f32 %v2608, 1.0
        %v2617 = vadd.f32 %v2609, 1.0
        %v2618 = vadd.f32 %v2610, 1.0
        %v2619 = vmul.f32 %v2555, %v2611
        %v2620 = vmul.f32 %v2556, %v2612
        %v2621 = vmul.f32 %v2557, %v2613
        %v2622 = vmul.f32 %v2558, %v2614
        %v2623 = vmul.f32 %v2559, %v2615
        %v2624 = vmul.f32 %v2560, %v2616
        %v2625 = vmul.f32 %v2561, %v2617
        %v2626 = vmul.f32 %v2562, %v2618
        %v2627 = vmul.f32 %v2619, %v2418
        %v2628 = vmul.f32 %v2620, %v2420
        %v2629 = vmul.f32 %v2621, %v2461
        %v2630 = vmul.f32 %v2622, %v2463
        %v2631 = vmul.f32 %v2623, %v2422
        %v2632 = vmul.f32 %v2624, %v2424
        %v2633 = vmul.f32 %v2625, %v2465
        %v2634 = vmul.f32 %v2626, %v2467
        %v2635 = vld [vmem:[%s638] sm:$0xf]
        %v2636 = vld [vmem:[%s638 + $0x4] sm:$0xf]
        %v2637 = vld [vmem:[%s638 + $0x8] sm:$0xf]
        %v2638 = vld [vmem:[%s638 + $0xc] sm:$0xf]
        %v2639 = vld [vmem:[%s638 + $0x10] sm:$0xf]
        %v2640 = vld [vmem:[%s638 + $0x14] sm:$0xf]
        %v2641 = vld [vmem:[%s638 + $0x18] sm:$0xf]
        %v2642 = vld [vmem:[%s638 + $0x1c] sm:$0xf]
        %v2643 = vld [vmem:[%s638 + $0x20] sm:$0xf]
        %v2644 = vld [vmem:[%s638 + $0x24] sm:$0xf]
        %v2645 = vld [vmem:[%s638 + $0x28] sm:$0xf]
        %v2646 = vld [vmem:[%s638 + $0x2c] sm:$0xf]
        %v2647 = vld [vmem:[%s638 + $0x30] sm:$0xf]
        %v2648 = vld [vmem:[%s638 + $0x34] sm:$0xf]
        %v2649 = vld [vmem:[%s638 + $0x38] sm:$0xf]
        %v2650 = vld [vmem:[%s638 + $0x3c] sm:$0xf]
        %v2651 = vld [vmem:[%s638 + $0x40] sm:$0xf]
        %v2652 = vld [vmem:[%s638 + $0x44] sm:$0xf]
        %v2653 = vld [vmem:[%s638 + $0x48] sm:$0xf]
        %v2654 = vld [vmem:[%s638 + $0x4c] sm:$0xf]
        %v2655 = vld [vmem:[%s638 + $0x50] sm:$0xf]
        %v2656 = vld [vmem:[%s638 + $0x54] sm:$0xf]
        %v2657 = vld [vmem:[%s638 + $0x58] sm:$0xf]
        %v2658 = vld [vmem:[%s638 + $0x5c] sm:$0xf]
        %v2659 = vld [vmem:[%s638 + $0x60] sm:$0xf]
        %v2660 = vld [vmem:[%s638 + $0x64] sm:$0xf]
        %v2661 = vld [vmem:[%s638 + $0x68] sm:$0xf]
        %v2662 = vld [vmem:[%s638 + $0x6c] sm:$0xf]
        %v2663 = vld [vmem:[%s638 + $0x70] sm:$0xf]
        %v2664 = vld [vmem:[%s638 + $0x74] sm:$0xf]
        %v2665 = vld [vmem:[%s638 + $0x78] sm:$0xf]
        %v2666 = vld [vmem:[%s638 + $0x7c] sm:$0xf]
        %v2667 = vld [vmem:[%s638 + $0x80] sm:$0xf]
        %v2668 = vld [vmem:[%s638 + $0x84] sm:$0xf]
        %v2669 = vld [vmem:[%s638 + $0x88] sm:$0xf]
        %v2670 = vld [vmem:[%s638 + $0x8c] sm:$0xf]
        %v2671 = vld [vmem:[%s638 + $0x90] sm:$0xf]
        %v2672 = vld [vmem:[%s638 + $0x94] sm:$0xf]
        %v2673 = vld [vmem:[%s638 + $0x98] sm:$0xf]
        %v2674 = vld [vmem:[%s638 + $0x9c] sm:$0xf]
        %v2675 = vld [vmem:[%s638 + $0xa0] sm:$0xf]
        %v2676 = vld [vmem:[%s638 + $0xa4] sm:$0xf]
        %v2677 = vld [vmem:[%s638 + $0xa8] sm:$0xf]
        %v2678 = vld [vmem:[%s638 + $0xac] sm:$0xf]
        %v2679 = vld [vmem:[%s638 + $0xb0] sm:$0xf]
        %v2680 = vld [vmem:[%s638 + $0xb4] sm:$0xf]
        %v2681 = vld [vmem:[%s638 + $0xb8] sm:$0xf]
        %v2682 = vld [vmem:[%s638 + $0xbc] sm:$0xf]
        %v2683 = vld [vmem:[%s638 + $0xc0] sm:$0xf]
        %v2684 = vld [vmem:[%s638 + $0xc4] sm:$0xf]
        %v2685 = vld [vmem:[%s638 + $0xc8] sm:$0xf]
        %v2686 = vld [vmem:[%s638 + $0xcc] sm:$0xf]
        %v2687 = vld [vmem:[%s638 + $0xd0] sm:$0xf]
        %v2688 = vld [vmem:[%s638 + $0xd4] sm:$0xf]
        %v2689 = vld [vmem:[%s638 + $0xd8] sm:$0xf]
        %v2690 = vld [vmem:[%s638 + $0xdc] sm:$0xf]
        %v2691 = vld [vmem:[%s638 + $0xe0] sm:$0xf]
        %v2692 = vld [vmem:[%s638 + $0xe4] sm:$0xf]
        %v2693 = vld [vmem:[%s638 + $0xe8] sm:$0xf]
        %v2694 = vld [vmem:[%s638 + $0xec] sm:$0xf]
        %v2695 = vld [vmem:[%s638 + $0xf0] sm:$0xf]
        %v2696 = vld [vmem:[%s638 + $0xf4] sm:$0xf]
        %v2697 = vld [vmem:[%s638 + $0xf8] sm:$0xf]
        %v2698 = vld [vmem:[%s638 + $0xfc] sm:$0xf]
        %v2699 = vld [vmem:[%s747] sm:$0x1]
        %v2700 = vpack.c.bf16 %v2631, %v2627
        %v2701 = vpack.c.bf16 %v2632, %v2628
        %v2702 = vpack.c.bf16 %v2633, %v2629
        %v2703 = vpack.c.bf16 %v2634, %v2630
        %v2705 = vlaneseq
        %v2706 = vshrl.u32 %v2705, 7
        %v2707 = vsub.s32 0, %v2706
        %v2708 = vrot.slane %v2699, %v2707
        %v2774 = vunpack.c.l.b16 %v2635
        %v2775 = vunpack.c.l.b16 %v2636
        %v2776 = vunpack.c.l.b16 %v2637
        %v2777 = vunpack.c.l.b16 %v2638
        %v2778 = vunpack.c.l.b16 %v2639
        %v2779 = vunpack.c.l.b16 %v2640
        %v2780 = vunpack.c.l.b16 %v2641
        %v2781 = vunpack.c.l.b16 %v2642
        %v2782 = vunpack.c.l.b16 %v2643
        %v2783 = vunpack.c.l.b16 %v2644
        %v2784 = vunpack.c.l.b16 %v2645
        %v2785 = vunpack.c.l.b16 %v2646
        %v2786 = vunpack.c.l.b16 %v2647
        %v2787 = vunpack.c.l.b16 %v2648
        %v2788 = vunpack.c.l.b16 %v2649
        %v2789 = vunpack.c.l.b16 %v2650
        %v2790 = vunpack.c.l.b16 %v2651
        %v2791 = vunpack.c.l.b16 %v2652
        %v2792 = vunpack.c.l.b16 %v2653
        %v2793 = vunpack.c.l.b16 %v2654
        %v2794 = vunpack.c.l.b16 %v2655
        %v2795 = vunpack.c.l.b16 %v2656
        %v2796 = vunpack.c.l.b16 %v2657
        %v2797 = vunpack.c.l.b16 %v2658
        %v2798 = vunpack.c.l.b16 %v2659
        %v2799 = vunpack.c.l.b16 %v2660
        %v2800 = vunpack.c.l.b16 %v2661
        %v2801 = vunpack.c.l.b16 %v2662
        %v2802 = vunpack.c.l.b16 %v2663
        %v2803 = vunpack.c.l.b16 %v2664
        %v2804 = vunpack.c.l.b16 %v2665
        %v2805 = vunpack.c.l.b16 %v2666
        %v2806 = vunpack.c.l.b16 %v2667
        %v2807 = vunpack.c.l.b16 %v2668
        %v2808 = vunpack.c.l.b16 %v2669
        %v2809 = vunpack.c.l.b16 %v2670
        %v2810 = vunpack.c.l.b16 %v2671
        %v2811 = vunpack.c.l.b16 %v2672
        %v2812 = vunpack.c.l.b16 %v2673
        %v2813 = vunpack.c.l.b16 %v2674
        %v2814 = vunpack.c.l.b16 %v2675
        %v2815 = vunpack.c.l.b16 %v2676
        %v2816 = vunpack.c.l.b16 %v2677
        %v2817 = vunpack.c.l.b16 %v2678
        %v2818 = vunpack.c.l.b16 %v2679
        %v2819 = vunpack.c.l.b16 %v2680
        %v2820 = vunpack.c.l.b16 %v2681
        %v2821 = vunpack.c.l.b16 %v2682
        %v2822 = vunpack.c.l.b16 %v2683
        %v2823 = vunpack.c.l.b16 %v2684
        %v2824 = vunpack.c.l.b16 %v2685
        %v2825 = vunpack.c.l.b16 %v2686
        %v2826 = vunpack.c.l.b16 %v2687
        %v2827 = vunpack.c.l.b16 %v2688
        %v2828 = vunpack.c.l.b16 %v2689
        %v2829 = vunpack.c.l.b16 %v2690
        %v2830 = vunpack.c.l.b16 %v2691
        %v2831 = vunpack.c.l.b16 %v2692
        %v2832 = vunpack.c.l.b16 %v2693
        %v2833 = vunpack.c.l.b16 %v2694
        %v2834 = vunpack.c.l.b16 %v2695
        %v2835 = vunpack.c.l.b16 %v2696
        %v2836 = vunpack.c.l.b16 %v2697
        %v2837 = vunpack.c.l.b16 %v2698
        %v2838 = vpack.c.b16 %v2775, %v2774
        %v2839 = vpack.c.b16 %v2777, %v2776
        %v2840 = vpack.c.b16 %v2779, %v2778
        %v2841 = vpack.c.b16 %v2781, %v2780
        %v2842 = vpack.c.b16 %v2783, %v2782
        %v2843 = vpack.c.b16 %v2785, %v2784
        %v2844 = vpack.c.b16 %v2787, %v2786
        %v2845 = vpack.c.b16 %v2789, %v2788
        %v2846 = vpack.c.b16 %v2791, %v2790
        %v2847 = vpack.c.b16 %v2793, %v2792
        %v2848 = vpack.c.b16 %v2795, %v2794
        %v2849 = vpack.c.b16 %v2797, %v2796
        %v2850 = vpack.c.b16 %v2799, %v2798
        %v2851 = vpack.c.b16 %v2801, %v2800
        %v2852 = vpack.c.b16 %v2803, %v2802
        %v2853 = vpack.c.b16 %v2805, %v2804
        %v2854 = vpack.c.b16 %v2807, %v2806
        %v2855 = vpack.c.b16 %v2809, %v2808
        %v2856 = vpack.c.b16 %v2811, %v2810
        %v2857 = vpack.c.b16 %v2813, %v2812
        %v2858 = vpack.c.b16 %v2815, %v2814
        %v2859 = vpack.c.b16 %v2817, %v2816
        %v2860 = vpack.c.b16 %v2819, %v2818
        %v2861 = vpack.c.b16 %v2821, %v2820
        %v2862 = vpack.c.b16 %v2823, %v2822
        %v2863 = vpack.c.b16 %v2825, %v2824
        %v2864 = vpack.c.b16 %v2827, %v2826
        %v2865 = vpack.c.b16 %v2829, %v2828
        %v2866 = vpack.c.b16 %v2831, %v2830
        %v2867 = vpack.c.b16 %v2833, %v2832
        %v2868 = vpack.c.b16 %v2835, %v2834
        %v2869 = vpack.c.b16 %v2837, %v2836
        %2902 = vmatprep.subr.bf16.mxu0 0
        %2903 = vmatpush1.bf16.msra.mxu0 %v2845
        %2904 = vmatprep.subr.bf16.mxu0 0
        %2905 = vmatpush1.bf16.msra.mxu0 %v2844
        %2906 = vmatprep.subr.bf16.mxu0 0
        %2907 = vmatpush1.bf16.msra.mxu0 %v2843
        %2908 = vmatprep.subr.bf16.mxu0 0
        %2909 = vmatpush1.bf16.msra.mxu0 %v2842
        %2910 = vmatprep.subr.bf16.mxu0 0
        %2911 = vmatpush1.bf16.msra.mxu0 %v2841
        %2912 = vmatprep.subr.bf16.mxu0 0
        %2913 = vmatpush1.bf16.msra.mxu0 %v2840
        %2914 = vmatprep.subr.bf16.mxu0 0
        %2915 = vmatpush1.bf16.msra.mxu0 %v2839
        %2916 = vmatprep.subr.bf16.mxu0 0
        %2917 = vmatpush1.bf16.msra.mxu0 %v2838
        %2918 = vmatprep.subr.bf16.mxu0 0
        %2919 = vmatpush2.bf16.msra.mxu0 %v2853
        %2920 = vmatprep.subr.bf16.mxu0 0
        %2921 = vmatpush2.bf16.msra.mxu0 %v2852
        %2922 = vmatprep.subr.bf16.mxu0 0
        %2923 = vmatpush2.bf16.msra.mxu0 %v2851
        %2924 = vmatprep.subr.bf16.mxu0 0
        %2925 = vmatpush2.bf16.msra.mxu0 %v2850
        %2926 = vmatprep.subr.bf16.mxu0 0
        %2927 = vmatpush2.bf16.msra.mxu0 %v2849
        %2928 = vmatprep.subr.bf16.mxu0 0
        %2929 = vmatpush2.bf16.msra.mxu0 %v2848
        %2930 = vmatprep.subr.bf16.mxu0 0
        %2931 = vmatpush2.bf16.msra.mxu0 %v2847
        %2932 = vmatprep.subr.bf16.mxu0 0
        %2933 = vmatpush2.bf16.msra.mxu0 %v2846
        %2934 = vmatprep.mubr.bf16.mxu0 %v2701
        %2935 = vmatmul.mubr.bf16.gmra.mxu0 %v2700
        %v2936 = vpop.f32.mrf.mxu0
        %v2937 = vadd.f32 %v2708, %v2936
        %v2938 = vpop.f32.mrf.mxu0
        %v2939 = vpop.f32.mrf.mxu0
        %v2940 = vadd.f32 %v2708, %v2939
        %v2941 = vpop.f32.mrf.mxu0
        %2942 = vdwg.mxu0
        %2943 = vmatprep.subr.bf16.mxu0 0
        %2944 = vmatpush1.bf16.msra.mxu0 %v2861
        %2945 = vmatprep.subr.bf16.mxu0 0
        %2946 = vmatpush1.bf16.msra.mxu0 %v2860
        %2947 = vmatprep.subr.bf16.mxu0 0
        %2948 = vmatpush1.bf16.msra.mxu0 %v2859
        %2949 = vmatprep.subr.bf16.mxu0 0
        %2950 = vmatpush1.bf16.msra.mxu0 %v2858
        %2951 = vmatprep.subr.bf16.mxu0 0
        %2952 = vmatpush1.bf16.msra.mxu0 %v2857
        %2953 = vmatprep.subr.bf16.mxu0 0
        %2954 = vmatpush1.bf16.msra.mxu0 %v2856
        %2955 = vmatprep.subr.bf16.mxu0 0
        %2956 = vmatpush1.bf16.msra.mxu0 %v2855
        %2957 = vmatprep.subr.bf16.mxu0 0
        %2958 = vmatpush1.bf16.msra.mxu0 %v2854
        %2959 = vmatprep.subr.bf16.mxu0 0
        %2960 = vmatpush2.bf16.msra.mxu0 %v2869
        %2961 = vmatprep.subr.bf16.mxu0 0
        %2962 = vmatpush2.bf16.msra.mxu0 %v2868
        %2963 = vmatprep.subr.bf16.mxu0 0
        %2964 = vmatpush2.bf16.msra.mxu0 %v2867
        %2965 = vmatprep.subr.bf16.mxu0 0
        %2966 = vmatpush2.bf16.msra.mxu0 %v2866
        %2967 = vmatprep.subr.bf16.mxu0 0
        %2968 = vmatpush2.bf16.msra.mxu0 %v2865
        %2969 = vmatprep.subr.bf16.mxu0 0
        %2970 = vmatpush2.bf16.msra.mxu0 %v2864
        %2971 = vmatprep.subr.bf16.mxu0 0
        %2972 = vmatpush2.bf16.msra.mxu0 %v2863
        %2973 = vmatprep.subr.bf16.mxu0 0
        %2974 = vmatpush2.bf16.msra.mxu0 %v2862
        %2975 = vmatprep.mubr.bf16.mxu0 %v2703
        %2976 = vmatmul.mubr.bf16.gmra.mxu0 %v2702
        %v2977 = vpop.f32.mrf.mxu0
        %v2978 = vadd.f32 %v2937, %v2977
        %v2979 = vpop.f32.mrf.mxu0
        %v2980 = vpop.f32.mrf.mxu0
        %v2981 = vadd.f32 %v2940, %v2980
        %v2982 = vpop.f32.mrf.mxu0
        %2983 = vdwg.mxu0
        %v2984 = vadd.f32 %v1920, %v2978
        %v2985 = vadd.f32 %v1921, %v2981
        %2986 = vst [vmem:[#allocation2] sm:$0xff] %v2984
        %2987 = vst [vmem:[#allocation2 + $0x8] sm:$0xff] %v2985
        %p2988 = scmp.eq.s32.totalorder %s35, 1
        // Predicated region
        $region105: #{ldlm_forward.1} parent=87 // pred_check
          %p2989 = pneg %p2988
        $region106: #{ldlm_forward.1} parent=87 // pred_check_branch
          %2991 = sbr.rel (%p2989) target = $region108
        $region107: #{ldlm_forward.1} parent=87 // pred_region
          %v2992 = vld [vmem:[%s14] sm:$0x1]
          %v2993 = vld [vmem:[%s14 + $0x1] sm:$0x1]
          %2994 = vadd.xlane.f32.xlu0 %v2984
          %v2995 = vpop.xlane.xlu0 %2994
          %2996 = vadd.xlane.f32.xlu0 %v2985
          %v2997 = vpop.xlane.xlu0 %2996
          %v2998 = vmul.f32 %v2995, %v807
          %v2999 = vmul.f32 %v2997, %v807
          %v3000 = vsub.f32 %v2984, %v2998
          %v3001 = vsub.f32 %v2985, %v2999
          %v3002 = vmul.f32 %v3000, %v3000
          %v3003 = vmul.f32 %v3001, %v3001
          %3004 = vadd.xlane.f32.xlu0 %v3002
          %v3005 = vpop.xlane.xlu0 %3004
          %3006 = vadd.xlane.f32.xlu0 %v3003
          %v3007 = vpop.xlane.xlu0 %3006
          %v3008 = vmul.f32 %v3005, %v807
          %v3009 = vmul.f32 %v3007, %v807
          %v3010 = vadd.f32 %v3008, 1e-05
          %v3011 = vadd.f32 %v3009, 1e-05
          %v3012 = vrsqrt.pop %v3010
          %v3013 = vrsqrt.pop %v3011
          %v3014 = vmul.f32 %v3000, %v3012
          %v3015 = vmul.f32 %v3001, %v3013
          %v3016 = vlaneseq
          %v3017 = vshrl.u32 %v3016, 7
          %v3018 = vsub.s32 0, %v3017
          %v3019 = vrot.slane %v2992, %v3018
          %v3020 = vmul.f32 %v3014, %v3019
          %v3021 = vmul.f32 %v3015, %v3019
          %v3022 = vlaneseq
          %v3023 = vshrl.u32 %v3022, 7
          %v3024 = vsub.s32 0, %v3023
          %v3025 = vrot.slane %v2993, %v3024
          %v3026 = vadd.f32 %v3020, %v3025
          %v3027 = vadd.f32 %v3021, %v3025
          %v3028 = vld [vmem:[%s15] sm:$0xff]
          %v3029 = vld [vmem:[%s15 + $0x8] sm:$0xff]
          %v3030 = vld [vmem:[%s15 + $0x10] sm:$0xff]
          %v3031 = vld [vmem:[%s15 + $0x18] sm:$0xff]
          %v3032 = vld [vmem:[%s15 + $0x20] sm:$0xff]
          %v3033 = vld [vmem:[%s15 + $0x28] sm:$0xff]
          %v3034 = vld [vmem:[%s15 + $0x30] sm:$0xff]
          %v3035 = vld [vmem:[%s15 + $0x38] sm:$0xff]
          %v3036 = vld [vmem:[%s15 + $0x40] sm:$0xff]
          %v3037 = vld [vmem:[%s15 + $0x48] sm:$0xff]
          %v3038 = vld [vmem:[%s15 + $0x50] sm:$0xff]
          %v3039 = vld [vmem:[%s15 + $0x58] sm:$0xff]
          %v3040 = vld [vmem:[%s15 + $0x60] sm:$0xff]
          %v3041 = vld [vmem:[%s15 + $0x68] sm:$0xff]
          %v3042 = vld [vmem:[%s15 + $0x70] sm:$0xff]
          %v3043 = vld [vmem:[%s15 + $0x78] sm:$0xff]
          %v3044 = vld [vmem:[%s16] sm:$0x1]
          %v3046 = vlaneseq
          %v3047 = vshrl.u32 %v3046, 7
          %v3048 = vsub.s32 0, %v3047
          %v3049 = vrot.slane %v3044, %v3048
          %v3053 = vrot.slane %v3026, 1
          %vm3054 = vcmask 1041409
          %v3055 = vsel %vm3054, %v3027, %v3053
          %3057 = vmatprep.subr.mxu0 0.0
          %3058 = vmatpush1.msra.mxu0 %v3043
          %3059 = vmatprep.subr.mxu0 0.0
          %3060 = vmatpush1.msra.mxu0 %v3042
          %3061 = vmatprep.subr.mxu0 0.0
          %3062 = vmatpush1.msra.mxu0 %v3041
          %3063 = vmatprep.subr.mxu0 0.0
          %3064 = vmatpush1.msra.mxu0 %v3040
          %3065 = vmatprep.subr.mxu0 0.0
          %3066 = vmatpush1.msra.mxu0 %v3039
          %3067 = vmatprep.subr.mxu0 0.0
          %3068 = vmatpush1.msra.mxu0 %v3038
          %3069 = vmatprep.subr.mxu0 0.0
          %3070 = vmatpush1.msra.mxu0 %v3037
          %3071 = vmatprep.subr.mxu0 0.0
          %3072 = vmatpush1.msra.mxu0 %v3036
          %3073 = vmatprep.subr.mxu0 0.0
          %3074 = vmatpush1.msra.mxu0 %v3035
          %3075 = vmatprep.subr.mxu0 0.0
          %3076 = vmatpush1.msra.mxu0 %v3034
          %3077 = vmatprep.subr.mxu0 0.0
          %3078 = vmatpush1.msra.mxu0 %v3033
          %3079 = vmatprep.subr.mxu0 0.0
          %3080 = vmatpush1.msra.mxu0 %v3032
          %3081 = vmatprep.subr.mxu0 0.0
          %3082 = vmatpush1.msra.mxu0 %v3031
          %3083 = vmatprep.subr.mxu0 0.0
          %3084 = vmatpush1.msra.mxu0 %v3030
          %3085 = vmatprep.subr.mxu0 0.0
          %3086 = vmatpush1.msra.mxu0 %v3029
          %3087 = vmatprep.subr.mxu0 0.0
          %3088 = vmatpush1.msra.mxu0 %v3028
          %3089 = vmatprep.subr.mxu0 0.0
          %3090 = vmatpush2.msra.mxu0 0.0
          %3091 = vmatprep.subr.mxu0 0.0
          %3092 = vmatpush2.msra.mxu0 0.0
          %3093 = vmatprep.subr.mxu0 0.0
          %3094 = vmatpush2.msra.mxu0 0.0
          %3095 = vmatprep.subr.mxu0 0.0
          %3096 = vmatpush2.msra.mxu0 0.0
          %3097 = vmatprep.subr.mxu0 0.0
          %3098 = vmatpush2.msra.mxu0 0.0
          %3099 = vmatprep.subr.mxu0 0.0
          %3100 = vmatpush2.msra.mxu0 0.0
          %3101 = vmatprep.subr.mxu0 0.0
          %3102 = vmatpush2.msra.mxu0 0.0
          %3103 = vmatprep.subr.mxu0 0.0
          %3104 = vmatpush2.msra.mxu0 0.0
          %3105 = vmatprep.subr.mxu0 0.0
          %3106 = vmatpush2.msra.mxu0 0.0
          %3107 = vmatprep.subr.mxu0 0.0
          %3108 = vmatpush2.msra.mxu0 0.0
          %3109 = vmatprep.subr.mxu0 0.0
          %3110 = vmatpush2.msra.mxu0 0.0
          %3111 = vmatprep.subr.mxu0 0.0
          %3112 = vmatpush2.msra.mxu0 0.0
          %3113 = vmatprep.subr.mxu0 0.0
          %3114 = vmatpush2.msra.mxu0 0.0
          %3115 = vmatprep.subr.mxu0 0.0
          %3116 = vmatpush2.msra.mxu0 0.0
          %3117 = vmatprep.subr.mxu0 0.0
          %3118 = vmatpush2.msra.mxu0 0.0
          %3119 = vmatprep.subr.mxu0 0.0
          %3120 = vmatpush2.msra.mxu0 0.0
          %3121 = vmatprep.mubr.f32.mxu0 0.0
          %3122 = vmatmul.mubr.f32.gmra.mxu0 %v3055
          %v3123 = vpop.f32.mrf.mxu0
          %v3124 = vadd.f32 %v3049, %v3123
          %v3125 = vpop.f32.mrf.mxu0
          %3126 = vdwg.mxu0
          %v3129 = vunpack.c.l.s4 1966171168
          %v3130 = vunpack.c.0.s8 %v3129
          %v3131 = vlaneseq
          %v3132 = vshrl.u32 %v3131, 7
          %v3133 = vsub.s32 %v3130, %v3132
          %v3134 = vrot.slane %v3124, %v3133
          %v3135 = vcombine.high %v3134, %v3134
          %v3137 = vunpack.c.l.s4 1966171168
          %v3138 = vunpack.c.0.s8 %v3137
          %v3139 = vlaneseq
          %v3140 = vshrl.u32 %v3139, 7
          %v3141 = vsub.s32 %v3138, %v3140
          %v3142 = vrot.slane %v3134, %v3141
          %v3144 = vunpack.c.l.s4 1966171168
          %v3145 = vunpack.c.0.s8 %v3144
          %v3146 = vlaneseq
          %v3147 = vshrl.u32 %v3146, 7
          %v3148 = vsub.s32 %v3145, %v3147
          %v3149 = vrot.slane %v3135, %v3148
          %vm3152 = vcmask 253952
          %3153 = vst.msk [vmem:[#allocation9] sm:$0x1] %vm3152, %v3142
          %3154 = vst.msk [vmem:[#allocation9 + $0x1] sm:$0x1] %vm3152, %v3149
        $region108: #{ldlm_forward.1} parent=87 // pred_fallthru
          _
        // Predicated region
        $region109: #{ldlm_forward.1} parent=87 // pred_check
          %p3155 = pneg %p455
        $region110: #{ldlm_forward.1} parent=87 // pred_check_branch
          %3157 = sbr.rel (%p3155) target = $region112
        $region111: #{ldlm_forward.1} parent=87 // pred_region
          %s3159 = ssub.s32 32, 32
          %3160 = vsyncadd [#allocation5], %s3159
          %s3161 = sshll.u32 [#allocation9], 4
          %s3162 = int_to_ptr.vmem [resolvable:$true] %s3161
          %3167 = dma.vmem_to_hbm [thread:$0]  %s3162, 32, %s17, [#allocation5], 16, 16, 1
        $region112: #{ldlm_forward.1} parent=87 // pred_fallthru
          _
        // Predicated region
        $region113: #{ldlm_forward.1} parent=87 // pred_check
          %p3168 = pneg %p455
        $region114: #{ldlm_forward.1} parent=87 // pred_check_branch
          %3170 = sbr.rel (%p3168) target = $region116
        $region115: #{ldlm_forward.1} parent=87 // pred_region
          %3171 = dma.done [#allocation5], 32
        $region116: #{ldlm_forward.1} parent=87 // pred_fallthru
          _
      $region88: #{ldlm_forward.1} parent=5 // pred_fallthru
        _
      %p3172 = scmp.le.s32.totalorder 2, %s30
      // Predicated region
      $region117: #{ldlm_forward.1} parent=5 // pred_check
        %p3173 = pneg %p3172
      $region118: #{ldlm_forward.1} parent=5 // pred_check_branch
        %3175 = sbr.rel (%p3173) target = $region120
      $region119: #{ldlm_forward.1} parent=5 // pred_region
        %s3176 = ssub.s32 %s30, 2
      $region120: #{ldlm_forward.1} parent=5 // pred_fallthru
        _
    $region6: #{ldlm_forward.1} parent=1 // loop_footer
      %s34 = sadd.s32 1, %s30
    $region7: #{ldlm_forward.1} parent=1 // loop_footer_branch
      %29 = sbr.rel target = $region3
    $region8: #{ldlm_forward.1} parent=1 // loop_exit
      _
    %3177 = vsyncpa [#allocation4], 1
    %s3178 = scalar_lea.sflag [#allocation4], 1
    %3179 = vsyncpa %s3178, 1
    %3180 = vsyncpa [#allocation7], 1
    %s3181 = scalar_lea.sflag [#allocation7], 1
    %3182 = vsyncpa %s3181, 1
    %3183 = vsyncpa [#allocation5], 1
    %s3184 = scalar_lea.sflag [#allocation5], 1
    %3185 = vsyncpa %s3184, 1

</llo_original>
